<compile_context>
chip_gen: v5e
topology: v5e:2x2
jax: 0.10.0
libtpu: 0.0.40
codegen_flags: <defaults>
</compile_context>

<pallas_src>
import functools
import math

import jax
import jax.numpy as jnp
from jax.experimental import pallas as pl
from jax.experimental.pallas import tpu as pltpu


# Above the default scoped VMEM limits (16/32 MiB), below v7x physical 64 MiB.
_VMEM_LIMIT = 48 * 1024 * 1024


# -----------------------------------------------------------------------------
# Edge masks for roll-based "same" convolution taps (precomputed on host/XLA).
# -----------------------------------------------------------------------------
def _make_masks(K, H, W):
    """mask[dy*K+dx, q] = 1 if output position q has a valid (in-image) input
    at spatial offset (dy - K//2, dx - K//2), else 0."""
    HW = H * W
    r = jnp.arange(HW, dtype=jnp.int32) // W
    c = jnp.arange(HW, dtype=jnp.int32) % W
    p = K // 2
    masks = []
    for dy in range(K):
        for dx in range(K):
            dyo, dxo = dy - p, dx - p
            valid = ((r + dyo >= 0) & (r + dyo < H) &
                     (c + dxo >= 0) & (c + dxo < W))
            masks.append(valid.astype(jnp.float32))
    return jnp.stack(masks, axis=0)                      # (K*K, HW)


# -----------------------------------------------------------------------------
# In-kernel helpers: roll+mask taps (channel-major, lane-dense)
# -----------------------------------------------------------------------------
def _shifted_tap(frame, dyo, dxo, mask_ref, tap_idx, W, HW):
    """frame (C, HW) f32 -> frame shifted by (dyo, dxo) with zero padding."""
    off = dyo * W + dxo
    if off == 0:
        return frame
    rolled = pltpu.roll(frame, shift=(-off) % HW, axis=1)   # XLU lane rotate
    return rolled * mask_ref[tap_idx:tap_idx + 1, :]        # zero the wrap-around


def _taps_3x3_bf16(frame, m3_ref, W, HW):
    """(C, HW) f32 -> (9*C, HW) bf16 im2col patch (tap-major, channel-minor)."""
    pieces = []
    for dy in range(3):
        for dx in range(3):
            pieces.append(
                _shifted_tap(frame, dy - 1, dx - 1, m3_ref, dy * 3 + dx, W, HW))
    return jnp.concatenate(pieces, axis=0).astype(jnp.bfloat16)


def _conv_cm(x, w_ref, b_ref, K, mask_ref, W, act, alpha=None):
    """Channel-major 'same' KxK conv: (Cout, K*Cin) @ (K*Cin, HW) per kernel row.

    x: (Cin, HW) f32.  w_ref: (K, Cout, K*Cin) bf16.  b_ref: (Cout, 1) f32.
    """
    Cin, HW = x.shape
    Cout = w_ref.shape[1]
    p = K // 2
    acc = jnp.zeros((Cout, HW), jnp.float32)
    for dy in range(K):
        row = [_shifted_tap(x, dy - p, dx - p, mask_ref, dy * K + dx, W, HW)
               for dx in range(K)]
        row_patch = jnp.concatenate(row, axis=0).astype(jnp.bfloat16)  # (K*Cin, HW)
        acc = acc + jnp.dot(w_ref[dy], row_patch,
                            preferred_element_type=jnp.float32)
    acc = acc + b_ref[...]
    if act == "relu":
        acc = jnp.maximum(acc, 0.0)
    elif act == "sigmoid":
        acc = jax.nn.sigmoid(acc)
    elif act == "prelu":
        acc = jnp.where(acc > 0.0, acc, alpha * acc)
    return acc


# -----------------------------------------------------------------------------
# Kernel A: fused bi-directional multi-layer ConvLSTM recurrence
# -----------------------------------------------------------------------------
def _convlstm_kernel(x_ref, wx_ref, wh_ref, b_ref, m3_ref, hout_ref,
                     c_buf, gates_buf, seq_buf, *, H, W, k, L, T_f, T_b):
    """grid = (dir, B, L, T_max), dims ("parallel","parallel","arbitrary","arbitrary").

      x_ref   : (1, 1, Cmax, HW)   layer-0 input frame for this (dir, t)
      wx_ref  : (1, 4k, 9*Cmax)    bf16 x-path gate weights of layer l
      wh_ref  : (1, 4k, 9*Cmax)    bf16 h-path gate weights of layer l
      b_ref   : (1, 4k, 1)         f32 gate bias of layer l
      m3_ref  : (9, HW)            3x3 edge masks
      hout_ref: (1, k, HW)         this direction's half of st_fea (written once)
      c_buf   : VMEM (k, HW)       cell state, carried across t within a layer
      gates_buf: VMEM (4k, HW)     f32 gate accumulator
      seq_buf : VMEM (T_max, Cmax, HW)  current layer's frame sequence,
                overwritten in place -> next layer's inputs.
    """
    HW = H * W
    Cmax = seq_buf.shape[1]
    d = pl.program_id(0)
    l = pl.program_id(2)
    t = pl.program_id(3)
    T_d = jnp.where(d == 0, T_f, T_b)        # per-direction sequence length

    # NOTE: correctness of the in-place seq_buf overwrite relies on the grid
    # iteration order (t innermost, then l, then batch/direction).  Do not
    # reorder the grid axes or move l/t to "parallel".
    @pl.when(t < T_d)
    def _step():
        @pl.when(t == 0)
        def _():
            c_buf[...] = jnp.zeros_like(c_buf)

        @pl.when(l == 0)
        def _():
            seq_buf[t] = x_ref[0, 0]          # layer-0 input comes from HBM frame

        x_flat = seq_buf[t]                   # (Cmax, HW) current-layer input at t

        # x-path gate contribution (always) -- one MXU contraction.
        gates_buf[...] = b_ref[0] + jnp.dot(
            wx_ref[0], _taps_3x3_bf16(x_flat, m3_ref, W, HW),
            preferred_element_type=jnp.float32)

        # h-path contribution only when a previous hidden state exists.
        @pl.when(t > 0)
        def _():
            h_prev = seq_buf[t - 1]           # previous hidden of this layer
            gates_buf[...] += jnp.dot(
                wh_ref[0], _taps_3x3_bf16(h_prev, m3_ref, W, HW),
                preferred_element_type=jnp.float32)

        gates = gates_buf[...]                # (4k, HW) f32, sublane-aligned slices
        i_g = jax.nn.sigmoid(gates[0 * k:1 * k])
        f_g = jax.nn.sigmoid(gates[1 * k:2 * k])
        o_g = jax.nn.sigmoid(gates[2 * k:3 * k])
        g_g = jnp.tanh(gates[3 * k:4 * k])

        c_next = f_g * c_buf[...] + i_g * g_g
        h_next = o_g * jnp.tanh(c_next)
        c_buf[...] = c_next

        # h_t becomes x_t of layer l+1 and h_{t-1} of this layer's next step.
        if Cmax > k:
            h_store = jnp.concatenate(
                [h_next, jnp.zeros((Cmax - k, HW), jnp.float32)], axis=0)
        else:
            h_store = h_next
        seq_buf[t] = h_store

        # Single lane-dense write of the final hidden state per (dir, batch).
        @pl.when(jnp.logical_and(l == L - 1, t == T_d - 1))
        def _():
            hout_ref[0] = h_next


def _run_bi_convlstm(x_cm, wx, wh, bg, *, H, W, T_f, T_b):
    """x_cm: (B, S, Cmax, HW) f32 -> st_fea (B, 2k, HW) f32 ([forward | backward])."""
    B, S, Cmax, HW = x_cm.shape
    L, k4, _ = wx.shape
    k = k4 // 4
    T_max = max(T_f, T_b)
    m3 = _make_masks(3, H, W)

    def x_index(d, b, l, t):
        # Fetch layer-0 frames only; freeze the block index for l > 0 so the
        # sequence is not re-DMA'd once per layer (review item).
        t_eff = jnp.where(l == 0, t, T_max - 1)
        idx_f = jnp.minimum(t_eff, T_f - 1)       # forward : frames 0 .. T_f-1
        idx_b = (S - 1) - t_eff                   # backward: frames S-1 .. S-T_b (reversed)
        return (b, jnp.where(d == 0, idx_f, idx_b), 0, 0)

    kern = functools.partial(_convlstm_kernel, H=H, W=W, k=k, L=L,
                             T_f=T_f, T_b=T_b)
    return pl.pallas_call(
        kern,
        out_shape=jax.ShapeDtypeStruct((B, 2 * k, HW), jnp.float32),
        grid=(2, B, L, T_max),
        in_specs=[
            pl.BlockSpec((1, 1, Cmax, HW), x_index),
            pl.BlockSpec((1, 4 * k, wx.shape[-1]), lambda d, b, l, t: (l, 0, 0)),
            pl.BlockSpec((1, 4 * k, wh.shape[-1]), lambda d, b, l, t: (l, 0, 0)),
            pl.BlockSpec((1, 4 * k, 1), lambda d, b, l, t: (l, 0, 0)),
            pl.BlockSpec((9, HW), lambda d, b, l, t: (0, 0)),
        ],
        out_specs=pl.BlockSpec((1, k, HW), lambda d, b, l, t: (b, d, 0)),
        scratch_shapes=[
            pltpu.VMEM((k, HW), jnp.float32),            # cell state c_t
            pltpu.VMEM((4 * k, HW), jnp.float32),        # gate accumulator
            pltpu.VMEM((T_max, Cmax, HW), jnp.float32),  # per-layer frame sequence
        ],
        compiler_params=pltpu.CompilerParams(
            dimension_semantics=("parallel", "parallel", "arbitrary", "arbitrary"),
            vmem_limit_bytes=_VMEM_LIMIT),
    )(x_cm, wx, wh, bg, m3)


# -----------------------------------------------------------------------------
# Kernel B: fused refinement + attention conv chain (channel-major)
# -----------------------------------------------------------------------------
def _att_kernel(st_ref, rec_ref, m3_ref, m5_ref,
                wr0, br0, wr1, br1, wc0, bc0, wc1, bc1, wc2, bc2,
                alpha_ref, o_ref, *, W):
    st = st_ref[0]                                   # (2k, HW)
    rec = rec_ref[0]                                 # (1, HW)
    r = _conv_cm(rec, wr0, br0, 3, m3_ref, W, "relu")
    r = _conv_cm(r, wr1, br1, 3, m3_ref, W, "relu")
    feat = jnp.concatenate([st, r], axis=0)          # channels: [st_fwd|st_bwd|refine]
    y = _conv_cm(feat, wc0, bc0, 5, m5_ref, W, "prelu", alpha=alpha_ref[0])
    y = _conv_cm(y, wc1, bc1, 5, m5_ref, W, "prelu", alpha=alpha_ref[1])
    y = _conv_cm(y, wc2, bc2, 5, m5_ref, W, "sigmoid")
    o_ref[0] = y                                     # lane-dense (1, HW) store


def _run_attention(st_fea, rec_cm, params, *, H, W):
    B, twok, HW = st_fea.shape
    m3 = _make_masks(3, H, W)
    m5 = _make_masks(5, H, W)
    wr0, br0 = params["refine0"]
    wr1, br1 = params["refine1"]
    wc0, bc0 = params["conv0"]
    wc1, bc1 = params["conv1"]
    wc2, bc2 = params["conv2"]

    def full(a):
        return pl.BlockSpec(a.shape, lambda b, _nd=a.ndim: (0,) * _nd)

    kern = functools.partial(_att_kernel, W=W)
    return pl.pallas_call(
        kern,
        out_shape=jax.ShapeDtypeStruct((B, 1, HW), jnp.float32),
        grid=(B,),
        in_specs=[
            pl.BlockSpec((1, twok, HW), lambda b: (b, 0, 0)),
            pl.BlockSpec((1, 1, HW), lambda b: (b, 0, 0)),
            full(m3), full(m5),
            full(wr0), full(br0), full(wr1), full(br1),
            full(wc0), full(bc0), full(wc1), full(bc1), full(wc2), full(bc2),
            pl.BlockSpec(memory_space=pltpu.MemorySpace.SMEM),
        ],
        out_specs=pl.BlockSpec((1, 1, HW), lambda b: (b, 0, 0)),
        compiler_params=pltpu.CompilerParams(
            dimension_semantics=("parallel",),
            vmem_limit_bytes=_VMEM_LIMIT),
    )(st_fea, rec_cm, m3, m5, wr0, br0, wr1, br1,
      wc0, bc0, wc1, bc1, wc2, bc2, params["prelu"])


# -----------------------------------------------------------------------------
# Full forward pass (mirrors the PyTorch module)
# -----------------------------------------------------------------------------
@jax.jit
def forward(params, x, recon_img):
    # x: (B, S, c, H, W)  (batch_first ConvLSTM convention; NCHW per frame)
    # recon_img: (B, 1, H, W)
    B, S, c, H, W = x.shape
    # Faithful quirk: the reference reads T from x.shape[2] (the channel dim)
    # and slices the sequence dim with it, silently dropping frame T//2.
    T = x.shape[2]
    T_f = T // 2
    T_b = S - (T // 2 + 1)
    assert 1 <= T_f <= S and 1 <= T_b <= S, "degenerate forward/backward split"

    Cmax = params["lstm_wx"].shape[2] // 9
    x_cm = x.reshape(B, S, c, H * W)                 # channel-major, lane-dense
    if Cmax > c:
        x_cm = jnp.pad(x_cm, ((0, 0), (0, 0), (0, Cmax - c), (0, 0)))

    st_fea = _run_bi_convlstm(x_cm, params["lstm_wx"], params["lstm_wh"],
                              params["lstm_b"], H=H, W=W, T_f=T_f, T_b=T_b)
    rec_cm = recon_img.reshape(B, 1, H * W)
    att = _run_attention(st_fea, rec_cm, params, H=H, W=W)
    return att.reshape(B, 1, H, W)                   # (B, 1, H, W) NCHW


# -----------------------------------------------------------------------------
# Deterministic parameter initialization (shapes from the module's __init__)
# -----------------------------------------------------------------------------
def _conv_param_cm(key, K, cin, cout):
    """Conv2d params in channel-major matmul layout: w (K, cout, K*cin) bf16."""
    bound = 1.0 / math.sqrt(cin * K * K)
    wk, bk = jax.random.split(key)
    w = jax.random.uniform(wk, (cout, cin, K, K), jnp.float32, -bound, bound)
    b = jax.random.uniform(bk, (cout,), jnp.float32, -bound, bound)
    w_cm = jnp.transpose(w, (2, 0, 3, 1)).reshape(K, cout, K * cin)
    return w_cm.astype(jnp.bfloat16), b.reshape(cout, 1)


def init_params(key, c=4, k=8, k1=16, layers=5):
    Cmax = max(c, k)
    keys = jax.random.split(key, layers + 5)

    # ConvLSTM: per layer, x-path and h-path gate weights in channel-major
    # matmul layout (4k, 9*Cmax), columns ordered tap-major / channel-minor.
    wx_list, wh_list, b_list = [], [], []
    for l in range(layers):
        cin_x = c if l == 0 else k
        bound = 1.0 / math.sqrt((cin_x + k) * 9)
        wk, bk = jax.random.split(keys[l])
        w = jax.random.uniform(wk, (4 * k, cin_x + k, 3, 3), jnp.float32,
                               -bound, bound)
        b = jax.random.uniform(bk, (4 * k,), jnp.float32, -bound, bound)

        def to_cm(wp):                         # (4k, cin, 3, 3) -> (4k, 9*Cmax)
            cin = wp.shape[1]
            wp = jnp.pad(wp, ((0, 0), (0, Cmax - cin), (0, 0), (0, 0)))
            wp = jnp.transpose(wp, (0, 2, 3, 1))        # (4k, 3, 3, Cmax)
            return wp.reshape(4 * k, 9 * Cmax)

        wx_list.append(to_cm(w[:, :cin_x]))
        wh_list.append(to_cm(w[:, cin_x:]))
        b_list.append(b.reshape(4 * k, 1))

    return {
        "lstm_wx": jnp.stack(wx_list).astype(jnp.bfloat16),   # (L, 4k, 9*Cmax)
        "lstm_wh": jnp.stack(wh_list).astype(jnp.bfloat16),   # (L, 4k, 9*Cmax)
        "lstm_b": jnp.stack(b_list),                          # (L, 4k, 1) f32
        "refine0": _conv_param_cm(keys[layers + 0], 3, 1, k1),
        "refine1": _conv_param_cm(keys[layers + 1], 3, k1, k1),
        "conv0": _conv_param_cm(keys[layers + 2], 5, 2 * k + k1, k),
        "conv1": _conv_param_cm(keys[layers + 3], 5, k, k // 2),
        "conv2": _conv_param_cm(keys[layers + 4], 5, k // 2, 1),
        "prelu": jnp.array([0.25, 0.25], jnp.float32),        # nn.PReLU() default
    }


if __name__ == "__main__":
    c, k, k1, layers = 4, 8, 16, 5
    B, S, H, W = 2, 8, 16, 16

    key = jax.random.PRNGKey(0)
    pkey, xkey, rkey = jax.random.split(key, 3)
    params = init_params(pkey, c=c, k=k, k1=k1, layers=layers)

    x = jax.random.normal(xkey, (B, S, c, H, W), jnp.float32)
    recon_img = jax.random.normal(rkey, (B, 1, H, W), jnp.float32)

    att_map = forward(params, x, recon_img)
    att_map = jax.block_until_ready(att_map)

    assert att_map.shape == (B, 1, H, W), att_map.shape
    assert bool(jnp.all(jnp.isfinite(att_map)))
    assert bool(jnp.all((att_map >= 0.0) & (att_map <= 1.0)))  # sigmoid output
    print("KERNEL_OK")
</pallas_src>

<mosaic_0001>
module attributes {stable_mosaic.version = 11 : i64} {
  func.func @_convlstm_kernel(%arg0: i32, %arg1: i32, %arg2: i32, %arg3: i32, %arg4: memref<1x1x8x256xf32, #tpu.memory_space<vmem>>, %arg5: memref<1x32x72xbf16, #tpu.memory_space<vmem>>, %arg6: memref<1x32x72xbf16, #tpu.memory_space<vmem>>, %arg7: memref<1x32x1xf32, #tpu.memory_space<vmem>>, %arg8: memref<9x256xf32, #tpu.memory_space<vmem>>, %arg9: memref<1x8x256xf32, #tpu.memory_space<vmem>>, %arg10: memref<8x256xf32, #tpu.memory_space<vmem>>, %arg11: memref<32x256xf32, #tpu.memory_space<vmem>>, %arg12: memref<5x8x256xf32, #tpu.memory_space<vmem>>) attributes {dimension_semantics = [#tpu.dimension_semantics<parallel>, #tpu.dimension_semantics<parallel>, #tpu.dimension_semantics<arbitrary>, #tpu.dimension_semantics<arbitrary>], iteration_bounds = array<i64: 2, 2, 5, 5>, scalar_prefetch = 0 : i64, scratch_operands = 3 : i64, tpu.core_type = #tpu.core_type<tc>, window_params = [{transform_indices = @transform_0, window_bounds = array<i64: 1, 1, 8, 256>}, {transform_indices = @transform_1, window_bounds = array<i64: 1, 32, 72>}, {transform_indices = @transform_2, window_bounds = array<i64: 1, 32, 72>}, {transform_indices = @transform_3, window_bounds = array<i64: 1, 32, 1>}, {pipeline_mode = #tpu.pipeline_mode<synchronous>, transform_indices = @transform_4, window_bounds = array<i64: 9, 256>}, {transform_indices = @transform_5, window_bounds = array<i64: 1, 8, 256>}]} {
    %c0_i32 = arith.constant 0 : i32
    %0 = arith.cmpi eq, %arg0, %c0_i32 : i32
    %c2_i32 = arith.constant 2 : i32
    %c5_i32 = arith.constant 5 : i32
    %1 = arith.select %0, %c2_i32, %c5_i32 : i32
    %2 = arith.cmpi slt, %arg3, %1 : i32
    %3 = arith.extui %2 : i1 to i32
    %c0_i32_0 = arith.constant 0 : i32
    %4 = arith.cmpi ne, %3, %c0_i32_0 : i32
    scf.if %4 {
      %c0_i32_1 = arith.constant 0 : i32
      %5 = arith.cmpi eq, %arg3, %c0_i32_1 : i32
      %6 = arith.extui %5 : i1 to i32
      %c0_i32_2 = arith.constant 0 : i32
      %7 = arith.cmpi ne, %6, %c0_i32_2 : i32
      scf.if %7 {
        %cst_38 = arith.constant 0.000000e+00 : f32
        %97 = vector.broadcast %cst_38 : f32 to vector<8x256xf32>
        %c0_39 = arith.constant 0 : index
        %c0_40 = arith.constant 0 : index
        %98 = vector.load %arg10[%c0_39, %c0_40] : memref<8x256xf32, #tpu.memory_space<vmem>>, vector<8x256xf32>
        tpu.vector_store %arg10[%c0_39, %c0_40], %97 {strides = array<i32>} : memref<8x256xf32, #tpu.memory_space<vmem>>, vector<8x256xf32>,
      } else {
      }
      %c0_i32_3 = arith.constant 0 : i32
      %8 = arith.cmpi eq, %arg2, %c0_i32_3 : i32
      %9 = arith.extui %8 : i1 to i32
      %c0_i32_4 = arith.constant 0 : i32
      %10 = arith.cmpi ne, %9, %c0_i32_4 : i32
      scf.if %10 {
        %c0_38 = arith.constant 0 : index
        %c0_39 = arith.constant 0 : index
        %c0_40 = arith.constant 0 : index
        %c0_41 = arith.constant 0 : index
        %97 = vector.load %arg4[%c0_38, %c0_39, %c0_40, %c0_41] : memref<1x1x8x256xf32, #tpu.memory_space<vmem>>, vector<1x1x8x256xf32>
        %98 = vector.shape_cast %97 : vector<1x1x8x256xf32> to vector<8x256xf32>
        %99 = arith.index_cast %arg3 : i32 to index
        %c0_42 = arith.constant 0 : index
        %c0_43 = arith.constant 0 : index
        %100 = vector.load %arg12[%99, %c0_42, %c0_43] : memref<5x8x256xf32, #tpu.memory_space<vmem>>, vector<1x8x256xf32>
        %101 = vector.shape_cast %100 : vector<1x8x256xf32> to vector<8x256xf32>
        %102 = vector.shape_cast %98 : vector<8x256xf32> to vector<1x8x256xf32>
        tpu.vector_store %arg12[%99, %c0_42, %c0_43], %102 {strides = array<i32>} : memref<5x8x256xf32, #tpu.memory_space<vmem>>, vector<1x8x256xf32>,
      } else {
      }
      %11 = arith.index_cast %arg3 : i32 to index
      %c0 = arith.constant 0 : index
      %c0_5 = arith.constant 0 : index
      %12 = vector.load %arg12[%11, %c0, %c0_5] : memref<5x8x256xf32, #tpu.memory_space<vmem>>, vector<1x8x256xf32>
      %13 = vector.shape_cast %12 : vector<1x8x256xf32> to vector<8x256xf32>
      %c0_6 = arith.constant 0 : index
      %c0_7 = arith.constant 0 : index
      %c0_8 = arith.constant 0 : index
      %14 = vector.load %arg7[%c0_6, %c0_7, %c0_8] : memref<1x32x1xf32, #tpu.memory_space<vmem>>, vector<1x32x1xf32>
      %15 = vector.shape_cast %14 : vector<1x32x1xf32> to vector<32x1xf32>
      %c0_9 = arith.constant 0 : index
      %c0_10 = arith.constant 0 : index
      %c0_11 = arith.constant 0 : index
      %16 = vector.load %arg5[%c0_9, %c0_10, %c0_11] : memref<1x32x72xbf16, #tpu.memory_space<vmem>>, vector<1x32x72xbf16>
      %17 = vector.shape_cast %16 : vector<1x32x72xbf16> to vector<32x72xbf16>
      %c17_i32 = arith.constant 17 : i32
      %18 = tpu.dynamic_rotate %13 by %c17_i32 dim 1 : vector<8x256xf32>, i32 -> vector<8x256xf32>
      %c0_12 = arith.constant 0 : index
      %c0_13 = arith.constant 0 : index
      %19 = vector.load %arg8[%c0_12, %c0_13] : memref<9x256xf32, #tpu.memory_space<vmem>>, vector<1x256xf32>
      %20 = vector.broadcast %19 : vector<1x256xf32> to vector<8x256xf32>
      %21 = arith.mulf %18, %20 : vector<8x256xf32>
      %c16_i32 = arith.constant 16 : i32
      %22 = tpu.dynamic_rotate %13 by %c16_i32 dim 1 : vector<8x256xf32>, i32 -> vector<8x256xf32>
      %c1 = arith.constant 1 : index
      %c0_14 = arith.constant 0 : index
      %23 = vector.load %arg8[%c1, %c0_14] : memref<9x256xf32, #tpu.memory_space<vmem>>, vector<1x256xf32>
      %24 = vector.broadcast %23 : vector<1x256xf32> to vector<8x256xf32>
      %25 = arith.mulf %22, %24 : vector<8x256xf32>
      %c15_i32 = arith.constant 15 : i32
      %26 = tpu.dynamic_rotate %13 by %c15_i32 dim 1 : vector<8x256xf32>, i32 -> vector<8x256xf32>
      %c2 = arith.constant 2 : index
      %c0_15 = arith.constant 0 : index
      %27 = vector.load %arg8[%c2, %c0_15] : memref<9x256xf32, #tpu.memory_space<vmem>>, vector<1x256xf32>
      %28 = vector.broadcast %27 : vector<1x256xf32> to vector<8x256xf32>
      %29 = arith.mulf %26, %28 : vector<8x256xf32>
      %c1_i32 = arith.constant 1 : i32
      %30 = tpu.dynamic_rotate %13 by %c1_i32 dim 1 : vector<8x256xf32>, i32 -> vector<8x256xf32>
      %c3 = arith.constant 3 : index
      %c0_16 = arith.constant 0 : index
      %31 = vector.load %arg8[%c3, %c0_16] : memref<9x256xf32, #tpu.memory_space<vmem>>, vector<1x256xf32>
      %32 = vector.broadcast %31 : vector<1x256xf32> to vector<8x256xf32>
      %33 = arith.mulf %30, %32 : vector<8x256xf32>
      %c255_i32 = arith.constant 255 : i32
      %34 = tpu.dynamic_rotate %13 by %c255_i32 dim 1 : vector<8x256xf32>, i32 -> vector<8x256xf32>
      %c5 = arith.constant 5 : index
      %c0_17 = arith.constant 0 : index
      %35 = vector.load %arg8[%c5, %c0_17] : memref<9x256xf32, #tpu.memory_space<vmem>>, vector<1x256xf32>
      %36 = vector.broadcast %35 : vector<1x256xf32> to vector<8x256xf32>
      %37 = arith.mulf %34, %36 : vector<8x256xf32>
      %c241_i32 = arith.constant 241 : i32
      %38 = tpu.dynamic_rotate %13 by %c241_i32 dim 1 : vector<8x256xf32>, i32 -> vector<8x256xf32>
      %c6 = arith.constant 6 : index
      %c0_18 = arith.constant 0 : index
      %39 = vector.load %arg8[%c6, %c0_18] : memref<9x256xf32, #tpu.memory_space<vmem>>, vector<1x256xf32>
      %40 = vector.broadcast %39 : vector<1x256xf32> to vector<8x256xf32>
      %41 = arith.mulf %38, %40 : vector<8x256xf32>
      %c240_i32 = arith.constant 240 : i32
      %42 = tpu.dynamic_rotate %13 by %c240_i32 dim 1 : vector<8x256xf32>, i32 -> vector<8x256xf32>
      %c7 = arith.constant 7 : index
      %c0_19 = arith.constant 0 : index
      %43 = vector.load %arg8[%c7, %c0_19] : memref<9x256xf32, #tpu.memory_space<vmem>>, vector<1x256xf32>
      %44 = vector.broadcast %43 : vector<1x256xf32> to vector<8x256xf32>
      %45 = arith.mulf %42, %44 : vector<8x256xf32>
      %c239_i32 = arith.constant 239 : i32
      %46 = tpu.dynamic_rotate %13 by %c239_i32 dim 1 : vector<8x256xf32>, i32 -> vector<8x256xf32>
      %c8 = arith.constant 8 : index
      %c0_20 = arith.constant 0 : index
      %47 = vector.load %arg8[%c8, %c0_20] : memref<9x256xf32, #tpu.memory_space<vmem>>, vector<1x256xf32>
      %48 = vector.broadcast %47 : vector<1x256xf32> to vector<8x256xf32>
      %49 = arith.mulf %46, %48 : vector<8x256xf32>
      %50 = tpu.concatenate %21, %25, %29, %33, %13, %37, %41, %45, %49 in 0 : vector<8x256xf32>, vector<8x256xf32>, vector<8x256xf32>, vector<8x256xf32>, vector<8x256xf32>, vector<8x256xf32>, vector<8x256xf32>, vector<8x256xf32>, vector<8x256xf32> -> vector<72x256xf32>
      %51 = arith.truncf %50 : vector<72x256xf32> to vector<72x256xbf16>
      %cst = arith.constant dense<0.000000e+00> : vector<32x256xf32>
      %52 = tpu.matmul %17, %51, %cst {dimension_numbers = #tpu.dot_dimension_numbers<[1], [0], [0], [1], [0, 0, 1, 1], [], []>} : vector<32x72xbf16>, vector<72x256xbf16>, vector<32x256xf32> -> vector<32x256xf32>
      %53 = vector.broadcast %15 : vector<32x1xf32> to vector<32x256xf32>
      %54 = arith.addf %53, %52 : vector<32x256xf32>
      %c0_21 = arith.constant 0 : index
      %c0_22 = arith.constant 0 : index
      %55 = vector.load %arg11[%c0_21, %c0_22] : memref<32x256xf32, #tpu.memory_space<vmem>>, vector<32x256xf32>
      tpu.vector_store %arg11[%c0_21, %c0_22], %54 {strides = array<i32>} : memref<32x256xf32, #tpu.memory_space<vmem>>, vector<32x256xf32>,
      %c0_i32_23 = arith.constant 0 : i32
      %56 = arith.cmpi sgt, %arg3, %c0_i32_23 : i32
      %57 = arith.extui %56 : i1 to i32
      %c0_i32_24 = arith.constant 0 : i32
      %58 = arith.cmpi ne, %57, %c0_i32_24 : i32
      scf.if %58 {
        %c1_i32_38 = arith.constant 1 : i32
        %97 = arith.subi %arg3, %c1_i32_38 : i32
        %98 = arith.index_cast %97 : i32 to index
        %c0_39 = arith.constant 0 : index
        %c0_40 = arith.constant 0 : index
        %99 = vector.load %arg12[%98, %c0_39, %c0_40] : memref<5x8x256xf32, #tpu.memory_space<vmem>>, vector<1x8x256xf32>
        %100 = vector.shape_cast %99 : vector<1x8x256xf32> to vector<8x256xf32>
        %c0_41 = arith.constant 0 : index
        %c0_42 = arith.constant 0 : index
        %101 = vector.load %arg11[%c0_41, %c0_42] : memref<32x256xf32, #tpu.memory_space<vmem>>, vector<32x256xf32>
        %c0_43 = arith.constant 0 : index
        %c0_44 = arith.constant 0 : index
        %c0_45 = arith.constant 0 : index
        %102 = vector.load %arg6[%c0_43, %c0_44, %c0_45] : memref<1x32x72xbf16, #tpu.memory_space<vmem>>, vector<1x32x72xbf16>
        %103 = vector.shape_cast %102 : vector<1x32x72xbf16> to vector<32x72xbf16>
        %c17_i32_46 = arith.constant 17 : i32
        %104 = tpu.dynamic_rotate %100 by %c17_i32_46 dim 1 : vector<8x256xf32>, i32 -> vector<8x256xf32>
        %c0_47 = arith.constant 0 : index
        %c0_48 = arith.constant 0 : index
        %105 = vector.load %arg8[%c0_47, %c0_48] : memref<9x256xf32, #tpu.memory_space<vmem>>, vector<1x256xf32>
        %106 = vector.broadcast %105 : vector<1x256xf32> to vector<8x256xf32>
        %107 = arith.mulf %104, %106 : vector<8x256xf32>
        %c16_i32_49 = arith.constant 16 : i32
        %108 = tpu.dynamic_rotate %100 by %c16_i32_49 dim 1 : vector<8x256xf32>, i32 -> vector<8x256xf32>
        %c1_50 = arith.constant 1 : index
        %c0_51 = arith.constant 0 : index
        %109 = vector.load %arg8[%c1_50, %c0_51] : memref<9x256xf32, #tpu.memory_space<vmem>>, vector<1x256xf32>
        %110 = vector.broadcast %109 : vector<1x256xf32> to vector<8x256xf32>
        %111 = arith.mulf %108, %110 : vector<8x256xf32>
        %c15_i32_52 = arith.constant 15 : i32
        %112 = tpu.dynamic_rotate %100 by %c15_i32_52 dim 1 : vector<8x256xf32>, i32 -> vector<8x256xf32>
        %c2_53 = arith.constant 2 : index
        %c0_54 = arith.constant 0 : index
        %113 = vector.load %arg8[%c2_53, %c0_54] : memref<9x256xf32, #tpu.memory_space<vmem>>, vector<1x256xf32>
        %114 = vector.broadcast %113 : vector<1x256xf32> to vector<8x256xf32>
        %115 = arith.mulf %112, %114 : vector<8x256xf32>
        %c1_i32_55 = arith.constant 1 : i32
        %116 = tpu.dynamic_rotate %100 by %c1_i32_55 dim 1 : vector<8x256xf32>, i32 -> vector<8x256xf32>
        %c3_56 = arith.constant 3 : index
        %c0_57 = arith.constant 0 : index
        %117 = vector.load %arg8[%c3_56, %c0_57] : memref<9x256xf32, #tpu.memory_space<vmem>>, vector<1x256xf32>
        %118 = vector.broadcast %117 : vector<1x256xf32> to vector<8x256xf32>
        %119 = arith.mulf %116, %118 : vector<8x256xf32>
        %c255_i32_58 = arith.constant 255 : i32
        %120 = tpu.dynamic_rotate %100 by %c255_i32_58 dim 1 : vector<8x256xf32>, i32 -> vector<8x256xf32>
        %c5_59 = arith.constant 5 : index
        %c0_60 = arith.constant 0 : index
        %121 = vector.load %arg8[%c5_59, %c0_60] : memref<9x256xf32, #tpu.memory_space<vmem>>, vector<1x256xf32>
        %122 = vector.broadcast %121 : vector<1x256xf32> to vector<8x256xf32>
        %123 = arith.mulf %120, %122 : vector<8x256xf32>
        %c241_i32_61 = arith.constant 241 : i32
        %124 = tpu.dynamic_rotate %100 by %c241_i32_61 dim 1 : vector<8x256xf32>, i32 -> vector<8x256xf32>
        %c6_62 = arith.constant 6 : index
        %c0_63 = arith.constant 0 : index
        %125 = vector.load %arg8[%c6_62, %c0_63] : memref<9x256xf32, #tpu.memory_space<vmem>>, vector<1x256xf32>
        %126 = vector.broadcast %125 : vector<1x256xf32> to vector<8x256xf32>
        %127 = arith.mulf %124, %126 : vector<8x256xf32>
        %c240_i32_64 = arith.constant 240 : i32
        %128 = tpu.dynamic_rotate %100 by %c240_i32_64 dim 1 : vector<8x256xf32>, i32 -> vector<8x256xf32>
        %c7_65 = arith.constant 7 : index
        %c0_66 = arith.constant 0 : index
        %129 = vector.load %arg8[%c7_65, %c0_66] : memref<9x256xf32, #tpu.memory_space<vmem>>, vector<1x256xf32>
        %130 = vector.broadcast %129 : vector<1x256xf32> to vector<8x256xf32>
        %131 = arith.mulf %128, %130 : vector<8x256xf32>
        %c239_i32_67 = arith.constant 239 : i32
        %132 = tpu.dynamic_rotate %100 by %c239_i32_67 dim 1 : vector<8x256xf32>, i32 -> vector<8x256xf32>
        %c8_68 = arith.constant 8 : index
        %c0_69 = arith.constant 0 : index
        %133 = vector.load %arg8[%c8_68, %c0_69] : memref<9x256xf32, #tpu.memory_space<vmem>>, vector<1x256xf32>
        %134 = vector.broadcast %133 : vector<1x256xf32> to vector<8x256xf32>
        %135 = arith.mulf %132, %134 : vector<8x256xf32>
        %136 = tpu.concatenate %107, %111, %115, %119, %100, %123, %127, %131, %135 in 0 : vector<8x256xf32>, vector<8x256xf32>, vector<8x256xf32>, vector<8x256xf32>, vector<8x256xf32>, vector<8x256xf32>, vector<8x256xf32>, vector<8x256xf32>, vector<8x256xf32> -> vector<72x256xf32>
        %137 = arith.truncf %136 : vector<72x256xf32> to vector<72x256xbf16>
        %cst_70 = arith.constant dense<0.000000e+00> : vector<32x256xf32>
        %138 = tpu.matmul %103, %137, %cst_70 {dimension_numbers = #tpu.dot_dimension_numbers<[1], [0], [0], [1], [0, 0, 1, 1], [], []>} : vector<32x72xbf16>, vector<72x256xbf16>, vector<32x256xf32> -> vector<32x256xf32>
        %139 = arith.addf %101, %138 : vector<32x256xf32>
        %c0_71 = arith.constant 0 : index
        %c0_72 = arith.constant 0 : index
        %140 = vector.load %arg11[%c0_71, %c0_72] : memref<32x256xf32, #tpu.memory_space<vmem>>, vector<32x256xf32>
        tpu.vector_store %arg11[%c0_71, %c0_72], %139 {strides = array<i32>} : memref<32x256xf32, #tpu.memory_space<vmem>>, vector<32x256xf32>,
      } else {
      }
      %c0_25 = arith.constant 0 : index
      %c0_26 = arith.constant 0 : index
      %59 = vector.load %arg11[%c0_25, %c0_26] : memref<32x256xf32, #tpu.memory_space<vmem>>, vector<32x256xf32>
      %60 = vector.extract_strided_slice %59 {offsets = [0, 0], sizes = [8, 256], strides = [1, 1]} : vector<32x256xf32> to vector<8x256xf32>
      %61 = arith.negf %60 : vector<8x256xf32>
      %62 = math.exp %61 : vector<8x256xf32>
      %cst_27 = arith.constant 1.000000e+00 : f32
      %63 = vector.broadcast %cst_27 : f32 to vector<8x256xf32>
      %64 = arith.addf %63, %62 : vector<8x256xf32>
      %65 = arith.divf %63, %64 : vector<8x256xf32>
      %66 = vector.extract_strided_slice %59 {offsets = [8, 0], sizes = [8, 256], strides = [1, 1]} : vector<32x256xf32> to vector<8x256xf32>
      %67 = arith.negf %66 : vector<8x256xf32>
      %68 = math.exp %67 : vector<8x256xf32>
      %cst_28 = arith.constant 1.000000e+00 : f32
      %69 = vector.broadcast %cst_28 : f32 to vector<8x256xf32>
      %70 = arith.addf %69, %68 : vector<8x256xf32>
      %71 = arith.divf %69, %70 : vector<8x256xf32>
      %72 = vector.extract_strided_slice %59 {offsets = [16, 0], sizes = [8, 256], strides = [1, 1]} : vector<32x256xf32> to vector<8x256xf32>
      %73 = arith.negf %72 : vector<8x256xf32>
      %74 = math.exp %73 : vector<8x256xf32>
      %cst_29 = arith.constant 1.000000e+00 : f32
      %75 = vector.broadcast %cst_29 : f32 to vector<8x256xf32>
      %76 = arith.addf %75, %74 : vector<8x256xf32>
      %77 = arith.divf %75, %76 : vector<8x256xf32>
      %78 = vector.extract_strided_slice %59 {offsets = [24, 0], sizes = [8, 256], strides = [1, 1]} : vector<32x256xf32> to vector<8x256xf32>
      %79 = math.tanh %78 : vector<8x256xf32>
      %c0_30 = arith.constant 0 : index
      %c0_31 = arith.constant 0 : index
      %80 = vector.load %arg10[%c0_30, %c0_31] : memref<8x256xf32, #tpu.memory_space<vmem>>, vector<8x256xf32>
      %81 = arith.mulf %71, %80 : vector<8x256xf32>
      %82 = arith.mulf %65, %79 : vector<8x256xf32>
      %83 = arith.addf %81, %82 : vector<8x256xf32>
      %84 = math.tanh %83 : vector<8x256xf32>
      %85 = arith.mulf %77, %84 : vector<8x256xf32>
      %c0_32 = arith.constant 0 : index
      %c0_33 = arith.constant 0 : index
      %86 = vector.load %arg10[%c0_32, %c0_33] : memref<8x256xf32, #tpu.memory_space<vmem>>, vector<8x256xf32>
      tpu.vector_store %arg10[%c0_32, %c0_33], %83 {strides = array<i32>} : memref<8x256xf32, #tpu.memory_space<vmem>>, vector<8x256xf32>,
      %87 = arith.index_cast %arg3 : i32 to index
      %c0_34 = arith.constant 0 : index
      %c0_35 = arith.constant 0 : index
      %88 = vector.load %arg12[%87, %c0_34, %c0_35] : memref<5x8x256xf32, #tpu.memory_space<vmem>>, vector<1x8x256xf32>
      %89 = vector.shape_cast %88 : vector<1x8x256xf32> to vector<8x256xf32>
      %90 = vector.shape_cast %85 : vector<8x256xf32> to vector<1x8x256xf32>
      tpu.vector_store %arg12[%87, %c0_34, %c0_35], %90 {strides = array<i32>} : memref<5x8x256xf32, #tpu.memory_space<vmem>>, vector<1x8x256xf32>,
      %c4_i32 = arith.constant 4 : i32
      %91 = arith.cmpi eq, %arg2, %c4_i32 : i32
      %c1_i32_36 = arith.constant 1 : i32
      %92 = arith.subi %1, %c1_i32_36 : i32
      %93 = arith.cmpi eq, %arg3, %92 : i32
      %94 = arith.andi %91, %93 : i1
      %95 = arith.extui %94 : i1 to i32
      %c0_i32_37 = arith.constant 0 : i32
      %96 = arith.cmpi ne, %95, %c0_i32_37 : i32
      scf.if %96 {
        %c0_38 = arith.constant 0 : index
        %c0_39 = arith.constant 0 : index
        %c0_40 = arith.constant 0 : index
        %97 = vector.load %arg9[%c0_38, %c0_39, %c0_40] : memref<1x8x256xf32, #tpu.memory_space<vmem>>, vector<1x8x256xf32>
        %98 = vector.shape_cast %97 : vector<1x8x256xf32> to vector<8x256xf32>
        %99 = vector.shape_cast %85 : vector<8x256xf32> to vector<1x8x256xf32>
        tpu.vector_store %arg9[%c0_38, %c0_39, %c0_40], %99 {strides = array<i32>} : memref<1x8x256xf32, #tpu.memory_space<vmem>>, vector<1x8x256xf32>,
      } else {
      }
    } else {
    }
    return
  }
  func.func @transform_0(%arg0: i32, %arg1: i32, %arg2: i32, %arg3: i32) -> (i32, i32, i32, i32) {
    %c0_i32 = arith.constant 0 : i32
    %0 = arith.cmpi eq, %arg2, %c0_i32 : i32
    %c4_i32 = arith.constant 4 : i32
    %1 = arith.select %0, %arg3, %c4_i32 : i32
    %c1_i32 = arith.constant 1 : i32
    %2 = arith.minsi %1, %c1_i32 : i32
    %c7_i32 = arith.constant 7 : i32
    %3 = arith.subi %c7_i32, %1 : i32
    %c0_i32_0 = arith.constant 0 : i32
    %4 = arith.cmpi eq, %arg0, %c0_i32_0 : i32
    %5 = arith.select %4, %2, %3 : i32
    %c0_i32_1 = arith.constant 0 : i32
    %c0_i32_2 = arith.constant 0 : i32
    %c0_i32_3 = arith.constant 0 : i32
    return %arg1, %5, %c0_i32_1, %c0_i32_2 : i32, i32, i32, i32
  }
  func.func @transform_1(%arg0: i32, %arg1: i32, %arg2: i32, %arg3: i32) -> (i32, i32, i32) {
    %c0_i32 = arith.constant 0 : i32
    %c0_i32_0 = arith.constant 0 : i32
    %c0_i32_1 = arith.constant 0 : i32
    return %arg2, %c0_i32, %c0_i32_0 : i32, i32, i32
  }
  func.func @transform_2(%arg0: i32, %arg1: i32, %arg2: i32, %arg3: i32) -> (i32, i32, i32) {
    %c0_i32 = arith.constant 0 : i32
    %c0_i32_0 = arith.constant 0 : i32
    %c0_i32_1 = arith.constant 0 : i32
    return %arg2, %c0_i32, %c0_i32_0 : i32, i32, i32
  }
  func.func @transform_3(%arg0: i32, %arg1: i32, %arg2: i32, %arg3: i32) -> (i32, i32, i32) {
    %c0_i32 = arith.constant 0 : i32
    %c0_i32_0 = arith.constant 0 : i32
    %c0_i32_1 = arith.constant 0 : i32
    return %arg2, %c0_i32, %c0_i32_0 : i32, i32, i32
  }
  func.func @transform_4(%arg0: i32, %arg1: i32, %arg2: i32, %arg3: i32) -> (i32, i32) {
    %c0_i32 = arith.constant 0 : i32
    %c0_i32_0 = arith.constant 0 : i32
    %c0_i32_1 = arith.constant 0 : i32
    return %c0_i32, %c0_i32_0 : i32, i32
  }
  func.func @transform_5(%arg0: i32, %arg1: i32, %arg2: i32, %arg3: i32) -> (i32, i32, i32) {
    %c0_i32 = arith.constant 0 : i32
    %c0_i32_0 = arith.constant 0 : i32
    return %arg1, %arg0, %c0_i32 : i32, i32, i32
  }
}

module attributes {stable_mosaic.version = 11 : i64} {
  func.func @_att_kernel(%arg0: i32, %arg1: memref<1x16x256xf32, #tpu.memory_space<vmem>>, %arg2: memref<1x1x256xf32, #tpu.memory_space<vmem>>, %arg3: memref<9x256xf32, #tpu.memory_space<vmem>>, %arg4: memref<25x256xf32, #tpu.memory_space<vmem>>, %arg5: memref<3x16x3xbf16, #tpu.memory_space<vmem>>, %arg6: memref<16x1xf32, #tpu.memory_space<vmem>>, %arg7: memref<3x16x48xbf16, #tpu.memory_space<vmem>>, %arg8: memref<16x1xf32, #tpu.memory_space<vmem>>, %arg9: memref<5x8x160xbf16, #tpu.memory_space<vmem>>, %arg10: memref<8x1xf32, #tpu.memory_space<vmem>>, %arg11: memref<5x4x40xbf16, #tpu.memory_space<vmem>>, %arg12: memref<4x1xf32, #tpu.memory_space<vmem>>, %arg13: memref<5x1x20xbf16, #tpu.memory_space<vmem>>, %arg14: memref<1x1xf32, #tpu.memory_space<vmem>>, %arg15: memref<2xf32, #tpu.memory_space<smem>>, %arg16: memref<1x1x256xf32, #tpu.memory_space<vmem>>) attributes {dimension_semantics = [#tpu.dimension_semantics<parallel>], iteration_bounds = array<i64: 2>, scalar_prefetch = 0 : i64, scratch_operands = 0 : i64, tpu.core_type = #tpu.core_type<tc>, window_params = [{transform_indices = @transform_0, window_bounds = array<i64: 1, 16, 256>}, {transform_indices = @transform_1, window_bounds = array<i64: 1, 1, 256>}, {pipeline_mode = #tpu.pipeline_mode<synchronous>, transform_indices = @transform_2, window_bounds = array<i64: 9, 256>}, {pipeline_mode = #tpu.pipeline_mode<synchronous>, transform_indices = @transform_3, window_bounds = array<i64: 25, 256>}, {pipeline_mode = #tpu.pipeline_mode<synchronous>, transform_indices = @transform_4, window_bounds = array<i64: 3, 16, 3>}, {pipeline_mode = #tpu.pipeline_mode<synchronous>, transform_indices = @transform_5, window_bounds = array<i64: 16, 1>}, {pipeline_mode = #tpu.pipeline_mode<synchronous>, transform_indices = @transform_6, window_bounds = array<i64: 3, 16, 48>}, {pipeline_mode = #tpu.pipeline_mode<synchronous>, transform_indices = @transform_7, window_bounds = array<i64: 16, 1>}, {pipeline_mode = #tpu.pipeline_mode<synchronous>, transform_indices = @transform_8, window_bounds = array<i64: 5, 8, 160>}, {pipeline_mode = #tpu.pipeline_mode<synchronous>, transform_indices = @transform_9, window_bounds = array<i64: 8, 1>}, {pipeline_mode = #tpu.pipeline_mode<synchronous>, transform_indices = @transform_10, window_bounds = array<i64: 5, 4, 40>}, {pipeline_mode = #tpu.pipeline_mode<synchronous>, transform_indices = @transform_11, window_bounds = array<i64: 4, 1>}, {pipeline_mode = #tpu.pipeline_mode<synchronous>, transform_indices = @transform_12, window_bounds = array<i64: 5, 1, 20>}, {pipeline_mode = #tpu.pipeline_mode<synchronous>, transform_indices = @transform_13, window_bounds = array<i64: 1, 1>}, {transform_indices = @transform_14, window_bounds = array<i64: 2>}, {transform_indices = @transform_15, window_bounds = array<i64: 1, 1, 256>}]} {
    %c0 = arith.constant 0 : index
    %c0_0 = arith.constant 0 : index
    %c0_1 = arith.constant 0 : index
    %0 = vector.load %arg1[%c0, %c0_0, %c0_1] : memref<1x16x256xf32, #tpu.memory_space<vmem>>, vector<1x16x256xf32>
    %1 = vector.shape_cast %0 : vector<1x16x256xf32> to vector<16x256xf32>
    %c0_2 = arith.constant 0 : index
    %c0_3 = arith.constant 0 : index
    %c0_4 = arith.constant 0 : index
    %2 = vector.load %arg2[%c0_2, %c0_3, %c0_4] : memref<1x1x256xf32, #tpu.memory_space<vmem>>, vector<1x1x256xf32>
    %3 = vector.shape_cast %2 : vector<1x1x256xf32> to vector<1x256xf32>
    %cst = arith.constant 0.000000e+00 : f32
    %4 = vector.broadcast %cst : f32 to vector<16x256xf32>
    %c17_i32 = arith.constant 17 : i32
    %5 = tpu.dynamic_rotate %3 by %c17_i32 dim 1 : vector<1x256xf32>, i32 -> vector<1x256xf32>
    %c0_5 = arith.constant 0 : index
    %c0_6 = arith.constant 0 : index
    %6 = vector.load %arg3[%c0_5, %c0_6] : memref<9x256xf32, #tpu.memory_space<vmem>>, vector<1x256xf32>
    %7 = arith.mulf %5, %6 : vector<1x256xf32>
    %c16_i32 = arith.constant 16 : i32
    %8 = tpu.dynamic_rotate %3 by %c16_i32 dim 1 : vector<1x256xf32>, i32 -> vector<1x256xf32>
    %c1 = arith.constant 1 : index
    %c0_7 = arith.constant 0 : index
    %9 = vector.load %arg3[%c1, %c0_7] : memref<9x256xf32, #tpu.memory_space<vmem>>, vector<1x256xf32>
    %10 = arith.mulf %8, %9 : vector<1x256xf32>
    %c15_i32 = arith.constant 15 : i32
    %11 = tpu.dynamic_rotate %3 by %c15_i32 dim 1 : vector<1x256xf32>, i32 -> vector<1x256xf32>
    %c2 = arith.constant 2 : index
    %c0_8 = arith.constant 0 : index
    %12 = vector.load %arg3[%c2, %c0_8] : memref<9x256xf32, #tpu.memory_space<vmem>>, vector<1x256xf32>
    %13 = arith.mulf %11, %12 : vector<1x256xf32>
    %14 = tpu.concatenate %7, %10, %13 in 0 : vector<1x256xf32>, vector<1x256xf32>, vector<1x256xf32> -> vector<3x256xf32>
    %15 = arith.truncf %14 : vector<3x256xf32> to vector<3x256xbf16>
    %c0_9 = arith.constant 0 : index
    %c0_10 = arith.constant 0 : index
    %c0_11 = arith.constant 0 : index
    %16 = vector.load %arg5[%c0_9, %c0_10, %c0_11] : memref<3x16x3xbf16, #tpu.memory_space<vmem>>, vector<1x16x3xbf16>
    %17 = vector.shape_cast %16 : vector<1x16x3xbf16> to vector<16x3xbf16>
    %cst_12 = arith.constant dense<0.000000e+00> : vector<16x256xf32>
    %18 = tpu.matmul %17, %15, %cst_12 {dimension_numbers = #tpu.dot_dimension_numbers<[1], [0], [0], [1], [0, 0, 1, 1], [], []>} : vector<16x3xbf16>, vector<3x256xbf16>, vector<16x256xf32> -> vector<16x256xf32>
    %19 = arith.addf %4, %18 : vector<16x256xf32>
    %c1_i32 = arith.constant 1 : i32
    %20 = tpu.dynamic_rotate %3 by %c1_i32 dim 1 : vector<1x256xf32>, i32 -> vector<1x256xf32>
    %c3 = arith.constant 3 : index
    %c0_13 = arith.constant 0 : index
    %21 = vector.load %arg3[%c3, %c0_13] : memref<9x256xf32, #tpu.memory_space<vmem>>, vector<1x256xf32>
    %22 = arith.mulf %20, %21 : vector<1x256xf32>
    %c255_i32 = arith.constant 255 : i32
    %23 = tpu.dynamic_rotate %3 by %c255_i32 dim 1 : vector<1x256xf32>, i32 -> vector<1x256xf32>
    %c5 = arith.constant 5 : index
    %c0_14 = arith.constant 0 : index
    %24 = vector.load %arg3[%c5, %c0_14] : memref<9x256xf32, #tpu.memory_space<vmem>>, vector<1x256xf32>
    %25 = arith.mulf %23, %24 : vector<1x256xf32>
    %26 = tpu.concatenate %22, %3, %25 in 0 : vector<1x256xf32>, vector<1x256xf32>, vector<1x256xf32> -> vector<3x256xf32>
    %27 = arith.truncf %26 : vector<3x256xf32> to vector<3x256xbf16>
    %c1_15 = arith.constant 1 : index
    %c0_16 = arith.constant 0 : index
    %c0_17 = arith.constant 0 : index
    %28 = vector.load %arg5[%c1_15, %c0_16, %c0_17] : memref<3x16x3xbf16, #tpu.memory_space<vmem>>, vector<1x16x3xbf16>
    %29 = vector.shape_cast %28 : vector<1x16x3xbf16> to vector<16x3xbf16>
    %cst_18 = arith.constant dense<0.000000e+00> : vector<16x256xf32>
    %30 = tpu.matmul %29, %27, %cst_18 {dimension_numbers = #tpu.dot_dimension_numbers<[1], [0], [0], [1], [0, 0, 1, 1], [], []>} : vector<16x3xbf16>, vector<3x256xbf16>, vector<16x256xf32> -> vector<16x256xf32>
    %31 = arith.addf %19, %30 : vector<16x256xf32>
    %c241_i32 = arith.constant 241 : i32
    %32 = tpu.dynamic_rotate %3 by %c241_i32 dim 1 : vector<1x256xf32>, i32 -> vector<1x256xf32>
    %c6 = arith.constant 6 : index
    %c0_19 = arith.constant 0 : index
    %33 = vector.load %arg3[%c6, %c0_19] : memref<9x256xf32, #tpu.memory_space<vmem>>, vector<1x256xf32>
    %34 = arith.mulf %32, %33 : vector<1x256xf32>
    %c240_i32 = arith.constant 240 : i32
    %35 = tpu.dynamic_rotate %3 by %c240_i32 dim 1 : vector<1x256xf32>, i32 -> vector<1x256xf32>
    %c7 = arith.constant 7 : index
    %c0_20 = arith.constant 0 : index
    %36 = vector.load %arg3[%c7, %c0_20] : memref<9x256xf32, #tpu.memory_space<vmem>>, vector<1x256xf32>
    %37 = arith.mulf %35, %36 : vector<1x256xf32>
    %c239_i32 = arith.constant 239 : i32
    %38 = tpu.dynamic_rotate %3 by %c239_i32 dim 1 : vector<1x256xf32>, i32 -> vector<1x256xf32>
    %c8 = arith.constant 8 : index
    %c0_21 = arith.constant 0 : index
    %39 = vector.load %arg3[%c8, %c0_21] : memref<9x256xf32, #tpu.memory_space<vmem>>, vector<1x256xf32>
    %40 = arith.mulf %38, %39 : vector<1x256xf32>
    %41 = tpu.concatenate %34, %37, %40 in 0 : vector<1x256xf32>, vector<1x256xf32>, vector<1x256xf32> -> vector<3x256xf32>
    %42 = arith.truncf %41 : vector<3x256xf32> to vector<3x256xbf16>
    %c2_22 = arith.constant 2 : index
    %c0_23 = arith.constant 0 : index
    %c0_24 = arith.constant 0 : index
    %43 = vector.load %arg5[%c2_22, %c0_23, %c0_24] : memref<3x16x3xbf16, #tpu.memory_space<vmem>>, vector<1x16x3xbf16>
    %44 = vector.shape_cast %43 : vector<1x16x3xbf16> to vector<16x3xbf16>
    %cst_25 = arith.constant dense<0.000000e+00> : vector<16x256xf32>
    %45 = tpu.matmul %44, %42, %cst_25 {dimension_numbers = #tpu.dot_dimension_numbers<[1], [0], [0], [1], [0, 0, 1, 1], [], []>} : vector<16x3xbf16>, vector<3x256xbf16>, vector<16x256xf32> -> vector<16x256xf32>
    %46 = arith.addf %31, %45 : vector<16x256xf32>
    %c0_26 = arith.constant 0 : index
    %c0_27 = arith.constant 0 : index
    %47 = vector.load %arg6[%c0_26, %c0_27] : memref<16x1xf32, #tpu.memory_space<vmem>>, vector<16x1xf32>
    %48 = vector.broadcast %47 : vector<16x1xf32> to vector<16x256xf32>
    %49 = arith.addf %46, %48 : vector<16x256xf32>
    %cst_28 = arith.constant 0.000000e+00 : f32
    %50 = vector.broadcast %cst_28 : f32 to vector<16x256xf32>
    %51 = arith.maximumf %49, %50 : vector<16x256xf32>
    %cst_29 = arith.constant 0.000000e+00 : f32
    %52 = vector.broadcast %cst_29 : f32 to vector<16x256xf32>
    %c17_i32_30 = arith.constant 17 : i32
    %53 = tpu.dynamic_rotate %51 by %c17_i32_30 dim 1 : vector<16x256xf32>, i32 -> vector<16x256xf32>
    %c0_31 = arith.constant 0 : index
    %c0_32 = arith.constant 0 : index
    %54 = vector.load %arg3[%c0_31, %c0_32] : memref<9x256xf32, #tpu.memory_space<vmem>>, vector<1x256xf32>
    %55 = vector.broadcast %54 : vector<1x256xf32> to vector<16x256xf32>
    %56 = arith.mulf %53, %55 : vector<16x256xf32>
    %c16_i32_33 = arith.constant 16 : i32
    %57 = tpu.dynamic_rotate %51 by %c16_i32_33 dim 1 : vector<16x256xf32>, i32 -> vector<16x256xf32>
    %c1_34 = arith.constant 1 : index
    %c0_35 = arith.constant 0 : index
    %58 = vector.load %arg3[%c1_34, %c0_35] : memref<9x256xf32, #tpu.memory_space<vmem>>, vector<1x256xf32>
    %59 = vector.broadcast %58 : vector<1x256xf32> to vector<16x256xf32>
    %60 = arith.mulf %57, %59 : vector<16x256xf32>
    %c15_i32_36 = arith.constant 15 : i32
    %61 = tpu.dynamic_rotate %51 by %c15_i32_36 dim 1 : vector<16x256xf32>, i32 -> vector<16x256xf32>
    %c2_37 = arith.constant 2 : index
    %c0_38 = arith.constant 0 : index
    %62 = vector.load %arg3[%c2_37, %c0_38] : memref<9x256xf32, #tpu.memory_space<vmem>>, vector<1x256xf32>
    %63 = vector.broadcast %62 : vector<1x256xf32> to vector<16x256xf32>
    %64 = arith.mulf %61, %63 : vector<16x256xf32>
    %65 = tpu.concatenate %56, %60, %64 in 0 : vector<16x256xf32>, vector<16x256xf32>, vector<16x256xf32> -> vector<48x256xf32>
    %66 = arith.truncf %65 : vector<48x256xf32> to vector<48x256xbf16>
    %c0_39 = arith.constant 0 : index
    %c0_40 = arith.constant 0 : index
    %c0_41 = arith.constant 0 : index
    %67 = vector.load %arg7[%c0_39, %c0_40, %c0_41] : memref<3x16x48xbf16, #tpu.memory_space<vmem>>, vector<1x16x48xbf16>
    %68 = vector.shape_cast %67 : vector<1x16x48xbf16> to vector<16x48xbf16>
    %cst_42 = arith.constant dense<0.000000e+00> : vector<16x256xf32>
    %69 = tpu.matmul %68, %66, %cst_42 {dimension_numbers = #tpu.dot_dimension_numbers<[1], [0], [0], [1], [0, 0, 1, 1], [], []>} : vector<16x48xbf16>, vector<48x256xbf16>, vector<16x256xf32> -> vector<16x256xf32>
    %70 = arith.addf %52, %69 : vector<16x256xf32>
    %c1_i32_43 = arith.constant 1 : i32
    %71 = tpu.dynamic_rotate %51 by %c1_i32_43 dim 1 : vector<16x256xf32>, i32 -> vector<16x256xf32>
    %c3_44 = arith.constant 3 : index
    %c0_45 = arith.constant 0 : index
    %72 = vector.load %arg3[%c3_44, %c0_45] : memref<9x256xf32, #tpu.memory_space<vmem>>, vector<1x256xf32>
    %73 = vector.broadcast %72 : vector<1x256xf32> to vector<16x256xf32>
    %74 = arith.mulf %71, %73 : vector<16x256xf32>
    %c255_i32_46 = arith.constant 255 : i32
    %75 = tpu.dynamic_rotate %51 by %c255_i32_46 dim 1 : vector<16x256xf32>, i32 -> vector<16x256xf32>
    %c5_47 = arith.constant 5 : index
    %c0_48 = arith.constant 0 : index
    %76 = vector.load %arg3[%c5_47, %c0_48] : memref<9x256xf32, #tpu.memory_space<vmem>>, vector<1x256xf32>
    %77 = vector.broadcast %76 : vector<1x256xf32> to vector<16x256xf32>
    %78 = arith.mulf %75, %77 : vector<16x256xf32>
    %79 = tpu.concatenate %74, %51, %78 in 0 : vector<16x256xf32>, vector<16x256xf32>, vector<16x256xf32> -> vector<48x256xf32>
    %80 = arith.truncf %79 : vector<48x256xf32> to vector<48x256xbf16>
    %c1_49 = arith.constant 1 : index
    %c0_50 = arith.constant 0 : index
    %c0_51 = arith.constant 0 : index
    %81 = vector.load %arg7[%c1_49, %c0_50, %c0_51] : memref<3x16x48xbf16, #tpu.memory_space<vmem>>, vector<1x16x48xbf16>
    %82 = vector.shape_cast %81 : vector<1x16x48xbf16> to vector<16x48xbf16>
    %cst_52 = arith.constant dense<0.000000e+00> : vector<16x256xf32>
    %83 = tpu.matmul %82, %80, %cst_52 {dimension_numbers = #tpu.dot_dimension_numbers<[1], [0], [0], [1], [0, 0, 1, 1], [], []>} : vector<16x48xbf16>, vector<48x256xbf16>, vector<16x256xf32> -> vector<16x256xf32>
    %84 = arith.addf %70, %83 : vector<16x256xf32>
    %c241_i32_53 = arith.constant 241 : i32
    %85 = tpu.dynamic_rotate %51 by %c241_i32_53 dim 1 : vector<16x256xf32>, i32 -> vector<16x256xf32>
    %c6_54 = arith.constant 6 : index
    %c0_55 = arith.constant 0 : index
    %86 = vector.load %arg3[%c6_54, %c0_55] : memref<9x256xf32, #tpu.memory_space<vmem>>, vector<1x256xf32>
    %87 = vector.broadcast %86 : vector<1x256xf32> to vector<16x256xf32>
    %88 = arith.mulf %85, %87 : vector<16x256xf32>
    %c240_i32_56 = arith.constant 240 : i32
    %89 = tpu.dynamic_rotate %51 by %c240_i32_56 dim 1 : vector<16x256xf32>, i32 -> vector<16x256xf32>
    %c7_57 = arith.constant 7 : index
    %c0_58 = arith.constant 0 : index
    %90 = vector.load %arg3[%c7_57, %c0_58] : memref<9x256xf32, #tpu.memory_space<vmem>>, vector<1x256xf32>
    %91 = vector.broadcast %90 : vector<1x256xf32> to vector<16x256xf32>
    %92 = arith.mulf %89, %91 : vector<16x256xf32>
    %c239_i32_59 = arith.constant 239 : i32
    %93 = tpu.dynamic_rotate %51 by %c239_i32_59 dim 1 : vector<16x256xf32>, i32 -> vector<16x256xf32>
    %c8_60 = arith.constant 8 : index
    %c0_61 = arith.constant 0 : index
    %94 = vector.load %arg3[%c8_60, %c0_61] : memref<9x256xf32, #tpu.memory_space<vmem>>, vector<1x256xf32>
    %95 = vector.broadcast %94 : vector<1x256xf32> to vector<16x256xf32>
    %96 = arith.mulf %93, %95 : vector<16x256xf32>
    %97 = tpu.concatenate %88, %92, %96 in 0 : vector<16x256xf32>, vector<16x256xf32>, vector<16x256xf32> -> vector<48x256xf32>
    %98 = arith.truncf %97 : vector<48x256xf32> to vector<48x256xbf16>
    %c2_62 = arith.constant 2 : index
    %c0_63 = arith.constant 0 : index
    %c0_64 = arith.constant 0 : index
    %99 = vector.load %arg7[%c2_62, %c0_63, %c0_64] : memref<3x16x48xbf16, #tpu.memory_space<vmem>>, vector<1x16x48xbf16>
    %100 = vector.shape_cast %99 : vector<1x16x48xbf16> to vector<16x48xbf16>
    %cst_65 = arith.constant dense<0.000000e+00> : vector<16x256xf32>
    %101 = tpu.matmul %100, %98, %cst_65 {dimension_numbers = #tpu.dot_dimension_numbers<[1], [0], [0], [1], [0, 0, 1, 1], [], []>} : vector<16x48xbf16>, vector<48x256xbf16>, vector<16x256xf32> -> vector<16x256xf32>
    %102 = arith.addf %84, %101 : vector<16x256xf32>
    %c0_66 = arith.constant 0 : index
    %c0_67 = arith.constant 0 : index
    %103 = vector.load %arg8[%c0_66, %c0_67] : memref<16x1xf32, #tpu.memory_space<vmem>>, vector<16x1xf32>
    %104 = vector.broadcast %103 : vector<16x1xf32> to vector<16x256xf32>
    %105 = arith.addf %102, %104 : vector<16x256xf32>
    %cst_68 = arith.constant 0.000000e+00 : f32
    %106 = vector.broadcast %cst_68 : f32 to vector<16x256xf32>
    %107 = arith.maximumf %105, %106 : vector<16x256xf32>
    %108 = tpu.concatenate %1, %107 in 0 : vector<16x256xf32>, vector<16x256xf32> -> vector<32x256xf32>
    %c0_69 = arith.constant 0 : index
    %109 = memref.load %arg15[%c0_69] : memref<2xf32, #tpu.memory_space<smem>>
    %cst_70 = arith.constant 0.000000e+00 : f32
    %110 = vector.broadcast %cst_70 : f32 to vector<8x256xf32>
    %c34_i32 = arith.constant 34 : i32
    %111 = tpu.dynamic_rotate %108 by %c34_i32 dim 1 : vector<32x256xf32>, i32 -> vector<32x256xf32>
    %c0_71 = arith.constant 0 : index
    %c0_72 = arith.constant 0 : index
    %112 = vector.load %arg4[%c0_71, %c0_72] : memref<25x256xf32, #tpu.memory_space<vmem>>, vector<1x256xf32>
    %113 = vector.broadcast %112 : vector<1x256xf32> to vector<32x256xf32>
    %114 = arith.mulf %111, %113 : vector<32x256xf32>
    %c33_i32 = arith.constant 33 : i32
    %115 = tpu.dynamic_rotate %108 by %c33_i32 dim 1 : vector<32x256xf32>, i32 -> vector<32x256xf32>
    %c1_73 = arith.constant 1 : index
    %c0_74 = arith.constant 0 : index
    %116 = vector.load %arg4[%c1_73, %c0_74] : memref<25x256xf32, #tpu.memory_space<vmem>>, vector<1x256xf32>
    %117 = vector.broadcast %116 : vector<1x256xf32> to vector<32x256xf32>
    %118 = arith.mulf %115, %117 : vector<32x256xf32>
    %c32_i32 = arith.constant 32 : i32
    %119 = tpu.dynamic_rotate %108 by %c32_i32 dim 1 : vector<32x256xf32>, i32 -> vector<32x256xf32>
    %c2_75 = arith.constant 2 : index
    %c0_76 = arith.constant 0 : index
    %120 = vector.load %arg4[%c2_75, %c0_76] : memref<25x256xf32, #tpu.memory_space<vmem>>, vector<1x256xf32>
    %121 = vector.broadcast %120 : vector<1x256xf32> to vector<32x256xf32>
    %122 = arith.mulf %119, %121 : vector<32x256xf32>
    %c31_i32 = arith.constant 31 : i32
    %123 = tpu.dynamic_rotate %108 by %c31_i32 dim 1 : vector<32x256xf32>, i32 -> vector<32x256xf32>
    %c3_77 = arith.constant 3 : index
    %c0_78 = arith.constant 0 : index
    %124 = vector.load %arg4[%c3_77, %c0_78] : memref<25x256xf32, #tpu.memory_space<vmem>>, vector<1x256xf32>
    %125 = vector.broadcast %124 : vector<1x256xf32> to vector<32x256xf32>
    %126 = arith.mulf %123, %125 : vector<32x256xf32>
    %c30_i32 = arith.constant 30 : i32
    %127 = tpu.dynamic_rotate %108 by %c30_i32 dim 1 : vector<32x256xf32>, i32 -> vector<32x256xf32>
    %c4 = arith.constant 4 : index
    %c0_79 = arith.constant 0 : index
    %128 = vector.load %arg4[%c4, %c0_79] : memref<25x256xf32, #tpu.memory_space<vmem>>, vector<1x256xf32>
    %129 = vector.broadcast %128 : vector<1x256xf32> to vector<32x256xf32>
    %130 = arith.mulf %127, %129 : vector<32x256xf32>
    %131 = tpu.concatenate %114, %118, %122, %126, %130 in 0 : vector<32x256xf32>, vector<32x256xf32>, vector<32x256xf32>, vector<32x256xf32>, vector<32x256xf32> -> vector<160x256xf32>
    %132 = arith.truncf %131 : vector<160x256xf32> to vector<160x256xbf16>
    %c0_80 = arith.constant 0 : index
    %c0_81 = arith.constant 0 : index
    %c0_82 = arith.constant 0 : index
    %133 = vector.load %arg9[%c0_80, %c0_81, %c0_82] : memref<5x8x160xbf16, #tpu.memory_space<vmem>>, vector<1x8x160xbf16>
    %134 = vector.shape_cast %133 : vector<1x8x160xbf16> to vector<8x160xbf16>
    %cst_83 = arith.constant dense<0.000000e+00> : vector<8x256xf32>
    %135 = tpu.matmul %134, %132, %cst_83 {dimension_numbers = #tpu.dot_dimension_numbers<[1], [0], [0], [1], [0, 0, 1, 1], [], []>} : vector<8x160xbf16>, vector<160x256xbf16>, vector<8x256xf32> -> vector<8x256xf32>
    %136 = arith.addf %110, %135 : vector<8x256xf32>
    %c18_i32 = arith.constant 18 : i32
    %137 = tpu.dynamic_rotate %108 by %c18_i32 dim 1 : vector<32x256xf32>, i32 -> vector<32x256xf32>
    %c5_84 = arith.constant 5 : index
    %c0_85 = arith.constant 0 : index
    %138 = vector.load %arg4[%c5_84, %c0_85] : memref<25x256xf32, #tpu.memory_space<vmem>>, vector<1x256xf32>
    %139 = vector.broadcast %138 : vector<1x256xf32> to vector<32x256xf32>
    %140 = arith.mulf %137, %139 : vector<32x256xf32>
    %c17_i32_86 = arith.constant 17 : i32
    %141 = tpu.dynamic_rotate %108 by %c17_i32_86 dim 1 : vector<32x256xf32>, i32 -> vector<32x256xf32>
    %c6_87 = arith.constant 6 : index
    %c0_88 = arith.constant 0 : index
    %142 = vector.load %arg4[%c6_87, %c0_88] : memref<25x256xf32, #tpu.memory_space<vmem>>, vector<1x256xf32>
    %143 = vector.broadcast %142 : vector<1x256xf32> to vector<32x256xf32>
    %144 = arith.mulf %141, %143 : vector<32x256xf32>
    %c16_i32_89 = arith.constant 16 : i32
    %145 = tpu.dynamic_rotate %108 by %c16_i32_89 dim 1 : vector<32x256xf32>, i32 -> vector<32x256xf32>
    %c7_90 = arith.constant 7 : index
    %c0_91 = arith.constant 0 : index
    %146 = vector.load %arg4[%c7_90, %c0_91] : memref<25x256xf32, #tpu.memory_space<vmem>>, vector<1x256xf32>
    %147 = vector.broadcast %146 : vector<1x256xf32> to vector<32x256xf32>
    %148 = arith.mulf %145, %147 : vector<32x256xf32>
    %c15_i32_92 = arith.constant 15 : i32
    %149 = tpu.dynamic_rotate %108 by %c15_i32_92 dim 1 : vector<32x256xf32>, i32 -> vector<32x256xf32>
    %c8_93 = arith.constant 8 : index
    %c0_94 = arith.constant 0 : index
    %150 = vector.load %arg4[%c8_93, %c0_94] : memref<25x256xf32, #tpu.memory_space<vmem>>, vector<1x256xf32>
    %151 = vector.broadcast %150 : vector<1x256xf32> to vector<32x256xf32>
    %152 = arith.mulf %149, %151 : vector<32x256xf32>
    %c14_i32 = arith.constant 14 : i32
    %153 = tpu.dynamic_rotate %108 by %c14_i32 dim 1 : vector<32x256xf32>, i32 -> vector<32x256xf32>
    %c9 = arith.constant 9 : index
    %c0_95 = arith.constant 0 : index
    %154 = vector.load %arg4[%c9, %c0_95] : memref<25x256xf32, #tpu.memory_space<vmem>>, vector<1x256xf32>
    %155 = vector.broadcast %154 : vector<1x256xf32> to vector<32x256xf32>
    %156 = arith.mulf %153, %155 : vector<32x256xf32>
    %157 = tpu.concatenate %140, %144, %148, %152, %156 in 0 : vector<32x256xf32>, vector<32x256xf32>, vector<32x256xf32>, vector<32x256xf32>, vector<32x256xf32> -> vector<160x256xf32>
    %158 = arith.truncf %157 : vector<160x256xf32> to vector<160x256xbf16>
    %c1_96 = arith.constant 1 : index
    %c0_97 = arith.constant 0 : index
    %c0_98 = arith.constant 0 : index
    %159 = vector.load %arg9[%c1_96, %c0_97, %c0_98] : memref<5x8x160xbf16, #tpu.memory_space<vmem>>, vector<1x8x160xbf16>
    %160 = vector.shape_cast %159 : vector<1x8x160xbf16> to vector<8x160xbf16>
    %cst_99 = arith.constant dense<0.000000e+00> : vector<8x256xf32>
    %161 = tpu.matmul %160, %158, %cst_99 {dimension_numbers = #tpu.dot_dimension_numbers<[1], [0], [0], [1], [0, 0, 1, 1], [], []>} : vector<8x160xbf16>, vector<160x256xbf16>, vector<8x256xf32> -> vector<8x256xf32>
    %162 = arith.addf %136, %161 : vector<8x256xf32>
    %c2_i32 = arith.constant 2 : i32
    %163 = tpu.dynamic_rotate %108 by %c2_i32 dim 1 : vector<32x256xf32>, i32 -> vector<32x256xf32>
    %c10 = arith.constant 10 : index
    %c0_100 = arith.constant 0 : index
    %164 = vector.load %arg4[%c10, %c0_100] : memref<25x256xf32, #tpu.memory_space<vmem>>, vector<1x256xf32>
    %165 = vector.broadcast %164 : vector<1x256xf32> to vector<32x256xf32>
    %166 = arith.mulf %163, %165 : vector<32x256xf32>
    %c1_i32_101 = arith.constant 1 : i32
    %167 = tpu.dynamic_rotate %108 by %c1_i32_101 dim 1 : vector<32x256xf32>, i32 -> vector<32x256xf32>
    %c11 = arith.constant 11 : index
    %c0_102 = arith.constant 0 : index
    %168 = vector.load %arg4[%c11, %c0_102] : memref<25x256xf32, #tpu.memory_space<vmem>>, vector<1x256xf32>
    %169 = vector.broadcast %168 : vector<1x256xf32> to vector<32x256xf32>
    %170 = arith.mulf %167, %169 : vector<32x256xf32>
    %c255_i32_103 = arith.constant 255 : i32
    %171 = tpu.dynamic_rotate %108 by %c255_i32_103 dim 1 : vector<32x256xf32>, i32 -> vector<32x256xf32>
    %c13 = arith.constant 13 : index
    %c0_104 = arith.constant 0 : index
    %172 = vector.load %arg4[%c13, %c0_104] : memref<25x256xf32, #tpu.memory_space<vmem>>, vector<1x256xf32>
    %173 = vector.broadcast %172 : vector<1x256xf32> to vector<32x256xf32>
    %174 = arith.mulf %171, %173 : vector<32x256xf32>
    %c254_i32 = arith.constant 254 : i32
    %175 = tpu.dynamic_rotate %108 by %c254_i32 dim 1 : vector<32x256xf32>, i32 -> vector<32x256xf32>
    %c14 = arith.constant 14 : index
    %c0_105 = arith.constant 0 : index
    %176 = vector.load %arg4[%c14, %c0_105] : memref<25x256xf32, #tpu.memory_space<vmem>>, vector<1x256xf32>
    %177 = vector.broadcast %176 : vector<1x256xf32> to vector<32x256xf32>
    %178 = arith.mulf %175, %177 : vector<32x256xf32>
    %179 = tpu.concatenate %166, %170, %108, %174, %178 in 0 : vector<32x256xf32>, vector<32x256xf32>, vector<32x256xf32>, vector<32x256xf32>, vector<32x256xf32> -> vector<160x256xf32>
    %180 = arith.truncf %179 : vector<160x256xf32> to vector<160x256xbf16>
    %c2_106 = arith.constant 2 : index
    %c0_107 = arith.constant 0 : index
    %c0_108 = arith.constant 0 : index
    %181 = vector.load %arg9[%c2_106, %c0_107, %c0_108] : memref<5x8x160xbf16, #tpu.memory_space<vmem>>, vector<1x8x160xbf16>
    %182 = vector.shape_cast %181 : vector<1x8x160xbf16> to vector<8x160xbf16>
    %cst_109 = arith.constant dense<0.000000e+00> : vector<8x256xf32>
    %183 = tpu.matmul %182, %180, %cst_109 {dimension_numbers = #tpu.dot_dimension_numbers<[1], [0], [0], [1], [0, 0, 1, 1], [], []>} : vector<8x160xbf16>, vector<160x256xbf16>, vector<8x256xf32> -> vector<8x256xf32>
    %184 = arith.addf %162, %183 : vector<8x256xf32>
    %c242_i32 = arith.constant 242 : i32
    %185 = tpu.dynamic_rotate %108 by %c242_i32 dim 1 : vector<32x256xf32>, i32 -> vector<32x256xf32>
    %c15 = arith.constant 15 : index
    %c0_110 = arith.constant 0 : index
    %186 = vector.load %arg4[%c15, %c0_110] : memref<25x256xf32, #tpu.memory_space<vmem>>, vector<1x256xf32>
    %187 = vector.broadcast %186 : vector<1x256xf32> to vector<32x256xf32>
    %188 = arith.mulf %185, %187 : vector<32x256xf32>
    %c241_i32_111 = arith.constant 241 : i32
    %189 = tpu.dynamic_rotate %108 by %c241_i32_111 dim 1 : vector<32x256xf32>, i32 -> vector<32x256xf32>
    %c16 = arith.constant 16 : index
    %c0_112 = arith.constant 0 : index
    %190 = vector.load %arg4[%c16, %c0_112] : memref<25x256xf32, #tpu.memory_space<vmem>>, vector<1x256xf32>
    %191 = vector.broadcast %190 : vector<1x256xf32> to vector<32x256xf32>
    %192 = arith.mulf %189, %191 : vector<32x256xf32>
    %c240_i32_113 = arith.constant 240 : i32
    %193 = tpu.dynamic_rotate %108 by %c240_i32_113 dim 1 : vector<32x256xf32>, i32 -> vector<32x256xf32>
    %c17 = arith.constant 17 : index
    %c0_114 = arith.constant 0 : index
    %194 = vector.load %arg4[%c17, %c0_114] : memref<25x256xf32, #tpu.memory_space<vmem>>, vector<1x256xf32>
    %195 = vector.broadcast %194 : vector<1x256xf32> to vector<32x256xf32>
    %196 = arith.mulf %193, %195 : vector<32x256xf32>
    %c239_i32_115 = arith.constant 239 : i32
    %197 = tpu.dynamic_rotate %108 by %c239_i32_115 dim 1 : vector<32x256xf32>, i32 -> vector<32x256xf32>
    %c18 = arith.constant 18 : index
    %c0_116 = arith.constant 0 : index
    %198 = vector.load %arg4[%c18, %c0_116] : memref<25x256xf32, #tpu.memory_space<vmem>>, vector<1x256xf32>
    %199 = vector.broadcast %198 : vector<1x256xf32> to vector<32x256xf32>
    %200 = arith.mulf %197, %199 : vector<32x256xf32>
    %c238_i32 = arith.constant 238 : i32
    %201 = tpu.dynamic_rotate %108 by %c238_i32 dim 1 : vector<32x256xf32>, i32 -> vector<32x256xf32>
    %c19 = arith.constant 19 : index
    %c0_117 = arith.constant 0 : index
    %202 = vector.load %arg4[%c19, %c0_117] : memref<25x256xf32, #tpu.memory_space<vmem>>, vector<1x256xf32>
    %203 = vector.broadcast %202 : vector<1x256xf32> to vector<32x256xf32>
    %204 = arith.mulf %201, %203 : vector<32x256xf32>
    %205 = tpu.concatenate %188, %192, %196, %200, %204 in 0 : vector<32x256xf32>, vector<32x256xf32>, vector<32x256xf32>, vector<32x256xf32>, vector<32x256xf32> -> vector<160x256xf32>
    %206 = arith.truncf %205 : vector<160x256xf32> to vector<160x256xbf16>
    %c3_118 = arith.constant 3 : index
    %c0_119 = arith.constant 0 : index
    %c0_120 = arith.constant 0 : index
    %207 = vector.load %arg9[%c3_118, %c0_119, %c0_120] : memref<5x8x160xbf16, #tpu.memory_space<vmem>>, vector<1x8x160xbf16>
    %208 = vector.shape_cast %207 : vector<1x8x160xbf16> to vector<8x160xbf16>
    %cst_121 = arith.constant dense<0.000000e+00> : vector<8x256xf32>
    %209 = tpu.matmul %208, %206, %cst_121 {dimension_numbers = #tpu.dot_dimension_numbers<[1], [0], [0], [1], [0, 0, 1, 1], [], []>} : vector<8x160xbf16>, vector<160x256xbf16>, vector<8x256xf32> -> vector<8x256xf32>
    %210 = arith.addf %184, %209 : vector<8x256xf32>
    %c226_i32 = arith.constant 226 : i32
    %211 = tpu.dynamic_rotate %108 by %c226_i32 dim 1 : vector<32x256xf32>, i32 -> vector<32x256xf32>
    %c20 = arith.constant 20 : index
    %c0_122 = arith.constant 0 : index
    %212 = vector.load %arg4[%c20, %c0_122] : memref<25x256xf32, #tpu.memory_space<vmem>>, vector<1x256xf32>
    %213 = vector.broadcast %212 : vector<1x256xf32> to vector<32x256xf32>
    %214 = arith.mulf %211, %213 : vector<32x256xf32>
    %c225_i32 = arith.constant 225 : i32
    %215 = tpu.dynamic_rotate %108 by %c225_i32 dim 1 : vector<32x256xf32>, i32 -> vector<32x256xf32>
    %c21 = arith.constant 21 : index
    %c0_123 = arith.constant 0 : index
    %216 = vector.load %arg4[%c21, %c0_123] : memref<25x256xf32, #tpu.memory_space<vmem>>, vector<1x256xf32>
    %217 = vector.broadcast %216 : vector<1x256xf32> to vector<32x256xf32>
    %218 = arith.mulf %215, %217 : vector<32x256xf32>
    %c224_i32 = arith.constant 224 : i32
    %219 = tpu.dynamic_rotate %108 by %c224_i32 dim 1 : vector<32x256xf32>, i32 -> vector<32x256xf32>
    %c22 = arith.constant 22 : index
    %c0_124 = arith.constant 0 : index
    %220 = vector.load %arg4[%c22, %c0_124] : memref<25x256xf32, #tpu.memory_space<vmem>>, vector<1x256xf32>
    %221 = vector.broadcast %220 : vector<1x256xf32> to vector<32x256xf32>
    %222 = arith.mulf %219, %221 : vector<32x256xf32>
    %c223_i32 = arith.constant 223 : i32
    %223 = tpu.dynamic_rotate %108 by %c223_i32 dim 1 : vector<32x256xf32>, i32 -> vector<32x256xf32>
    %c23 = arith.constant 23 : index
    %c0_125 = arith.constant 0 : index
    %224 = vector.load %arg4[%c23, %c0_125] : memref<25x256xf32, #tpu.memory_space<vmem>>, vector<1x256xf32>
    %225 = vector.broadcast %224 : vector<1x256xf32> to vector<32x256xf32>
    %226 = arith.mulf %223, %225 : vector<32x256xf32>
    %c222_i32 = arith.constant 222 : i32
    %227 = tpu.dynamic_rotate %108 by %c222_i32 dim 1 : vector<32x256xf32>, i32 -> vector<32x256xf32>
    %c24 = arith.constant 24 : index
    %c0_126 = arith.constant 0 : index
    %228 = vector.load %arg4[%c24, %c0_126] : memref<25x256xf32, #tpu.memory_space<vmem>>, vector<1x256xf32>
    %229 = vector.broadcast %228 : vector<1x256xf32> to vector<32x256xf32>
    %230 = arith.mulf %227, %229 : vector<32x256xf32>
    %231 = tpu.concatenate %214, %218, %222, %226, %230 in 0 : vector<32x256xf32>, vector<32x256xf32>, vector<32x256xf32>, vector<32x256xf32>, vector<32x256xf32> -> vector<160x256xf32>
    %232 = arith.truncf %231 : vector<160x256xf32> to vector<160x256xbf16>
    %c4_127 = arith.constant 4 : index
    %c0_128 = arith.constant 0 : index
    %c0_129 = arith.constant 0 : index
    %233 = vector.load %arg9[%c4_127, %c0_128, %c0_129] : memref<5x8x160xbf16, #tpu.memory_space<vmem>>, vector<1x8x160xbf16>
    %234 = vector.shape_cast %233 : vector<1x8x160xbf16> to vector<8x160xbf16>
    %cst_130 = arith.constant dense<0.000000e+00> : vector<8x256xf32>
    %235 = tpu.matmul %234, %232, %cst_130 {dimension_numbers = #tpu.dot_dimension_numbers<[1], [0], [0], [1], [0, 0, 1, 1], [], []>} : vector<8x160xbf16>, vector<160x256xbf16>, vector<8x256xf32> -> vector<8x256xf32>
    %236 = arith.addf %210, %235 : vector<8x256xf32>
    %c0_131 = arith.constant 0 : index
    %c0_132 = arith.constant 0 : index
    %237 = vector.load %arg10[%c0_131, %c0_132] : memref<8x1xf32, #tpu.memory_space<vmem>>, vector<8x1xf32>
    %238 = vector.broadcast %237 : vector<8x1xf32> to vector<8x256xf32>
    %239 = arith.addf %236, %238 : vector<8x256xf32>
    %cst_133 = arith.constant 0.000000e+00 : f32
    %240 = vector.broadcast %cst_133 : f32 to vector<8x256xf32>
    %241 = arith.cmpf ogt, %239, %240 : vector<8x256xf32>
    %242 = vector.broadcast %109 : f32 to vector<8x256xf32>
    %243 = arith.mulf %242, %239 : vector<8x256xf32>
    %244 = arith.select %241, %239, %243 : vector<8x256xi1>, vector<8x256xf32>
    %c1_134 = arith.constant 1 : index
    %245 = memref.load %arg15[%c1_134] : memref<2xf32, #tpu.memory_space<smem>>
    %cst_135 = arith.constant 0.000000e+00 : f32
    %246 = vector.broadcast %cst_135 : f32 to vector<4x256xf32>
    %c34_i32_136 = arith.constant 34 : i32
    %247 = tpu.dynamic_rotate %244 by %c34_i32_136 dim 1 : vector<8x256xf32>, i32 -> vector<8x256xf32>
    %c0_137 = arith.constant 0 : index
    %c0_138 = arith.constant 0 : index
    %248 = vector.load %arg4[%c0_137, %c0_138] : memref<25x256xf32, #tpu.memory_space<vmem>>, vector<1x256xf32>
    %249 = vector.broadcast %248 : vector<1x256xf32> to vector<8x256xf32>
    %250 = arith.mulf %247, %249 : vector<8x256xf32>
    %c33_i32_139 = arith.constant 33 : i32
    %251 = tpu.dynamic_rotate %244 by %c33_i32_139 dim 1 : vector<8x256xf32>, i32 -> vector<8x256xf32>
    %c1_140 = arith.constant 1 : index
    %c0_141 = arith.constant 0 : index
    %252 = vector.load %arg4[%c1_140, %c0_141] : memref<25x256xf32, #tpu.memory_space<vmem>>, vector<1x256xf32>
    %253 = vector.broadcast %252 : vector<1x256xf32> to vector<8x256xf32>
    %254 = arith.mulf %251, %253 : vector<8x256xf32>
    %c32_i32_142 = arith.constant 32 : i32
    %255 = tpu.dynamic_rotate %244 by %c32_i32_142 dim 1 : vector<8x256xf32>, i32 -> vector<8x256xf32>
    %c2_143 = arith.constant 2 : index
    %c0_144 = arith.constant 0 : index
    %256 = vector.load %arg4[%c2_143, %c0_144] : memref<25x256xf32, #tpu.memory_space<vmem>>, vector<1x256xf32>
    %257 = vector.broadcast %256 : vector<1x256xf32> to vector<8x256xf32>
    %258 = arith.mulf %255, %257 : vector<8x256xf32>
    %c31_i32_145 = arith.constant 31 : i32
    %259 = tpu.dynamic_rotate %244 by %c31_i32_145 dim 1 : vector<8x256xf32>, i32 -> vector<8x256xf32>
    %c3_146 = arith.constant 3 : index
    %c0_147 = arith.constant 0 : index
    %260 = vector.load %arg4[%c3_146, %c0_147] : memref<25x256xf32, #tpu.memory_space<vmem>>, vector<1x256xf32>
    %261 = vector.broadcast %260 : vector<1x256xf32> to vector<8x256xf32>
    %262 = arith.mulf %259, %261 : vector<8x256xf32>
    %c30_i32_148 = arith.constant 30 : i32
    %263 = tpu.dynamic_rotate %244 by %c30_i32_148 dim 1 : vector<8x256xf32>, i32 -> vector<8x256xf32>
    %c4_149 = arith.constant 4 : index
    %c0_150 = arith.constant 0 : index
    %264 = vector.load %arg4[%c4_149, %c0_150] : memref<25x256xf32, #tpu.memory_space<vmem>>, vector<1x256xf32>
    %265 = vector.broadcast %264 : vector<1x256xf32> to vector<8x256xf32>
    %266 = arith.mulf %263, %265 : vector<8x256xf32>
    %267 = tpu.concatenate %250, %254, %258, %262, %266 in 0 : vector<8x256xf32>, vector<8x256xf32>, vector<8x256xf32>, vector<8x256xf32>, vector<8x256xf32> -> vector<40x256xf32>
    %268 = arith.truncf %267 : vector<40x256xf32> to vector<40x256xbf16>
    %c0_151 = arith.constant 0 : index
    %c0_152 = arith.constant 0 : index
    %c0_153 = arith.constant 0 : index
    %269 = vector.load %arg11[%c0_151, %c0_152, %c0_153] : memref<5x4x40xbf16, #tpu.memory_space<vmem>>, vector<1x4x40xbf16>
    %270 = vector.shape_cast %269 : vector<1x4x40xbf16> to vector<4x40xbf16>
    %cst_154 = arith.constant dense<0.000000e+00> : vector<4x256xf32>
    %271 = tpu.matmul %270, %268, %cst_154 {dimension_numbers = #tpu.dot_dimension_numbers<[1], [0], [0], [1], [0, 0, 1, 1], [], []>} : vector<4x40xbf16>, vector<40x256xbf16>, vector<4x256xf32> -> vector<4x256xf32>
    %272 = arith.addf %246, %271 : vector<4x256xf32>
    %c18_i32_155 = arith.constant 18 : i32
    %273 = tpu.dynamic_rotate %244 by %c18_i32_155 dim 1 : vector<8x256xf32>, i32 -> vector<8x256xf32>
    %c5_156 = arith.constant 5 : index
    %c0_157 = arith.constant 0 : index
    %274 = vector.load %arg4[%c5_156, %c0_157] : memref<25x256xf32, #tpu.memory_space<vmem>>, vector<1x256xf32>
    %275 = vector.broadcast %274 : vector<1x256xf32> to vector<8x256xf32>
    %276 = arith.mulf %273, %275 : vector<8x256xf32>
    %c17_i32_158 = arith.constant 17 : i32
    %277 = tpu.dynamic_rotate %244 by %c17_i32_158 dim 1 : vector<8x256xf32>, i32 -> vector<8x256xf32>
    %c6_159 = arith.constant 6 : index
    %c0_160 = arith.constant 0 : index
    %278 = vector.load %arg4[%c6_159, %c0_160] : memref<25x256xf32, #tpu.memory_space<vmem>>, vector<1x256xf32>
    %279 = vector.broadcast %278 : vector<1x256xf32> to vector<8x256xf32>
    %280 = arith.mulf %277, %279 : vector<8x256xf32>
    %c16_i32_161 = arith.constant 16 : i32
    %281 = tpu.dynamic_rotate %244 by %c16_i32_161 dim 1 : vector<8x256xf32>, i32 -> vector<8x256xf32>
    %c7_162 = arith.constant 7 : index
    %c0_163 = arith.constant 0 : index
    %282 = vector.load %arg4[%c7_162, %c0_163] : memref<25x256xf32, #tpu.memory_space<vmem>>, vector<1x256xf32>
    %283 = vector.broadcast %282 : vector<1x256xf32> to vector<8x256xf32>
    %284 = arith.mulf %281, %283 : vector<8x256xf32>
    %c15_i32_164 = arith.constant 15 : i32
    %285 = tpu.dynamic_rotate %244 by %c15_i32_164 dim 1 : vector<8x256xf32>, i32 -> vector<8x256xf32>
    %c8_165 = arith.constant 8 : index
    %c0_166 = arith.constant 0 : index
    %286 = vector.load %arg4[%c8_165, %c0_166] : memref<25x256xf32, #tpu.memory_space<vmem>>, vector<1x256xf32>
    %287 = vector.broadcast %286 : vector<1x256xf32> to vector<8x256xf32>
    %288 = arith.mulf %285, %287 : vector<8x256xf32>
    %c14_i32_167 = arith.constant 14 : i32
    %289 = tpu.dynamic_rotate %244 by %c14_i32_167 dim 1 : vector<8x256xf32>, i32 -> vector<8x256xf32>
    %c9_168 = arith.constant 9 : index
    %c0_169 = arith.constant 0 : index
    %290 = vector.load %arg4[%c9_168, %c0_169] : memref<25x256xf32, #tpu.memory_space<vmem>>, vector<1x256xf32>
    %291 = vector.broadcast %290 : vector<1x256xf32> to vector<8x256xf32>
    %292 = arith.mulf %289, %291 : vector<8x256xf32>
    %293 = tpu.concatenate %276, %280, %284, %288, %292 in 0 : vector<8x256xf32>, vector<8x256xf32>, vector<8x256xf32>, vector<8x256xf32>, vector<8x256xf32> -> vector<40x256xf32>
    %294 = arith.truncf %293 : vector<40x256xf32> to vector<40x256xbf16>
    %c1_170 = arith.constant 1 : index
    %c0_171 = arith.constant 0 : index
    %c0_172 = arith.constant 0 : index
    %295 = vector.load %arg11[%c1_170, %c0_171, %c0_172] : memref<5x4x40xbf16, #tpu.memory_space<vmem>>, vector<1x4x40xbf16>
    %296 = vector.shape_cast %295 : vector<1x4x40xbf16> to vector<4x40xbf16>
    %cst_173 = arith.constant dense<0.000000e+00> : vector<4x256xf32>
    %297 = tpu.matmul %296, %294, %cst_173 {dimension_numbers = #tpu.dot_dimension_numbers<[1], [0], [0], [1], [0, 0, 1, 1], [], []>} : vector<4x40xbf16>, vector<40x256xbf16>, vector<4x256xf32> -> vector<4x256xf32>
    %298 = arith.addf %272, %297 : vector<4x256xf32>
    %c2_i32_174 = arith.constant 2 : i32
    %299 = tpu.dynamic_rotate %244 by %c2_i32_174 dim 1 : vector<8x256xf32>, i32 -> vector<8x256xf32>
    %c10_175 = arith.constant 10 : index
    %c0_176 = arith.constant 0 : index
    %300 = vector.load %arg4[%c10_175, %c0_176] : memref<25x256xf32, #tpu.memory_space<vmem>>, vector<1x256xf32>
    %301 = vector.broadcast %300 : vector<1x256xf32> to vector<8x256xf32>
    %302 = arith.mulf %299, %301 : vector<8x256xf32>
    %c1_i32_177 = arith.constant 1 : i32
    %303 = tpu.dynamic_rotate %244 by %c1_i32_177 dim 1 : vector<8x256xf32>, i32 -> vector<8x256xf32>
    %c11_178 = arith.constant 11 : index
    %c0_179 = arith.constant 0 : index
    %304 = vector.load %arg4[%c11_178, %c0_179] : memref<25x256xf32, #tpu.memory_space<vmem>>, vector<1x256xf32>
    %305 = vector.broadcast %304 : vector<1x256xf32> to vector<8x256xf32>
    %306 = arith.mulf %303, %305 : vector<8x256xf32>
    %c255_i32_180 = arith.constant 255 : i32
    %307 = tpu.dynamic_rotate %244 by %c255_i32_180 dim 1 : vector<8x256xf32>, i32 -> vector<8x256xf32>
    %c13_181 = arith.constant 13 : index
    %c0_182 = arith.constant 0 : index
    %308 = vector.load %arg4[%c13_181, %c0_182] : memref<25x256xf32, #tpu.memory_space<vmem>>, vector<1x256xf32>
    %309 = vector.broadcast %308 : vector<1x256xf32> to vector<8x256xf32>
    %310 = arith.mulf %307, %309 : vector<8x256xf32>
    %c254_i32_183 = arith.constant 254 : i32
    %311 = tpu.dynamic_rotate %244 by %c254_i32_183 dim 1 : vector<8x256xf32>, i32 -> vector<8x256xf32>
    %c14_184 = arith.constant 14 : index
    %c0_185 = arith.constant 0 : index
    %312 = vector.load %arg4[%c14_184, %c0_185] : memref<25x256xf32, #tpu.memory_space<vmem>>, vector<1x256xf32>
    %313 = vector.broadcast %312 : vector<1x256xf32> to vector<8x256xf32>
    %314 = arith.mulf %311, %313 : vector<8x256xf32>
    %315 = tpu.concatenate %302, %306, %244, %310, %314 in 0 : vector<8x256xf32>, vector<8x256xf32>, vector<8x256xf32>, vector<8x256xf32>, vector<8x256xf32> -> vector<40x256xf32>
    %316 = arith.truncf %315 : vector<40x256xf32> to vector<40x256xbf16>
    %c2_186 = arith.constant 2 : index
    %c0_187 = arith.constant 0 : index
    %c0_188 = arith.constant 0 : index
    %317 = vector.load %arg11[%c2_186, %c0_187, %c0_188] : memref<5x4x40xbf16, #tpu.memory_space<vmem>>, vector<1x4x40xbf16>
    %318 = vector.shape_cast %317 : vector<1x4x40xbf16> to vector<4x40xbf16>
    %cst_189 = arith.constant dense<0.000000e+00> : vector<4x256xf32>
    %319 = tpu.matmul %318, %316, %cst_189 {dimension_numbers = #tpu.dot_dimension_numbers<[1], [0], [0], [1], [0, 0, 1, 1], [], []>} : vector<4x40xbf16>, vector<40x256xbf16>, vector<4x256xf32> -> vector<4x256xf32>
    %320 = arith.addf %298, %319 : vector<4x256xf32>
    %c242_i32_190 = arith.constant 242 : i32
    %321 = tpu.dynamic_rotate %244 by %c242_i32_190 dim 1 : vector<8x256xf32>, i32 -> vector<8x256xf32>
    %c15_191 = arith.constant 15 : index
    %c0_192 = arith.constant 0 : index
    %322 = vector.load %arg4[%c15_191, %c0_192] : memref<25x256xf32, #tpu.memory_space<vmem>>, vector<1x256xf32>
    %323 = vector.broadcast %322 : vector<1x256xf32> to vector<8x256xf32>
    %324 = arith.mulf %321, %323 : vector<8x256xf32>
    %c241_i32_193 = arith.constant 241 : i32
    %325 = tpu.dynamic_rotate %244 by %c241_i32_193 dim 1 : vector<8x256xf32>, i32 -> vector<8x256xf32>
    %c16_194 = arith.constant 16 : index
    %c0_195 = arith.constant 0 : index
    %326 = vector.load %arg4[%c16_194, %c0_195] : memref<25x256xf32, #tpu.memory_space<vmem>>, vector<1x256xf32>
    %327 = vector.broadcast %326 : vector<1x256xf32> to vector<8x256xf32>
    %328 = arith.mulf %325, %327 : vector<8x256xf32>
    %c240_i32_196 = arith.constant 240 : i32
    %329 = tpu.dynamic_rotate %244 by %c240_i32_196 dim 1 : vector<8x256xf32>, i32 -> vector<8x256xf32>
    %c17_197 = arith.constant 17 : index
    %c0_198 = arith.constant 0 : index
    %330 = vector.load %arg4[%c17_197, %c0_198] : memref<25x256xf32, #tpu.memory_space<vmem>>, vector<1x256xf32>
    %331 = vector.broadcast %330 : vector<1x256xf32> to vector<8x256xf32>
    %332 = arith.mulf %329, %331 : vector<8x256xf32>
    %c239_i32_199 = arith.constant 239 : i32
    %333 = tpu.dynamic_rotate %244 by %c239_i32_199 dim 1 : vector<8x256xf32>, i32 -> vector<8x256xf32>
    %c18_200 = arith.constant 18 : index
    %c0_201 = arith.constant 0 : index
    %334 = vector.load %arg4[%c18_200, %c0_201] : memref<25x256xf32, #tpu.memory_space<vmem>>, vector<1x256xf32>
    %335 = vector.broadcast %334 : vector<1x256xf32> to vector<8x256xf32>
    %336 = arith.mulf %333, %335 : vector<8x256xf32>
    %c238_i32_202 = arith.constant 238 : i32
    %337 = tpu.dynamic_rotate %244 by %c238_i32_202 dim 1 : vector<8x256xf32>, i32 -> vector<8x256xf32>
    %c19_203 = arith.constant 19 : index
    %c0_204 = arith.constant 0 : index
    %338 = vector.load %arg4[%c19_203, %c0_204] : memref<25x256xf32, #tpu.memory_space<vmem>>, vector<1x256xf32>
    %339 = vector.broadcast %338 : vector<1x256xf32> to vector<8x256xf32>
    %340 = arith.mulf %337, %339 : vector<8x256xf32>
    %341 = tpu.concatenate %324, %328, %332, %336, %340 in 0 : vector<8x256xf32>, vector<8x256xf32>, vector<8x256xf32>, vector<8x256xf32>, vector<8x256xf32> -> vector<40x256xf32>
    %342 = arith.truncf %341 : vector<40x256xf32> to vector<40x256xbf16>
    %c3_205 = arith.constant 3 : index
    %c0_206 = arith.constant 0 : index
    %c0_207 = arith.constant 0 : index
    %343 = vector.load %arg11[%c3_205, %c0_206, %c0_207] : memref<5x4x40xbf16, #tpu.memory_space<vmem>>, vector<1x4x40xbf16>
    %344 = vector.shape_cast %343 : vector<1x4x40xbf16> to vector<4x40xbf16>
    %cst_208 = arith.constant dense<0.000000e+00> : vector<4x256xf32>
    %345 = tpu.matmul %344, %342, %cst_208 {dimension_numbers = #tpu.dot_dimension_numbers<[1], [0], [0], [1], [0, 0, 1, 1], [], []>} : vector<4x40xbf16>, vector<40x256xbf16>, vector<4x256xf32> -> vector<4x256xf32>
    %346 = arith.addf %320, %345 : vector<4x256xf32>
    %c226_i32_209 = arith.constant 226 : i32
    %347 = tpu.dynamic_rotate %244 by %c226_i32_209 dim 1 : vector<8x256xf32>, i32 -> vector<8x256xf32>
    %c20_210 = arith.constant 20 : index
    %c0_211 = arith.constant 0 : index
    %348 = vector.load %arg4[%c20_210, %c0_211] : memref<25x256xf32, #tpu.memory_space<vmem>>, vector<1x256xf32>
    %349 = vector.broadcast %348 : vector<1x256xf32> to vector<8x256xf32>
    %350 = arith.mulf %347, %349 : vector<8x256xf32>
    %c225_i32_212 = arith.constant 225 : i32
    %351 = tpu.dynamic_rotate %244 by %c225_i32_212 dim 1 : vector<8x256xf32>, i32 -> vector<8x256xf32>
    %c21_213 = arith.constant 21 : index
    %c0_214 = arith.constant 0 : index
    %352 = vector.load %arg4[%c21_213, %c0_214] : memref<25x256xf32, #tpu.memory_space<vmem>>, vector<1x256xf32>
    %353 = vector.broadcast %352 : vector<1x256xf32> to vector<8x256xf32>
    %354 = arith.mulf %351, %353 : vector<8x256xf32>
    %c224_i32_215 = arith.constant 224 : i32
    %355 = tpu.dynamic_rotate %244 by %c224_i32_215 dim 1 : vector<8x256xf32>, i32 -> vector<8x256xf32>
    %c22_216 = arith.constant 22 : index
    %c0_217 = arith.constant 0 : index
    %356 = vector.load %arg4[%c22_216, %c0_217] : memref<25x256xf32, #tpu.memory_space<vmem>>, vector<1x256xf32>
    %357 = vector.broadcast %356 : vector<1x256xf32> to vector<8x256xf32>
    %358 = arith.mulf %355, %357 : vector<8x256xf32>
    %c223_i32_218 = arith.constant 223 : i32
    %359 = tpu.dynamic_rotate %244 by %c223_i32_218 dim 1 : vector<8x256xf32>, i32 -> vector<8x256xf32>
    %c23_219 = arith.constant 23 : index
    %c0_220 = arith.constant 0 : index
    %360 = vector.load %arg4[%c23_219, %c0_220] : memref<25x256xf32, #tpu.memory_space<vmem>>, vector<1x256xf32>
    %361 = vector.broadcast %360 : vector<1x256xf32> to vector<8x256xf32>
    %362 = arith.mulf %359, %361 : vector<8x256xf32>
    %c222_i32_221 = arith.constant 222 : i32
    %363 = tpu.dynamic_rotate %244 by %c222_i32_221 dim 1 : vector<8x256xf32>, i32 -> vector<8x256xf32>
    %c24_222 = arith.constant 24 : index
    %c0_223 = arith.constant 0 : index
    %364 = vector.load %arg4[%c24_222, %c0_223] : memref<25x256xf32, #tpu.memory_space<vmem>>, vector<1x256xf32>
    %365 = vector.broadcast %364 : vector<1x256xf32> to vector<8x256xf32>
    %366 = arith.mulf %363, %365 : vector<8x256xf32>
    %367 = tpu.concatenate %350, %354, %358, %362, %366 in 0 : vector<8x256xf32>, vector<8x256xf32>, vector<8x256xf32>, vector<8x256xf32>, vector<8x256xf32> -> vector<40x256xf32>
    %368 = arith.truncf %367 : vector<40x256xf32> to vector<40x256xbf16>
    %c4_224 = arith.constant 4 : index
    %c0_225 = arith.constant 0 : index
    %c0_226 = arith.constant 0 : index
    %369 = vector.load %arg11[%c4_224, %c0_225, %c0_226] : memref<5x4x40xbf16, #tpu.memory_space<vmem>>, vector<1x4x40xbf16>
    %370 = vector.shape_cast %369 : vector<1x4x40xbf16> to vector<4x40xbf16>
    %cst_227 = arith.constant dense<0.000000e+00> : vector<4x256xf32>
    %371 = tpu.matmul %370, %368, %cst_227 {dimension_numbers = #tpu.dot_dimension_numbers<[1], [0], [0], [1], [0, 0, 1, 1], [], []>} : vector<4x40xbf16>, vector<40x256xbf16>, vector<4x256xf32> -> vector<4x256xf32>
    %372 = arith.addf %346, %371 : vector<4x256xf32>
    %c0_228 = arith.constant 0 : index
    %c0_229 = arith.constant 0 : index
    %373 = vector.load %arg12[%c0_228, %c0_229] : memref<4x1xf32, #tpu.memory_space<vmem>>, vector<4x1xf32>
    %374 = vector.broadcast %373 : vector<4x1xf32> to vector<4x256xf32>
    %375 = arith.addf %372, %374 : vector<4x256xf32>
    %cst_230 = arith.constant 0.000000e+00 : f32
    %376 = vector.broadcast %cst_230 : f32 to vector<4x256xf32>
    %377 = arith.cmpf ogt, %375, %376 : vector<4x256xf32>
    %378 = vector.broadcast %245 : f32 to vector<4x256xf32>
    %379 = arith.mulf %378, %375 : vector<4x256xf32>
    %380 = arith.select %377, %375, %379 : vector<4x256xi1>, vector<4x256xf32>
    %cst_231 = arith.constant 0.000000e+00 : f32
    %381 = vector.broadcast %cst_231 : f32 to vector<1x256xf32>
    %c34_i32_232 = arith.constant 34 : i32
    %382 = tpu.dynamic_rotate %380 by %c34_i32_232 dim 1 : vector<4x256xf32>, i32 -> vector<4x256xf32>
    %c0_233 = arith.constant 0 : index
    %c0_234 = arith.constant 0 : index
    %383 = vector.load %arg4[%c0_233, %c0_234] : memref<25x256xf32, #tpu.memory_space<vmem>>, vector<1x256xf32>
    %384 = vector.broadcast %383 : vector<1x256xf32> to vector<4x256xf32>
    %385 = arith.mulf %382, %384 : vector<4x256xf32>
    %c33_i32_235 = arith.constant 33 : i32
    %386 = tpu.dynamic_rotate %380 by %c33_i32_235 dim 1 : vector<4x256xf32>, i32 -> vector<4x256xf32>
    %c1_236 = arith.constant 1 : index
    %c0_237 = arith.constant 0 : index
    %387 = vector.load %arg4[%c1_236, %c0_237] : memref<25x256xf32, #tpu.memory_space<vmem>>, vector<1x256xf32>
    %388 = vector.broadcast %387 : vector<1x256xf32> to vector<4x256xf32>
    %389 = arith.mulf %386, %388 : vector<4x256xf32>
    %c32_i32_238 = arith.constant 32 : i32
    %390 = tpu.dynamic_rotate %380 by %c32_i32_238 dim 1 : vector<4x256xf32>, i32 -> vector<4x256xf32>
    %c2_239 = arith.constant 2 : index
    %c0_240 = arith.constant 0 : index
    %391 = vector.load %arg4[%c2_239, %c0_240] : memref<25x256xf32, #tpu.memory_space<vmem>>, vector<1x256xf32>
    %392 = vector.broadcast %391 : vector<1x256xf32> to vector<4x256xf32>
    %393 = arith.mulf %390, %392 : vector<4x256xf32>
    %c31_i32_241 = arith.constant 31 : i32
    %394 = tpu.dynamic_rotate %380 by %c31_i32_241 dim 1 : vector<4x256xf32>, i32 -> vector<4x256xf32>
    %c3_242 = arith.constant 3 : index
    %c0_243 = arith.constant 0 : index
    %395 = vector.load %arg4[%c3_242, %c0_243] : memref<25x256xf32, #tpu.memory_space<vmem>>, vector<1x256xf32>
    %396 = vector.broadcast %395 : vector<1x256xf32> to vector<4x256xf32>
    %397 = arith.mulf %394, %396 : vector<4x256xf32>
    %c30_i32_244 = arith.constant 30 : i32
    %398 = tpu.dynamic_rotate %380 by %c30_i32_244 dim 1 : vector<4x256xf32>, i32 -> vector<4x256xf32>
    %c4_245 = arith.constant 4 : index
    %c0_246 = arith.constant 0 : index
    %399 = vector.load %arg4[%c4_245, %c0_246] : memref<25x256xf32, #tpu.memory_space<vmem>>, vector<1x256xf32>
    %400 = vector.broadcast %399 : vector<1x256xf32> to vector<4x256xf32>
    %401 = arith.mulf %398, %400 : vector<4x256xf32>
    %402 = tpu.concatenate %385, %389, %393, %397, %401 in 0 : vector<4x256xf32>, vector<4x256xf32>, vector<4x256xf32>, vector<4x256xf32>, vector<4x256xf32> -> vector<20x256xf32>
    %403 = arith.truncf %402 : vector<20x256xf32> to vector<20x256xbf16>
    %c0_247 = arith.constant 0 : index
    %c0_248 = arith.constant 0 : index
    %c0_249 = arith.constant 0 : index
    %404 = vector.load %arg13[%c0_247, %c0_248, %c0_249] : memref<5x1x20xbf16, #tpu.memory_space<vmem>>, vector<1x1x20xbf16>
    %405 = vector.shape_cast %404 : vector<1x1x20xbf16> to vector<1x20xbf16>
    %cst_250 = arith.constant dense<0.000000e+00> : vector<1x256xf32>
    %406 = tpu.matmul %405, %403, %cst_250 {dimension_numbers = #tpu.dot_dimension_numbers<[1], [0], [0], [1], [0, 0, 1, 1], [], []>} : vector<1x20xbf16>, vector<20x256xbf16>, vector<1x256xf32> -> vector<1x256xf32>
    %407 = arith.addf %381, %406 : vector<1x256xf32>
    %c18_i32_251 = arith.constant 18 : i32
    %408 = tpu.dynamic_rotate %380 by %c18_i32_251 dim 1 : vector<4x256xf32>, i32 -> vector<4x256xf32>
    %c5_252 = arith.constant 5 : index
    %c0_253 = arith.constant 0 : index
    %409 = vector.load %arg4[%c5_252, %c0_253] : memref<25x256xf32, #tpu.memory_space<vmem>>, vector<1x256xf32>
    %410 = vector.broadcast %409 : vector<1x256xf32> to vector<4x256xf32>
    %411 = arith.mulf %408, %410 : vector<4x256xf32>
    %c17_i32_254 = arith.constant 17 : i32
    %412 = tpu.dynamic_rotate %380 by %c17_i32_254 dim 1 : vector<4x256xf32>, i32 -> vector<4x256xf32>
    %c6_255 = arith.constant 6 : index
    %c0_256 = arith.constant 0 : index
    %413 = vector.load %arg4[%c6_255, %c0_256] : memref<25x256xf32, #tpu.memory_space<vmem>>, vector<1x256xf32>
    %414 = vector.broadcast %413 : vector<1x256xf32> to vector<4x256xf32>
    %415 = arith.mulf %412, %414 : vector<4x256xf32>
    %c16_i32_257 = arith.constant 16 : i32
    %416 = tpu.dynamic_rotate %380 by %c16_i32_257 dim 1 : vector<4x256xf32>, i32 -> vector<4x256xf32>
    %c7_258 = arith.constant 7 : index
    %c0_259 = arith.constant 0 : index
    %417 = vector.load %arg4[%c7_258, %c0_259] : memref<25x256xf32, #tpu.memory_space<vmem>>, vector<1x256xf32>
    %418 = vector.broadcast %417 : vector<1x256xf32> to vector<4x256xf32>
    %419 = arith.mulf %416, %418 : vector<4x256xf32>
    %c15_i32_260 = arith.constant 15 : i32
    %420 = tpu.dynamic_rotate %380 by %c15_i32_260 dim 1 : vector<4x256xf32>, i32 -> vector<4x256xf32>
    %c8_261 = arith.constant 8 : index
    %c0_262 = arith.constant 0 : index
    %421 = vector.load %arg4[%c8_261, %c0_262] : memref<25x256xf32, #tpu.memory_space<vmem>>, vector<1x256xf32>
    %422 = vector.broadcast %421 : vector<1x256xf32> to vector<4x256xf32>
    %423 = arith.mulf %420, %422 : vector<4x256xf32>
    %c14_i32_263 = arith.constant 14 : i32
    %424 = tpu.dynamic_rotate %380 by %c14_i32_263 dim 1 : vector<4x256xf32>, i32 -> vector<4x256xf32>
    %c9_264 = arith.constant 9 : index
    %c0_265 = arith.constant 0 : index
    %425 = vector.load %arg4[%c9_264, %c0_265] : memref<25x256xf32, #tpu.memory_space<vmem>>, vector<1x256xf32>
    %426 = vector.broadcast %425 : vector<1x256xf32> to vector<4x256xf32>
    %427 = arith.mulf %424, %426 : vector<4x256xf32>
    %428 = tpu.concatenate %411, %415, %419, %423, %427 in 0 : vector<4x256xf32>, vector<4x256xf32>, vector<4x256xf32>, vector<4x256xf32>, vector<4x256xf32> -> vector<20x256xf32>
    %429 = arith.truncf %428 : vector<20x256xf32> to vector<20x256xbf16>
    %c1_266 = arith.constant 1 : index
    %c0_267 = arith.constant 0 : index
    %c0_268 = arith.constant 0 : index
    %430 = vector.load %arg13[%c1_266, %c0_267, %c0_268] : memref<5x1x20xbf16, #tpu.memory_space<vmem>>, vector<1x1x20xbf16>
    %431 = vector.shape_cast %430 : vector<1x1x20xbf16> to vector<1x20xbf16>
    %cst_269 = arith.constant dense<0.000000e+00> : vector<1x256xf32>
    %432 = tpu.matmul %431, %429, %cst_269 {dimension_numbers = #tpu.dot_dimension_numbers<[1], [0], [0], [1], [0, 0, 1, 1], [], []>} : vector<1x20xbf16>, vector<20x256xbf16>, vector<1x256xf32> -> vector<1x256xf32>
    %433 = arith.addf %407, %432 : vector<1x256xf32>
    %c2_i32_270 = arith.constant 2 : i32
    %434 = tpu.dynamic_rotate %380 by %c2_i32_270 dim 1 : vector<4x256xf32>, i32 -> vector<4x256xf32>
    %c10_271 = arith.constant 10 : index
    %c0_272 = arith.constant 0 : index
    %435 = vector.load %arg4[%c10_271, %c0_272] : memref<25x256xf32, #tpu.memory_space<vmem>>, vector<1x256xf32>
    %436 = vector.broadcast %435 : vector<1x256xf32> to vector<4x256xf32>
    %437 = arith.mulf %434, %436 : vector<4x256xf32>
    %c1_i32_273 = arith.constant 1 : i32
    %438 = tpu.dynamic_rotate %380 by %c1_i32_273 dim 1 : vector<4x256xf32>, i32 -> vector<4x256xf32>
    %c11_274 = arith.constant 11 : index
    %c0_275 = arith.constant 0 : index
    %439 = vector.load %arg4[%c11_274, %c0_275] : memref<25x256xf32, #tpu.memory_space<vmem>>, vector<1x256xf32>
    %440 = vector.broadcast %439 : vector<1x256xf32> to vector<4x256xf32>
    %441 = arith.mulf %438, %440 : vector<4x256xf32>
    %c255_i32_276 = arith.constant 255 : i32
    %442 = tpu.dynamic_rotate %380 by %c255_i32_276 dim 1 : vector<4x256xf32>, i32 -> vector<4x256xf32>
    %c13_277 = arith.constant 13 : index
    %c0_278 = arith.constant 0 : index
    %443 = vector.load %arg4[%c13_277, %c0_278] : memref<25x256xf32, #tpu.memory_space<vmem>>, vector<1x256xf32>
    %444 = vector.broadcast %443 : vector<1x256xf32> to vector<4x256xf32>
    %445 = arith.mulf %442, %444 : vector<4x256xf32>
    %c254_i32_279 = arith.constant 254 : i32
    %446 = tpu.dynamic_rotate %380 by %c254_i32_279 dim 1 : vector<4x256xf32>, i32 -> vector<4x256xf32>
    %c14_280 = arith.constant 14 : index
    %c0_281 = arith.constant 0 : index
    %447 = vector.load %arg4[%c14_280, %c0_281] : memref<25x256xf32, #tpu.memory_space<vmem>>, vector<1x256xf32>
    %448 = vector.broadcast %447 : vector<1x256xf32> to vector<4x256xf32>
    %449 = arith.mulf %446, %448 : vector<4x256xf32>
    %450 = tpu.concatenate %437, %441, %380, %445, %449 in 0 : vector<4x256xf32>, vector<4x256xf32>, vector<4x256xf32>, vector<4x256xf32>, vector<4x256xf32> -> vector<20x256xf32>
    %451 = arith.truncf %450 : vector<20x256xf32> to vector<20x256xbf16>
    %c2_282 = arith.constant 2 : index
    %c0_283 = arith.constant 0 : index
    %c0_284 = arith.constant 0 : index
    %452 = vector.load %arg13[%c2_282, %c0_283, %c0_284] : memref<5x1x20xbf16, #tpu.memory_space<vmem>>, vector<1x1x20xbf16>
    %453 = vector.shape_cast %452 : vector<1x1x20xbf16> to vector<1x20xbf16>
    %cst_285 = arith.constant dense<0.000000e+00> : vector<1x256xf32>
    %454 = tpu.matmul %453, %451, %cst_285 {dimension_numbers = #tpu.dot_dimension_numbers<[1], [0], [0], [1], [0, 0, 1, 1], [], []>} : vector<1x20xbf16>, vector<20x256xbf16>, vector<1x256xf32> -> vector<1x256xf32>
    %455 = arith.addf %433, %454 : vector<1x256xf32>
    %c242_i32_286 = arith.constant 242 : i32
    %456 = tpu.dynamic_rotate %380 by %c242_i32_286 dim 1 : vector<4x256xf32>, i32 -> vector<4x256xf32>
    %c15_287 = arith.constant 15 : index
    %c0_288 = arith.constant 0 : index
    %457 = vector.load %arg4[%c15_287, %c0_288] : memref<25x256xf32, #tpu.memory_space<vmem>>, vector<1x256xf32>
    %458 = vector.broadcast %457 : vector<1x256xf32> to vector<4x256xf32>
    %459 = arith.mulf %456, %458 : vector<4x256xf32>
    %c241_i32_289 = arith.constant 241 : i32
    %460 = tpu.dynamic_rotate %380 by %c241_i32_289 dim 1 : vector<4x256xf32>, i32 -> vector<4x256xf32>
    %c16_290 = arith.constant 16 : index
    %c0_291 = arith.constant 0 : index
    %461 = vector.load %arg4[%c16_290, %c0_291] : memref<25x256xf32, #tpu.memory_space<vmem>>, vector<1x256xf32>
    %462 = vector.broadcast %461 : vector<1x256xf32> to vector<4x256xf32>
    %463 = arith.mulf %460, %462 : vector<4x256xf32>
    %c240_i32_292 = arith.constant 240 : i32
    %464 = tpu.dynamic_rotate %380 by %c240_i32_292 dim 1 : vector<4x256xf32>, i32 -> vector<4x256xf32>
    %c17_293 = arith.constant 17 : index
    %c0_294 = arith.constant 0 : index
    %465 = vector.load %arg4[%c17_293, %c0_294] : memref<25x256xf32, #tpu.memory_space<vmem>>, vector<1x256xf32>
    %466 = vector.broadcast %465 : vector<1x256xf32> to vector<4x256xf32>
    %467 = arith.mulf %464, %466 : vector<4x256xf32>
    %c239_i32_295 = arith.constant 239 : i32
    %468 = tpu.dynamic_rotate %380 by %c239_i32_295 dim 1 : vector<4x256xf32>, i32 -> vector<4x256xf32>
    %c18_296 = arith.constant 18 : index
    %c0_297 = arith.constant 0 : index
    %469 = vector.load %arg4[%c18_296, %c0_297] : memref<25x256xf32, #tpu.memory_space<vmem>>, vector<1x256xf32>
    %470 = vector.broadcast %469 : vector<1x256xf32> to vector<4x256xf32>
    %471 = arith.mulf %468, %470 : vector<4x256xf32>
    %c238_i32_298 = arith.constant 238 : i32
    %472 = tpu.dynamic_rotate %380 by %c238_i32_298 dim 1 : vector<4x256xf32>, i32 -> vector<4x256xf32>
    %c19_299 = arith.constant 19 : index
    %c0_300 = arith.constant 0 : index
    %473 = vector.load %arg4[%c19_299, %c0_300] : memref<25x256xf32, #tpu.memory_space<vmem>>, vector<1x256xf32>
    %474 = vector.broadcast %473 : vector<1x256xf32> to vector<4x256xf32>
    %475 = arith.mulf %472, %474 : vector<4x256xf32>
    %476 = tpu.concatenate %459, %463, %467, %471, %475 in 0 : vector<4x256xf32>, vector<4x256xf32>, vector<4x256xf32>, vector<4x256xf32>, vector<4x256xf32> -> vector<20x256xf32>
    %477 = arith.truncf %476 : vector<20x256xf32> to vector<20x256xbf16>
    %c3_301 = arith.constant 3 : index
    %c0_302 = arith.constant 0 : index
    %c0_303 = arith.constant 0 : index
    %478 = vector.load %arg13[%c3_301, %c0_302, %c0_303] : memref<5x1x20xbf16, #tpu.memory_space<vmem>>, vector<1x1x20xbf16>
    %479 = vector.shape_cast %478 : vector<1x1x20xbf16> to vector<1x20xbf16>
    %cst_304 = arith.constant dense<0.000000e+00> : vector<1x256xf32>
    %480 = tpu.matmul %479, %477, %cst_304 {dimension_numbers = #tpu.dot_dimension_numbers<[1], [0], [0], [1], [0, 0, 1, 1], [], []>} : vector<1x20xbf16>, vector<20x256xbf16>, vector<1x256xf32> -> vector<1x256xf32>
    %481 = arith.addf %455, %480 : vector<1x256xf32>
    %c226_i32_305 = arith.constant 226 : i32
    %482 = tpu.dynamic_rotate %380 by %c226_i32_305 dim 1 : vector<4x256xf32>, i32 -> vector<4x256xf32>
    %c20_306 = arith.constant 20 : index
    %c0_307 = arith.constant 0 : index
    %483 = vector.load %arg4[%c20_306, %c0_307] : memref<25x256xf32, #tpu.memory_space<vmem>>, vector<1x256xf32>
    %484 = vector.broadcast %483 : vector<1x256xf32> to vector<4x256xf32>
    %485 = arith.mulf %482, %484 : vector<4x256xf32>
    %c225_i32_308 = arith.constant 225 : i32
    %486 = tpu.dynamic_rotate %380 by %c225_i32_308 dim 1 : vector<4x256xf32>, i32 -> vector<4x256xf32>
    %c21_309 = arith.constant 21 : index
    %c0_310 = arith.constant 0 : index
    %487 = vector.load %arg4[%c21_309, %c0_310] : memref<25x256xf32, #tpu.memory_space<vmem>>, vector<1x256xf32>
    %488 = vector.broadcast %487 : vector<1x256xf32> to vector<4x256xf32>
    %489 = arith.mulf %486, %488 : vector<4x256xf32>
    %c224_i32_311 = arith.constant 224 : i32
    %490 = tpu.dynamic_rotate %380 by %c224_i32_311 dim 1 : vector<4x256xf32>, i32 -> vector<4x256xf32>
    %c22_312 = arith.constant 22 : index
    %c0_313 = arith.constant 0 : index
    %491 = vector.load %arg4[%c22_312, %c0_313] : memref<25x256xf32, #tpu.memory_space<vmem>>, vector<1x256xf32>
    %492 = vector.broadcast %491 : vector<1x256xf32> to vector<4x256xf32>
    %493 = arith.mulf %490, %492 : vector<4x256xf32>
    %c223_i32_314 = arith.constant 223 : i32
    %494 = tpu.dynamic_rotate %380 by %c223_i32_314 dim 1 : vector<4x256xf32>, i32 -> vector<4x256xf32>
    %c23_315 = arith.constant 23 : index
    %c0_316 = arith.constant 0 : index
    %495 = vector.load %arg4[%c23_315, %c0_316] : memref<25x256xf32, #tpu.memory_space<vmem>>, vector<1x256xf32>
    %496 = vector.broadcast %495 : vector<1x256xf32> to vector<4x256xf32>
    %497 = arith.mulf %494, %496 : vector<4x256xf32>
    %c222_i32_317 = arith.constant 222 : i32
    %498 = tpu.dynamic_rotate %380 by %c222_i32_317 dim 1 : vector<4x256xf32>, i32 -> vector<4x256xf32>
    %c24_318 = arith.constant 24 : index
    %c0_319 = arith.constant 0 : index
    %499 = vector.load %arg4[%c24_318, %c0_319] : memref<25x256xf32, #tpu.memory_space<vmem>>, vector<1x256xf32>
    %500 = vector.broadcast %499 : vector<1x256xf32> to vector<4x256xf32>
    %501 = arith.mulf %498, %500 : vector<4x256xf32>
    %502 = tpu.concatenate %485, %489, %493, %497, %501 in 0 : vector<4x256xf32>, vector<4x256xf32>, vector<4x256xf32>, vector<4x256xf32>, vector<4x256xf32> -> vector<20x256xf32>
    %503 = arith.truncf %502 : vector<20x256xf32> to vector<20x256xbf16>
    %c4_320 = arith.constant 4 : index
    %c0_321 = arith.constant 0 : index
    %c0_322 = arith.constant 0 : index
    %504 = vector.load %arg13[%c4_320, %c0_321, %c0_322] : memref<5x1x20xbf16, #tpu.memory_space<vmem>>, vector<1x1x20xbf16>
    %505 = vector.shape_cast %504 : vector<1x1x20xbf16> to vector<1x20xbf16>
    %cst_323 = arith.constant dense<0.000000e+00> : vector<1x256xf32>
    %506 = tpu.matmul %505, %503, %cst_323 {dimension_numbers = #tpu.dot_dimension_numbers<[1], [0], [0], [1], [0, 0, 1, 1], [], []>} : vector<1x20xbf16>, vector<20x256xbf16>, vector<1x256xf32> -> vector<1x256xf32>
    %507 = arith.addf %481, %506 : vector<1x256xf32>
    %c0_324 = arith.constant 0 : index
    %c0_325 = arith.constant 0 : index
    %508 = vector.load %arg14[%c0_324, %c0_325] : memref<1x1xf32, #tpu.memory_space<vmem>>, vector<1x1xf32>
    %509 = vector.broadcast %508 : vector<1x1xf32> to vector<1x256xf32>
    %510 = arith.addf %507, %509 : vector<1x256xf32>
    %511 = arith.negf %510 : vector<1x256xf32>
    %512 = math.exp %511 : vector<1x256xf32>
    %cst_326 = arith.constant 1.000000e+00 : f32
    %513 = vector.broadcast %cst_326 : f32 to vector<1x256xf32>
    %514 = arith.addf %513, %512 : vector<1x256xf32>
    %515 = arith.divf %513, %514 : vector<1x256xf32>
    %c0_327 = arith.constant 0 : index
    %c0_328 = arith.constant 0 : index
    %c0_329 = arith.constant 0 : index
    %516 = vector.load %arg16[%c0_327, %c0_328, %c0_329] : memref<1x1x256xf32, #tpu.memory_space<vmem>>, vector<1x1x256xf32>
    %517 = vector.shape_cast %516 : vector<1x1x256xf32> to vector<1x256xf32>
    %518 = vector.shape_cast %515 : vector<1x256xf32> to vector<1x1x256xf32>
    tpu.vector_store %arg16[%c0_327, %c0_328, %c0_329], %518 {strides = array<i32>} : memref<1x1x256xf32, #tpu.memory_space<vmem>>, vector<1x1x256xf32>,
    return
  }
  func.func @transform_0(%arg0: i32) -> (i32, i32, i32) {
    %c0_i32 = arith.constant 0 : i32
    %c0_i32_0 = arith.constant 0 : i32
    %c0_i32_1 = arith.constant 0 : i32
    return %arg0, %c0_i32, %c0_i32_0 : i32, i32, i32
  }
  func.func @transform_1(%arg0: i32) -> (i32, i32, i32) {
    %c0_i32 = arith.constant 0 : i32
    %c0_i32_0 = arith.constant 0 : i32
    %c0_i32_1 = arith.constant 0 : i32
    return %arg0, %c0_i32, %c0_i32_0 : i32, i32, i32
  }
  func.func @transform_2(%arg0: i32) -> (i32, i32) {
    %c0_i32 = arith.constant 0 : i32
    %c0_i32_0 = arith.constant 0 : i32
    %c0_i32_1 = arith.constant 0 : i32
    return %c0_i32, %c0_i32_0 : i32, i32
  }
  func.func @transform_3(%arg0: i32) -> (i32, i32) {
    %c0_i32 = arith.constant 0 : i32
    %c0_i32_0 = arith.constant 0 : i32
    %c0_i32_1 = arith.constant 0 : i32
    return %c0_i32, %c0_i32_0 : i32, i32
  }
  func.func @transform_4(%arg0: i32) -> (i32, i32, i32) {
    %c0_i32 = arith.constant 0 : i32
    %c0_i32_0 = arith.constant 0 : i32
    %c0_i32_1 = arith.constant 0 : i32
    %c0_i32_2 = arith.constant 0 : i32
    return %c0_i32, %c0_i32_0, %c0_i32_1 : i32, i32, i32
  }
  func.func @transform_5(%arg0: i32) -> (i32, i32) {
    %c0_i32 = arith.constant 0 : i32
    %c0_i32_0 = arith.constant 0 : i32
    %c0_i32_1 = arith.constant 0 : i32
    return %c0_i32, %c0_i32_0 : i32, i32
  }
  func.func @transform_6(%arg0: i32) -> (i32, i32, i32) {
    %c0_i32 = arith.constant 0 : i32
    %c0_i32_0 = arith.constant 0 : i32
    %c0_i32_1 = arith.constant 0 : i32
    %c0_i32_2 = arith.constant 0 : i32
    return %c0_i32, %c0_i32_0, %c0_i32_1 : i32, i32, i32
  }
  func.func @transform_7(%arg0: i32) -> (i32, i32) {
    %c0_i32 = arith.constant 0 : i32
    %c0_i32_0 = arith.constant 0 : i32
    %c0_i32_1 = arith.constant 0 : i32
    return %c0_i32, %c0_i32_0 : i32, i32
  }
  func.func @transform_8(%arg0: i32) -> (i32, i32, i32) {
    %c0_i32 = arith.constant 0 : i32
    %c0_i32_0 = arith.constant 0 : i32
    %c0_i32_1 = arith.constant 0 : i32
    %c0_i32_2 = arith.constant 0 : i32
    return %c0_i32, %c0_i32_0, %c0_i32_1 : i32, i32, i32
  }
  func.func @transform_9(%arg0: i32) -> (i32, i32) {
    %c0_i32 = arith.constant 0 : i32
    %c0_i32_0 = arith.constant 0 : i32
    %c0_i32_1 = arith.constant 0 : i32
    return %c0_i32, %c0_i32_0 : i32, i32
  }
  func.func @transform_10(%arg0: i32) -> (i32, i32, i32) {
    %c0_i32 = arith.constant 0 : i32
    %c0_i32_0 = arith.constant 0 : i32
    %c0_i32_1 = arith.constant 0 : i32
    %c0_i32_2 = arith.constant 0 : i32
    return %c0_i32, %c0_i32_0, %c0_i32_1 : i32, i32, i32
  }
  func.func @transform_11(%arg0: i32) -> (i32, i32) {
    %c0_i32 = arith.constant 0 : i32
    %c0_i32_0 = arith.constant 0 : i32
    %c0_i32_1 = arith.constant 0 : i32
    return %c0_i32, %c0_i32_0 : i32, i32
  }
  func.func @transform_12(%arg0: i32) -> (i32, i32, i32) {
    %c0_i32 = arith.constant 0 : i32
    %c0_i32_0 = arith.constant 0 : i32
    %c0_i32_1 = arith.constant 0 : i32
    %c0_i32_2 = arith.constant 0 : i32
    return %c0_i32, %c0_i32_0, %c0_i32_1 : i32, i32, i32
  }
  func.func @transform_13(%arg0: i32) -> (i32, i32) {
    %c0_i32 = arith.constant 0 : i32
    %c0_i32_0 = arith.constant 0 : i32
    %c0_i32_1 = arith.constant 0 : i32
    return %c0_i32, %c0_i32_0 : i32, i32
  }
  func.func @transform_14(%arg0: i32) -> i32 {
    %c0_i32 = arith.constant 0 : i32
    %c0_i32_0 = arith.constant 0 : i32
    return %c0_i32 : i32
  }
  func.func @transform_15(%arg0: i32) -> (i32, i32, i32) {
    %c0_i32 = arith.constant 0 : i32
    %c0_i32_0 = arith.constant 0 : i32
    %c0_i32_1 = arith.constant 0 : i32
    return %arg0, %c0_i32, %c0_i32_0 : i32, i32, i32
  }
}

</mosaic_0001>

<llo_original>
// kernel: forward.2
$region0: #{forward.2}
  #allocation0 [shape = 'u32[]', space=smem, size = 0x4, offset = 0x4, fixed_abs, tag = 'smem constant byte address 0x4 - core index']
  #allocation1 [shape = 'u32[72,128]{1,0:T(1,128)}', space=vmem, size = 0x9000, scoped, tag = 'internal scratch']
  #allocation2 [shape = 'f32[8,256]{1,0:T(8,128)}', space=vmem, size = 0x2000, scoped, tag = 'scratch operand']
  #allocation3 [shape = 'f32[32,256]{1,0:T(8,128)}', space=vmem, size = 0x8000, scoped, tag = 'scratch operand']
  #allocation4 [shape = 'f32[5,8,256]{2,1,0:T(8,128)}', space=vmem, size = 0xa000, scoped, tag = 'scratch operand']
  %s0 = inlined_call_operand.vmem [shape: f32[2,8,8,256], index: 0, kind: input, shape index: {}]
  %s1 = inlined_call_operand.vmem [shape: bf16[5,32,72], index: 1, kind: input, shape index: {}]
  %s2 = inlined_call_operand.vmem [shape: bf16[5,32,72], index: 2, kind: input, shape index: {}]
  %s3 = inlined_call_operand.vmem [shape: f32[5,32,1], index: 3, kind: input, shape index: {}]
  %s4 = inlined_call_operand.vmem [shape: f32[9,256], index: 4, kind: input, shape index: {}]
  %s5 = inlined_call_operand.vmem [shape: f32[2,16,256], index: 5, kind: output, shape index: {}]
  %s6 = sld [smem:[#allocation0]]
  $region73: #{forward.2} parent=0
    _
  %s8 = ssub.s32 1, %s6
  %s9 = scalar_select 0, %s8, %s6
  loop: start=0, step=1, limit=102
  $region2: #{forward.2} parent=0 // loop_pre_header
    _
  $region3: #{forward.2} parent=0 // loop_header
    %s11 = sphi 0, %s15
    %p12 = scmp.ge.s32.totalorder %s11, 102
    %s18 = sphi 0, %s44
    %s19 = sphi 0, %s40
    %s20 = sphi 0, %s36
    %s21 = sphi 0, %s32
    %s22 = sphi 0, %s18
    %s23 = sphi 0, %s19
    %s24 = sphi 0, %s20
    %s25 = sphi 0, %s21
    %s26 = sphi 0, %s22
    %s27 = sphi 0, %s23
    %s28 = sphi 0, %s24
    %s29 = sphi 0, %s25
    %s63 = sphi 0, %s65
    %s66 = sphi 0, %s63
    %s67 = sphi 0, %s66
    %s83 = sphi 0, %s67
    %s89 = sphi 0, %s91
    %s92 = sphi 0, %s89
    %s93 = sphi 0, %s92
    %s109 = sphi 0, %s93
    %s115 = sphi 0, %s117
    %s118 = sphi 0, %s115
    %s119 = sphi 0, %s118
    %s135 = sphi 0, %s119
    %s141 = sphi 0, %s143
    %s144 = sphi 0, %s141
    %s145 = sphi 0, %s144
    %s161 = sphi 0, %s145
    %s165 = sphi 0, %s165
    %s167 = sphi 0, %s165
    %s168 = sphi 0, %s167
    %s182 = sphi 0, %s168
    %s190 = sphi 0, %s192
    %s193 = sphi 0, %s190
    %s194 = sphi 0, %s193
    %s210 = sphi 0, %s194
  $region4: #{forward.2} parent=0 // loop_header_branch
    %14 = sbr.rel (%p12) target = $region8
  $region5: #{forward.2} parent=0 // loop_body
    %s16 = ssub.s32 %s11, 1
    %s17 = ssub.s32 %s11, 2
    %s30 = sadd.s32 1, %s21
    %p31 = scmp.ge.s32.totalorder %s30, 5
    %s32 = scalar_select %p31, 0, %s30
    %s33 = sadd.s32 1, %s20
    %s34 = scalar_select %p31, %s33, %s20
    %p35 = scmp.ge.s32.totalorder %s34, 5
    %s36 = scalar_select %p35, 0, %s34
    %s37 = sadd.s32 1, %s19
    %s38 = scalar_select %p35, %s37, %s19
    %p39 = scmp.ge.s32.totalorder %s38, 2
    %s40 = scalar_select %p39, 0, %s38
    %s41 = sadd.s32 1, %s18
    %s42 = scalar_select %p39, %s41, %s18
    %p43 = scmp.ge.s32.totalorder %s42, 2
    %s44 = scalar_select %p43, 0, %s42
    %p45 = scmp.eq.s32.totalorder %s20, 0
    %s46 = scalar_select %p45, %s21, 4
    %p47 = scmp.lt.s32.totalorder %s46, 1
    %s48 = scalar_select %p47, %s46, 1
    %s49 = ssub.s32 7, %s46
    %p50 = scmp.eq.s32.totalorder %s18, 0
    %s51 = scalar_select %p50, %s48, %s49
    %p52 = scmp.eq.s32.totalorder %s36, 0
    %s53 = scalar_select %p52, %s32, 4
    %p54 = scmp.lt.s32.totalorder %s53, 1
    %s55 = scalar_select %p54, %s53, 1
    %s56 = ssub.s32 7, %s53
    %p57 = scmp.eq.s32.totalorder %s44, 0
    %s58 = scalar_select %p57, %s55, %s56
    %s59 = ssub.s32 %s19, %s40
    %s60 = ssub.s32 %s51, %s58
    %s61 = sor.u32 %s59, %s60
    %p62 = scmp.eq.s32.totalorder %s61, 0
    %s64 = sadd.s32 %s63, 1
    %s65 = scalar_select %p62, %s63, %s64
    %p68 = pneg %p62
    %p69 = scmp.eq.s32.totalorder %s11, 99
    %p70 = por %p68, %p69
    %p71 = scmp.ne.s32.totalorder %s63, %s66
    %p72 = scmp.eq.s32.totalorder %s11, 0
    %p73 = por %p71, %p72
    %p74 = scmp.ne.s32.totalorder %s63, %s66
    %p75 = scmp.eq.s32.totalorder %s16, 99
    %p76 = por %p74, %p75
    %p77 = scmp.ne.s32.totalorder %s66, %s67
    %p78 = scmp.eq.s32.totalorder %s16, 0
    %p79 = por %p77, %p78
    %p80 = scmp.ne.s32.totalorder %s66, %s67
    %p81 = scmp.eq.s32.totalorder %s17, 99
    %p82 = por %p80, %p81
    %p84 = scmp.ne.s32.totalorder %s67, %s83
    %p85 = scmp.eq.s32.totalorder %s17, 0
    %p86 = por %p84, %p85
    %s87 = ssub.s32 %s20, %s36
    %p88 = scmp.eq.s32.totalorder %s87, 0
    %s90 = sadd.s32 %s89, 1
    %s91 = scalar_select %p88, %s89, %s90
    %p94 = pneg %p88
    %p95 = scmp.eq.s32.totalorder %s11, 99
    %p96 = por %p94, %p95
    %p97 = scmp.ne.s32.totalorder %s89, %s92
    %p98 = scmp.eq.s32.totalorder %s11, 0
    %p99 = por %p97, %p98
    %p100 = scmp.ne.s32.totalorder %s89, %s92
    %p101 = scmp.eq.s32.totalorder %s16, 99
    %p102 = por %p100, %p101
    %p103 = scmp.ne.s32.totalorder %s92, %s93
    %p104 = scmp.eq.s32.totalorder %s16, 0
    %p105 = por %p103, %p104
    %p106 = scmp.ne.s32.totalorder %s92, %s93
    %p107 = scmp.eq.s32.totalorder %s17, 99
    %p108 = por %p106, %p107
    %p110 = scmp.ne.s32.totalorder %s93, %s109
    %p111 = scmp.eq.s32.totalorder %s17, 0
    %p112 = por %p110, %p111
    %s113 = ssub.s32 %s20, %s36
    %p114 = scmp.eq.s32.totalorder %s113, 0
    %s116 = sadd.s32 %s115, 1
    %s117 = scalar_select %p114, %s115, %s116
    %p120 = pneg %p114
    %p121 = scmp.eq.s32.totalorder %s11, 99
    %p122 = por %p120, %p121
    %p123 = scmp.ne.s32.totalorder %s115, %s118
    %p124 = scmp.eq.s32.totalorder %s11, 0
    %p125 = por %p123, %p124
    %p126 = scmp.ne.s32.totalorder %s115, %s118
    %p127 = scmp.eq.s32.totalorder %s16, 99
    %p128 = por %p126, %p127
    %p129 = scmp.ne.s32.totalorder %s118, %s119
    %p130 = scmp.eq.s32.totalorder %s16, 0
    %p131 = por %p129, %p130
    %p132 = scmp.ne.s32.totalorder %s118, %s119
    %p133 = scmp.eq.s32.totalorder %s17, 99
    %p134 = por %p132, %p133
    %p136 = scmp.ne.s32.totalorder %s119, %s135
    %p137 = scmp.eq.s32.totalorder %s17, 0
    %p138 = por %p136, %p137
    %s139 = ssub.s32 %s20, %s36
    %p140 = scmp.eq.s32.totalorder %s139, 0
    %s142 = sadd.s32 %s141, 1
    %s143 = scalar_select %p140, %s141, %s142
    %p146 = pneg %p140
    %p147 = scmp.eq.s32.totalorder %s11, 99
    %p148 = por %p146, %p147
    %p149 = scmp.ne.s32.totalorder %s141, %s144
    %p150 = scmp.eq.s32.totalorder %s11, 0
    %p151 = por %p149, %p150
    %p152 = scmp.ne.s32.totalorder %s141, %s144
    %p153 = scmp.eq.s32.totalorder %s16, 99
    %p154 = por %p152, %p153
    %p155 = scmp.ne.s32.totalorder %s144, %s145
    %p156 = scmp.eq.s32.totalorder %s16, 0
    %p157 = por %p155, %p156
    %p158 = scmp.ne.s32.totalorder %s144, %s145
    %p159 = scmp.eq.s32.totalorder %s17, 99
    %p160 = por %p158, %p159
    %p162 = scmp.ne.s32.totalorder %s145, %s161
    %p163 = scmp.eq.s32.totalorder %s17, 0
    %p164 = por %p162, %p163
    %s166 = sadd.s32 %s165, 1
    %p169 = scmp.eq.s32.totalorder %s11, 99
    %p170 = scmp.ne.s32.totalorder %s165, %s167
    %p171 = scmp.eq.s32.totalorder %s11, 0
    %p172 = por %p170, %p171
    %p173 = scmp.ne.s32.totalorder %s165, %s167
    %p174 = scmp.eq.s32.totalorder %s16, 99
    %p175 = por %p173, %p174
    %p176 = scmp.ne.s32.totalorder %s167, %s168
    %p177 = scmp.eq.s32.totalorder %s16, 0
    %p178 = por %p176, %p177
    %p179 = scmp.ne.s32.totalorder %s167, %s168
    %p180 = scmp.eq.s32.totalorder %s17, 99
    %p181 = por %p179, %p180
    %p183 = scmp.ne.s32.totalorder %s168, %s182
    %p184 = scmp.eq.s32.totalorder %s17, 0
    %p185 = por %p183, %p184
    %s186 = ssub.s32 %s19, %s40
    %s187 = ssub.s32 %s18, %s44
    %s188 = sor.u32 %s186, %s187
    %p189 = scmp.eq.s32.totalorder %s188, 0
    %s191 = sadd.s32 %s190, 1
    %s192 = scalar_select %p189, %s190, %s191
    %p195 = pneg %p189
    %p196 = scmp.eq.s32.totalorder %s11, 99
    %p197 = por %p195, %p196
    %p198 = scmp.ne.s32.totalorder %s190, %s193
    %p199 = scmp.eq.s32.totalorder %s11, 0
    %p200 = por %p198, %p199
    %p201 = scmp.ne.s32.totalorder %s190, %s193
    %p202 = scmp.eq.s32.totalorder %s16, 99
    %p203 = por %p201, %p202
    %p204 = scmp.ne.s32.totalorder %s193, %s194
    %p205 = scmp.eq.s32.totalorder %s16, 0
    %p206 = por %p204, %p205
    %p207 = scmp.ne.s32.totalorder %s193, %s194
    %p208 = scmp.eq.s32.totalorder %s17, 99
    %p209 = por %p207, %p208
    %p211 = scmp.ne.s32.totalorder %s194, %s210
    %p212 = scmp.eq.s32.totalorder %s17, 0
    %p213 = por %p211, %p212
    %p214 = scmp.le.s32.totalorder 1, %s11
    %p215 = scmp.lt.s32.totalorder %s11, 101
    %p216 = pnand %p214, %p215
    %p217 = pneg %p216
    // Predicated region
    $region9: #{forward.2} parent=5 // pred_check
      _
    $region10: #{forward.2} parent=5 // pred_check_branch
      %219 = sbr.rel (%p216) target = $region12
    $region11: #{forward.2} parent=5 // pred_region
      %s220 = ssub.s32 %s11, 1
      // Predicated region
      $region13: #{forward.2} parent=11 // pred_check
        %p221 = pneg %p178
      $region14: #{forward.2} parent=11 // pred_check_branch
        %223 = sbr.rel (%p221) target = $region16
      $region15: #{forward.2} parent=11 // pred_region
        _
      $region16: #{forward.2} parent=11 // pred_fallthru
        _
    $region12: #{forward.2} parent=5 // pred_fallthru
      _
    %p224 = scmp.lt.s32.totalorder %s11, 100
    // Predicated region
    $region17: #{forward.2} parent=5 // pred_check
      %p225 = pneg %p224
    $region18: #{forward.2} parent=5 // pred_check_branch
      %227 = sbr.rel (%p225) target = $region20
    $region19: #{forward.2} parent=5 // pred_region
      // Predicated region
      $region21: #{forward.2} parent=19 // pred_check
        %p228 = pneg %p73
      $region22: #{forward.2} parent=19 // pred_check_branch
        %230 = sbr.rel (%p228) target = $region24
      $region23: #{forward.2} parent=19 // pred_region
        %p231 = scmp.eq.s32.totalorder %s20, 0
        %s232 = scalar_select %p231, %s21, 4
        %p233 = scmp.lt.s32.totalorder %s232, 1
        %s234 = scalar_select %p233, %s232, 1
        %s235 = ssub.s32 7, %s232
        %p236 = scmp.eq.s32.totalorder %s18, 0
        %s237 = scalar_select %p236, %s234, %s235
        %p238 = scmp.lt.s32.totalorder %s19, 1
        %s239 = scalar_select %p238, %s19, 1
        %p240 = scmp.lt.s32.totalorder %s237, 7
        %s241 = scalar_select %p240, %s237, 7
        %s242 = smul.addr %s241, 2
        %s243 = smul.addr %s239, 16
        %s244 = sadd.s32 %s242, %s243
        %s245 = smul.addr %s244, 8
        %s246 = scalar_lea.vmem %s0, %s245
        %p247 = scmp.eq.s32.totalorder %s20, 0
        %s248 = scalar_select %p247, %s21, 4
        %p249 = scmp.lt.s32.totalorder %s248, 1
        %s250 = scalar_select %p249, %s248, 1
        %s251 = ssub.s32 7, %s248
        %p252 = scmp.eq.s32.totalorder %s18, 0
        %s253 = scalar_select %p252, %s250, %s251
      $region24: #{forward.2} parent=19 // pred_fallthru
        _
      // Predicated region
      $region25: #{forward.2} parent=19 // pred_check
        %p254 = pneg %p99
      $region26: #{forward.2} parent=19 // pred_check_branch
        %256 = sbr.rel (%p254) target = $region28
      $region27: #{forward.2} parent=19 // pred_region
        %p257 = scmp.lt.s32.totalorder %s20, 4
        %s258 = scalar_select %p257, %s20, 4
        %s259 = smul.addr %s258, 4
        %s260 = smul.addr %s259, 4
        %s261 = scalar_lea.vmem %s1, %s260
      $region28: #{forward.2} parent=19 // pred_fallthru
        _
      // Predicated region
      $region29: #{forward.2} parent=19 // pred_check
        %p262 = pneg %p125
      $region30: #{forward.2} parent=19 // pred_check_branch
        %264 = sbr.rel (%p262) target = $region32
      $region31: #{forward.2} parent=19 // pred_region
        %p265 = scmp.lt.s32.totalorder %s20, 4
        %s266 = scalar_select %p265, %s20, 4
        %s267 = smul.addr %s266, 4
        %s268 = smul.addr %s267, 4
        %s269 = scalar_lea.vmem %s2, %s268
      $region32: #{forward.2} parent=19 // pred_fallthru
        _
      // Predicated region
      $region33: #{forward.2} parent=19 // pred_check
        %p270 = pneg %p151
      $region34: #{forward.2} parent=19 // pred_check_branch
        %272 = sbr.rel (%p270) target = $region36
      $region35: #{forward.2} parent=19 // pred_region
        %p273 = scmp.lt.s32.totalorder %s20, 4
        %s274 = scalar_select %p273, %s20, 4
        %s275 = smul.addr %s274, 4
        %s276 = smul.addr %s275, 8
        %s277 = scalar_lea.vmem %s3, %s276
      $region36: #{forward.2} parent=19 // pred_fallthru
        _
    $region20: #{forward.2} parent=5 // pred_fallthru
      _
    %p278 = scmp.le.s32.totalorder 1, %s11
    %p279 = scmp.lt.s32.totalorder %s11, 101
    %p280 = pnand %p278, %p279
    %p281 = pneg %p280
    // Predicated region
    $region37: #{forward.2} parent=5 // pred_check
      _
    $region38: #{forward.2} parent=5 // pred_check_branch
      %283 = sbr.rel (%p280) target = $region40
    $region39: #{forward.2} parent=5 // pred_region
      %s284 = ssub.s32 %s11, 1
      %p285 = scmp.eq.s32.totalorder %s24, 0
      %s286 = scalar_select %p285, %s25, 4
      %p287 = scmp.lt.s32.totalorder %s286, 1
      %s288 = scalar_select %p287, %s286, 1
      %s289 = ssub.s32 7, %s286
      %p290 = scmp.eq.s32.totalorder %s22, 0
      %s291 = scalar_select %p290, %s288, %s289
      %p292 = scmp.lt.s32.totalorder %s23, 1
      %s293 = scalar_select %p292, %s23, 1
      %p294 = scmp.lt.s32.totalorder %s291, 7
      %s295 = scalar_select %p294, %s291, 7
      %s296 = smul.addr %s295, 2
      %s297 = smul.addr %s293, 16
      %s298 = sadd.s32 %s296, %s297
      %s299 = smul.addr %s298, 8
      %s300 = scalar_lea.vmem %s0, %s299
      %p301 = pneg %p79
      %p302 = pneg %p76
      %p303 = scmp.lt.s32.totalorder %s24, 4
      %s304 = scalar_select %p303, %s24, 4
      %s305 = smul.addr %s304, 4
      %s306 = smul.addr %s305, 4
      %s307 = scalar_lea.vmem %s1, %s306
      %p308 = pneg %p105
      %p309 = pneg %p102
      %p310 = scmp.lt.s32.totalorder %s24, 4
      %s311 = scalar_select %p310, %s24, 4
      %s312 = smul.addr %s311, 4
      %s313 = smul.addr %s312, 4
      %s314 = scalar_lea.vmem %s2, %s313
      %p315 = pneg %p131
      %p316 = pneg %p128
      %p317 = scmp.lt.s32.totalorder %s24, 4
      %s318 = scalar_select %p317, %s24, 4
      %s319 = smul.addr %s318, 4
      %s320 = smul.addr %s319, 8
      %s321 = scalar_lea.vmem %s3, %s320
      %p322 = pneg %p157
      %p323 = pneg %p154
      %p324 = pneg %p178
      %p325 = pneg %p175
      %p326 = pneg %p206
      %p327 = pneg %p203
      %p328 = scmp.lt.s32.totalorder %s23, 1
      %s329 = scalar_select %p328, %s23, 1
      %p330 = scmp.lt.s32.totalorder %s22, 1
      %s331 = scalar_select %p330, %s22, 1
      %s332 = smul.addr %s331, 2
      %s333 = smul.addr %s329, 4
      %s334 = sadd.s32 %s332, %s333
      %s335 = smul.addr %s334, 8
      %s336 = scalar_lea.vmem %s5, %s335
      %p337 = scmp.eq.s32.totalorder %s24, 0
      %s338 = scalar_select %p337, %s25, 4
      %p339 = scmp.lt.s32.totalorder %s338, 1
      %s340 = scalar_select %p339, %s338, 1
      %s341 = ssub.s32 7, %s338
      %p342 = scmp.eq.s32.totalorder %s22, 0
      %s343 = scalar_select %p342, %s340, %s341
      %p344 = scmp.lt.s32.totalorder %s23, 1
      %s345 = scalar_select %p344, %s23, 1
      %p346 = scmp.lt.s32.totalorder %s343, 7
      %s347 = scalar_select %p346, %s343, 7
      %s348 = smul.addr %s347, 2
      %s349 = smul.addr %s345, 16
      %s350 = sadd.s32 %s348, %s349
      %s351 = smul.addr %s350, 8
      %s352 = scalar_lea.vmem %s0, %s351
      %p353 = scmp.eq.s32.totalorder %s24, 0
      %s354 = scalar_select %p353, %s25, 4
      %p355 = scmp.lt.s32.totalorder %s354, 1
      %s356 = scalar_select %p355, %s354, 1
      %s357 = ssub.s32 7, %s354
      %p358 = scmp.eq.s32.totalorder %s22, 0
      %s359 = scalar_select %p358, %s356, %s357
      %p360 = scmp.lt.s32.totalorder %s24, 4
      %s361 = scalar_select %p360, %s24, 4
      %s362 = smul.addr %s361, 4
      %s363 = smul.addr %s362, 4
      %s364 = scalar_lea.vmem %s1, %s363
      %p365 = scmp.lt.s32.totalorder %s24, 4
      %s366 = scalar_select %p365, %s24, 4
      %s367 = smul.addr %s366, 4
      %s368 = smul.addr %s367, 4
      %s369 = scalar_lea.vmem %s2, %s368
      %p370 = scmp.lt.s32.totalorder %s24, 4
      %s371 = scalar_select %p370, %s24, 4
      %s372 = smul.addr %s371, 4
      %s373 = smul.addr %s372, 8
      %s374 = scalar_lea.vmem %s3, %s373
      %p375 = scmp.lt.s32.totalorder %s23, 1
      %s376 = scalar_select %p375, %s23, 1
      %p377 = scmp.lt.s32.totalorder %s22, 1
      %s378 = scalar_select %p377, %s22, 1
      %s379 = smul.addr %s378, 2
      %s380 = smul.addr %s376, 4
      %s381 = sadd.s32 %s379, %s380
      %s382 = smul.addr %s381, 8
      %s383 = scalar_lea.vmem %s5, %s382
      %p385 = scmp.eq.s32.totalorder %s22, 0
      %s386 = scalar_select %p385, 2, 5
      %p387 = scmp.lt.s32.totalorder %s25, %s386
      // Predicated region
      $region41: #{forward.2} parent=39 // pred_check
        %p388 = pneg %p387
      $region42: #{forward.2} parent=39 // pred_check_branch
        %390 = sbr.rel (%p388) target = $region44
      $region43: #{forward.2} parent=39 // pred_region
        %p391 = scmp.eq.s32.totalorder %s25, 0
        // Predicated region
        $region45: #{forward.2} parent=43 // pred_check
          %p392 = pneg %p391
        $region46: #{forward.2} parent=43 // pred_check_branch
          %394 = sbr.rel (%p392) target = $region48
        $region47: #{forward.2} parent=43 // pred_region
          %395 = vst [vmem:[#allocation2] sm:$0xff] 0.0
          %396 = vst [vmem:[#allocation2 + $0x8] sm:$0xff] 0.0
        $region48: #{forward.2} parent=43 // pred_fallthru
          _
        %p397 = scmp.eq.s32.totalorder %s24, 0
        // Predicated region
        $region49: #{forward.2} parent=43 // pred_check
          %p398 = pneg %p397
        $region50: #{forward.2} parent=43 // pred_check_branch
          %400 = sbr.rel (%p398) target = $region52
        $region51: #{forward.2} parent=43 // pred_region
          %v401 = vld [vmem:[%s352] sm:$0xff]
          %v402 = vld [vmem:[%s352 + $0x8] sm:$0xff]
          %s403 = smul.u32 %s25, 2
          %s404 = smul.addr %s403, 8
          %s405 = scalar_lea.vmem [#allocation4], %s404
          %406 = vst [vmem:[%s405] sm:$0xff] %v401
          %407 = vst [vmem:[%s405 + $0x8] sm:$0xff] %v402
        $region52: #{forward.2} parent=43 // pred_fallthru
          _
        %s408 = smul.u32 %s25, 2
        %s409 = smul.addr %s408, 8
        %s410 = scalar_lea.vmem [#allocation4], %s409
        %v411 = vld [vmem:[%s410] sm:$0xff]
        %v412 = vld [vmem:[%s410 + $0x8] sm:$0xff]
        %v413 = vld [vmem:[%s374] sm:$0xff]
        %v414 = vld [vmem:[%s374 + $0x8] sm:$0xff]
        %v415 = vld [vmem:[%s374 + $0x10] sm:$0xff]
        %v416 = vld [vmem:[%s374 + $0x18] sm:$0xff]
        %v417 = vld [vmem:[%s364] sm:$0xf]
        %v418 = vld [vmem:[%s364 + $0x4] sm:$0xf]
        %v419 = vld [vmem:[%s364 + $0x8] sm:$0xf]
        %v420 = vld [vmem:[%s364 + $0xc] sm:$0xf]
        %421 = vrot.lane.b32.xlu0 %v411, 17
        %v422 = vpop.permute.xlu0 %421
        %423 = vrot.lane.b32.xlu0 %v412, 17
        %v424 = vpop.permute.xlu0 %423
        %v425 = vlaneseq
        %v426 = vand.u32 %v425, 127
        %vm427 = vcmp.lt.s32.totalorder %v426, 17
        %v428 = vsel %vm427, %v422, %v424
        %v429 = vsel %vm427, %v424, %v422
        %v430 = vld [vmem:[%s4] ss:$8 sm:$0x3]
        %v432 = vperm.slane %v430, 0
        %v433 = vperm.slane %v430, 1
        %v436 = vmul.f32 %v429, %v432
        %v437 = vmul.f32 %v428, %v433
        %438 = vrot.lane.b32.xlu0 %v411, 16
        %v439 = vpop.permute.xlu0 %438
        %440 = vrot.lane.b32.xlu0 %v412, 16
        %v441 = vpop.permute.xlu0 %440
        %vm442 = vcmp.lt.s32.totalorder %v426, 16
        %v443 = vsel %vm442, %v439, %v441
        %v444 = vsel %vm442, %v441, %v439
        %s445 = scalar_lea.vmem %s4, 1
        %v446 = vld [vmem:[%s445] ss:$8 sm:$0x3]
        %v448 = vperm.slane %v446, 0
        %v449 = vperm.slane %v446, 1
        %v452 = vmul.f32 %v444, %v448
        %v453 = vmul.f32 %v443, %v449
        %454 = vrot.lane.b32.xlu0 %v411, 15
        %v455 = vpop.permute.xlu0 %454
        %456 = vrot.lane.b32.xlu0 %v412, 15
        %v457 = vpop.permute.xlu0 %456
        %vm458 = vcmp.lt.s32.totalorder %v426, 15
        %v459 = vsel %vm458, %v455, %v457
        %v460 = vsel %vm458, %v457, %v455
        %s461 = scalar_lea.vmem %s4, 2
        %v462 = vld [vmem:[%s461] ss:$8 sm:$0x3]
        %v464 = vperm.slane %v462, 0
        %v465 = vperm.slane %v462, 1
        %v468 = vmul.f32 %v460, %v464
        %v469 = vmul.f32 %v459, %v465
        %470 = vrot.lane.b32.xlu0 %v411, 1
        %v471 = vpop.permute.xlu0 %470
        %472 = vrot.lane.b32.xlu0 %v412, 1
        %v473 = vpop.permute.xlu0 %472
        %vm474 = vcmp.lt.s32.totalorder %v426, 1
        %v475 = vsel %vm474, %v471, %v473
        %v476 = vsel %vm474, %v473, %v471
        %s477 = scalar_lea.vmem %s4, 3
        %v478 = vld [vmem:[%s477] ss:$8 sm:$0x3]
        %v480 = vperm.slane %v478, 0
        %v481 = vperm.slane %v478, 1
        %v484 = vmul.f32 %v476, %v480
        %v485 = vmul.f32 %v475, %v481
        %486 = vrot.lane.b32.xlu0 %v411, 127
        %v487 = vpop.permute.xlu0 %486
        %488 = vrot.lane.b32.xlu0 %v412, 127
        %v489 = vpop.permute.xlu0 %488
        %vm490 = vcmp.lt.s32.totalorder %v426, 127
        %v491 = vsel %vm490, %v487, %v489
        %v492 = vsel %vm490, %v489, %v487
        %s493 = scalar_lea.vmem %s4, 5
        %v494 = vld [vmem:[%s493] ss:$8 sm:$0x3]
        %v496 = vperm.slane %v494, 0
        %v497 = vperm.slane %v494, 1
        %v500 = vmul.f32 %v491, %v496
        %v501 = vmul.f32 %v492, %v497
        %502 = vrot.lane.b32.xlu0 %v411, 113
        %v503 = vpop.permute.xlu0 %502
        %504 = vrot.lane.b32.xlu0 %v412, 113
        %v505 = vpop.permute.xlu0 %504
        %vm506 = vcmp.lt.s32.totalorder %v426, 113
        %v507 = vsel %vm506, %v503, %v505
        %v508 = vsel %vm506, %v505, %v503
        %s509 = scalar_lea.vmem %s4, 6
        %v510 = vld [vmem:[%s509] ss:$8 sm:$0x3]
        %v512 = vperm.slane %v510, 0
        %v513 = vperm.slane %v510, 1
        %v516 = vmul.f32 %v507, %v512
        %v517 = vmul.f32 %v508, %v513
        %518 = vrot.lane.b32.xlu0 %v411, 112
        %v519 = vpop.permute.xlu0 %518
        %520 = vrot.lane.b32.xlu0 %v412, 112
        %v521 = vpop.permute.xlu0 %520
        %vm522 = vcmp.lt.s32.totalorder %v426, 112
        %v523 = vsel %vm522, %v519, %v521
        %v524 = vsel %vm522, %v521, %v519
        %s525 = scalar_lea.vmem %s4, 7
        %v526 = vld [vmem:[%s525] ss:$8 sm:$0x3]
        %v528 = vperm.slane %v526, 0
        %v529 = vperm.slane %v526, 1
        %v532 = vmul.f32 %v523, %v528
        %v533 = vmul.f32 %v524, %v529
        %534 = vrot.lane.b32.xlu0 %v411, 111
        %v535 = vpop.permute.xlu0 %534
        %536 = vrot.lane.b32.xlu0 %v412, 111
        %v537 = vpop.permute.xlu0 %536
        %vm538 = vcmp.lt.s32.totalorder %v426, 111
        %v539 = vsel %vm538, %v535, %v537
        %v540 = vsel %vm538, %v537, %v535
        %s541 = scalar_lea.vmem %s4, 16
        %v542 = vld [vmem:[%s541] ss:$8 sm:$0x3]
        %v544 = vperm.slane %v542, 0
        %v545 = vperm.slane %v542, 1
        %v548 = vmul.f32 %v539, %v544
        %v549 = vmul.f32 %v540, %v545
        %v550 = vpack.c.bf16 %v452, %v436
        %v551 = vpack.c.bf16 %v453, %v437
        %v552 = vpack.c.bf16 %v484, %v468
        %v553 = vpack.c.bf16 %v485, %v469
        %v554 = vpack.c.bf16 %v500, %v411
        %v555 = vpack.c.bf16 %v501, %v412
        %v556 = vpack.c.bf16 %v532, %v516
        %v557 = vpack.c.bf16 %v533, %v517
        %v558 = vpack.c.bf16 %v548, %v548
        %v559 = vpack.c.bf16 %v549, %v549
        %v564 = vunpack.c.l.b16 %v417
        %v565 = vunpack.c.l.b16 %v418
        %v566 = vunpack.c.l.b16 %v419
        %v567 = vunpack.c.l.b16 %v420
        %v568 = vpack.c.b16 %v565, %v564
        %v569 = vpack.c.b16 %v567, %v566
        %vm570 = vcmask 588800
        %v572 = vsel %vm570, %v568, 0
        %v575 = vsel %vm570, %v569, 0
        %vm577 = vcmask 1043456
        %v579 = vsel %vm577, %v558, 0
        %v582 = vsel %vm577, %v559, 0
        %584 = vmatpush.bf16.msra.mxu0 0
        %585 = vmatpush.bf16.msra.mxu0 0
        %586 = vmatpush.bf16.msra.mxu0 0
        %587 = vmatpush.bf16.msra.mxu0 %v579
        %588 = vmatpush.bf16.msra.mxu0 %v556
        %589 = vmatpush.bf16.msra.mxu0 %v554
        %590 = vmatpush.bf16.msra.mxu0 %v552
        %591 = vmatpush.bf16.msra.mxu0 %v550
        %592 = vmatmul.bf16.gmra.mxu0 %v572
        %v593 = vpop.f32.mrf.mxu0
        %v594 = vadd.f32 0.0, %v593
        %v595 = vpop.f32.mrf.mxu0
        %v596 = vadd.f32 0.0, %v595
        %597 = vmatmul.bf16.gmra.mxu0 %v575
        %v598 = vpop.f32.mrf.mxu0
        %v599 = vadd.f32 0.0, %v598
        %v600 = vpop.f32.mrf.mxu0
        %v601 = vadd.f32 0.0, %v600
        %602 = vdwg.mxu0
        %603 = vmatpush.bf16.msra.mxu0 0
        %604 = vmatpush.bf16.msra.mxu0 0
        %605 = vmatpush.bf16.msra.mxu0 0
        %606 = vmatpush.bf16.msra.mxu0 %v582
        %607 = vmatpush.bf16.msra.mxu0 %v557
        %608 = vmatpush.bf16.msra.mxu0 %v555
        %609 = vmatpush.bf16.msra.mxu0 %v553
        %610 = vmatpush.bf16.msra.mxu0 %v551
        %611 = vmatmul.bf16.gmra.mxu0 %v572
        %v612 = vpop.f32.mrf.mxu0
        %v613 = vadd.f32 0.0, %v612
        %v614 = vpop.f32.mrf.mxu0
        %v615 = vadd.f32 0.0, %v614
        %616 = vmatmul.bf16.gmra.mxu0 %v575
        %v617 = vpop.f32.mrf.mxu0
        %v618 = vadd.f32 0.0, %v617
        %v619 = vpop.f32.mrf.mxu0
        %v620 = vadd.f32 0.0, %v619
        %621 = vdwg.mxu0
        %623 = vset.pattern.permute.xlu0 0
        %624 = vperm.xlu0 %623, %v413
        %v625 = vpop.permute.xlu0 %624
        %628 = vset.pattern.permute.xlu0 0
        %629 = vperm.xlu0 %628, %v414
        %v630 = vpop.permute.xlu0 %629
        %633 = vset.pattern.permute.xlu0 0
        %634 = vperm.xlu0 %633, %v415
        %v635 = vpop.permute.xlu0 %634
        %638 = vset.pattern.permute.xlu0 0
        %639 = vperm.xlu0 %638, %v416
        %v640 = vpop.permute.xlu0 %639
        %v642 = vadd.f32 %v625, %v594
        %v643 = vadd.f32 %v625, %v613
        %v644 = vadd.f32 %v630, %v596
        %v645 = vadd.f32 %v630, %v615
        %v646 = vadd.f32 %v635, %v599
        %v647 = vadd.f32 %v635, %v618
        %v648 = vadd.f32 %v640, %v601
        %v649 = vadd.f32 %v640, %v620
        %650 = vst [vmem:[#allocation3] sm:$0xff] %v642
        %651 = vst [vmem:[#allocation3 + $0x8] sm:$0xff] %v643
        %652 = vst [vmem:[#allocation3 + $0x10] sm:$0xff] %v644
        %653 = vst [vmem:[#allocation3 + $0x18] sm:$0xff] %v645
        %654 = vst [vmem:[#allocation3 + $0x20] sm:$0xff] %v646
        %655 = vst [vmem:[#allocation3 + $0x28] sm:$0xff] %v647
        %656 = vst [vmem:[#allocation3 + $0x30] sm:$0xff] %v648
        %657 = vst [vmem:[#allocation3 + $0x38] sm:$0xff] %v649
        %p658 = scmp.gt.s32.totalorder %s25, 0
        // Predicated region
        $region53: #{forward.2} parent=43 // pred_check
          %p659 = pneg %p658
        $region54: #{forward.2} parent=43 // pred_check_branch
          %661 = sbr.rel (%p659) target = $region56
        $region55: #{forward.2} parent=43 // pred_region
          %s662 = ssub.s32 %s25, 1
          %s663 = smul.u32 %s662, 2
          %s664 = smul.addr %s663, 8
          %s665 = scalar_lea.vmem [#allocation4], %s664
          %v666 = vld [vmem:[%s665] sm:$0xff]
          %v667 = vld [vmem:[%s665 + $0x8] sm:$0xff]
          %v668 = vld [vmem:[#allocation3] sm:$0xff]
          %v669 = vld [vmem:[#allocation3 + $0x8] sm:$0xff]
          %v670 = vld [vmem:[#allocation3 + $0x10] sm:$0xff]
          %v671 = vld [vmem:[#allocation3 + $0x18] sm:$0xff]
          %v672 = vld [vmem:[#allocation3 + $0x20] sm:$0xff]
          %v673 = vld [vmem:[#allocation3 + $0x28] sm:$0xff]
          %v674 = vld [vmem:[#allocation3 + $0x30] sm:$0xff]
          %v675 = vld [vmem:[#allocation3 + $0x38] sm:$0xff]
          %v676 = vld [vmem:[%s369] sm:$0xf]
          %v677 = vld [vmem:[%s369 + $0x4] sm:$0xf]
          %v678 = vld [vmem:[%s369 + $0x8] sm:$0xf]
          %v679 = vld [vmem:[%s369 + $0xc] sm:$0xf]
          %680 = vrot.lane.b32.xlu0 %v666, 17
          %v681 = vpop.permute.xlu0 %680
          %682 = vrot.lane.b32.xlu0 %v667, 17
          %v683 = vpop.permute.xlu0 %682
          %v684 = vsel %vm427, %v681, %v683
          %v685 = vsel %vm427, %v683, %v681
          %v686 = vld [vmem:[%s4] ss:$8 sm:$0x3]
          %v688 = vperm.slane %v686, 0
          %v689 = vperm.slane %v686, 1
          %v692 = vmul.f32 %v685, %v688
          %v693 = vmul.f32 %v684, %v689
          %694 = vrot.lane.b32.xlu0 %v666, 16
          %v695 = vpop.permute.xlu0 %694
          %696 = vrot.lane.b32.xlu0 %v667, 16
          %v697 = vpop.permute.xlu0 %696
          %v698 = vsel %vm442, %v695, %v697
          %v699 = vsel %vm442, %v697, %v695
          %v700 = vld [vmem:[%s445] ss:$8 sm:$0x3]
          %v702 = vperm.slane %v700, 0
          %v703 = vperm.slane %v700, 1
          %v706 = vmul.f32 %v699, %v702
          %v707 = vmul.f32 %v698, %v703
          %708 = vrot.lane.b32.xlu0 %v666, 15
          %v709 = vpop.permute.xlu0 %708
          %710 = vrot.lane.b32.xlu0 %v667, 15
          %v711 = vpop.permute.xlu0 %710
          %v712 = vsel %vm458, %v709, %v711
          %v713 = vsel %vm458, %v711, %v709
          %v714 = vld [vmem:[%s461] ss:$8 sm:$0x3]
          %v716 = vperm.slane %v714, 0
          %v717 = vperm.slane %v714, 1
          %v720 = vmul.f32 %v713, %v716
          %v721 = vmul.f32 %v712, %v717
          %722 = vrot.lane.b32.xlu0 %v666, 1
          %v723 = vpop.permute.xlu0 %722
          %724 = vrot.lane.b32.xlu0 %v667, 1
          %v725 = vpop.permute.xlu0 %724
          %v726 = vsel %vm474, %v723, %v725
          %v727 = vsel %vm474, %v725, %v723
          %v728 = vld [vmem:[%s477] ss:$8 sm:$0x3]
          %v730 = vperm.slane %v728, 0
          %v731 = vperm.slane %v728, 1
          %v734 = vmul.f32 %v727, %v730
          %v735 = vmul.f32 %v726, %v731
          %736 = vrot.lane.b32.xlu0 %v666, 127
          %v737 = vpop.permute.xlu0 %736
          %738 = vrot.lane.b32.xlu0 %v667, 127
          %v739 = vpop.permute.xlu0 %738
          %v740 = vsel %vm490, %v737, %v739
          %v741 = vsel %vm490, %v739, %v737
          %v742 = vld [vmem:[%s493] ss:$8 sm:$0x3]
          %v744 = vperm.slane %v742, 0
          %v745 = vperm.slane %v742, 1
          %v748 = vmul.f32 %v740, %v744
          %v749 = vmul.f32 %v741, %v745
          %750 = vrot.lane.b32.xlu0 %v666, 113
          %v751 = vpop.permute.xlu0 %750
          %752 = vrot.lane.b32.xlu0 %v667, 113
          %v753 = vpop.permute.xlu0 %752
          %v754 = vsel %vm506, %v751, %v753
          %v755 = vsel %vm506, %v753, %v751
          %v756 = vld [vmem:[%s509] ss:$8 sm:$0x3]
          %v758 = vperm.slane %v756, 0
          %v759 = vperm.slane %v756, 1
          %v762 = vmul.f32 %v754, %v758
          %v763 = vmul.f32 %v755, %v759
          %764 = vrot.lane.b32.xlu0 %v666, 112
          %v765 = vpop.permute.xlu0 %764
          %766 = vrot.lane.b32.xlu0 %v667, 112
          %v767 = vpop.permute.xlu0 %766
          %v768 = vsel %vm522, %v765, %v767
          %v769 = vsel %vm522, %v767, %v765
          %v770 = vld [vmem:[%s525] ss:$8 sm:$0x3]
          %v772 = vperm.slane %v770, 0
          %v773 = vperm.slane %v770, 1
          %v776 = vmul.f32 %v768, %v772
          %v777 = vmul.f32 %v769, %v773
          %778 = vrot.lane.b32.xlu0 %v666, 111
          %v779 = vpop.permute.xlu0 %778
          %780 = vrot.lane.b32.xlu0 %v667, 111
          %v781 = vpop.permute.xlu0 %780
          %v782 = vsel %vm538, %v779, %v781
          %v783 = vsel %vm538, %v781, %v779
          %v784 = vld [vmem:[%s541] ss:$8 sm:$0x3]
          %v786 = vperm.slane %v784, 0
          %v787 = vperm.slane %v784, 1
          %v790 = vmul.f32 %v782, %v786
          %v791 = vmul.f32 %v783, %v787
          %v792 = vpack.c.bf16 %v706, %v692
          %v793 = vpack.c.bf16 %v707, %v693
          %v794 = vpack.c.bf16 %v734, %v720
          %v795 = vpack.c.bf16 %v735, %v721
          %v796 = vpack.c.bf16 %v748, %v666
          %v797 = vpack.c.bf16 %v749, %v667
          %v798 = vpack.c.bf16 %v776, %v762
          %v799 = vpack.c.bf16 %v777, %v763
          %v800 = vpack.c.bf16 %v790, %v790
          %v801 = vpack.c.bf16 %v791, %v791
          %v806 = vunpack.c.l.b16 %v676
          %v807 = vunpack.c.l.b16 %v677
          %v808 = vunpack.c.l.b16 %v678
          %v809 = vunpack.c.l.b16 %v679
          %v810 = vpack.c.b16 %v807, %v806
          %v811 = vpack.c.b16 %v809, %v808
          %v813 = vsel %vm570, %v810, 0
          %v816 = vsel %vm570, %v811, 0
          %v819 = vsel %vm577, %v800, 0
          %v822 = vsel %vm577, %v801, 0
          %824 = vmatpush.bf16.msra.mxu0 0
          %825 = vmatpush.bf16.msra.mxu0 0
          %826 = vmatpush.bf16.msra.mxu0 0
          %827 = vmatpush.bf16.msra.mxu0 %v819
          %828 = vmatpush.bf16.msra.mxu0 %v798
          %829 = vmatpush.bf16.msra.mxu0 %v796
          %830 = vmatpush.bf16.msra.mxu0 %v794
          %831 = vmatpush.bf16.msra.mxu0 %v792
          %832 = vmatmul.bf16.gmra.mxu0 %v813
          %v833 = vpop.f32.mrf.mxu0
          %v834 = vadd.f32 0.0, %v833
          %v835 = vpop.f32.mrf.mxu0
          %v836 = vadd.f32 0.0, %v835
          %837 = vmatmul.bf16.gmra.mxu0 %v816
          %v838 = vpop.f32.mrf.mxu0
          %v839 = vadd.f32 0.0, %v838
          %v840 = vpop.f32.mrf.mxu0
          %v841 = vadd.f32 0.0, %v840
          %842 = vdwg.mxu0
          %843 = vmatpush.bf16.msra.mxu0 0
          %844 = vmatpush.bf16.msra.mxu0 0
          %845 = vmatpush.bf16.msra.mxu0 0
          %846 = vmatpush.bf16.msra.mxu0 %v822
          %847 = vmatpush.bf16.msra.mxu0 %v799
          %848 = vmatpush.bf16.msra.mxu0 %v797
          %849 = vmatpush.bf16.msra.mxu0 %v795
          %850 = vmatpush.bf16.msra.mxu0 %v793
          %851 = vmatmul.bf16.gmra.mxu0 %v813
          %v852 = vpop.f32.mrf.mxu0
          %v853 = vadd.f32 0.0, %v852
          %v854 = vpop.f32.mrf.mxu0
          %v855 = vadd.f32 0.0, %v854
          %856 = vmatmul.bf16.gmra.mxu0 %v816
          %v857 = vpop.f32.mrf.mxu0
          %v858 = vadd.f32 0.0, %v857
          %v859 = vpop.f32.mrf.mxu0
          %v860 = vadd.f32 0.0, %v859
          %861 = vdwg.mxu0
          %v862 = vadd.f32 %v668, %v834
          %v863 = vadd.f32 %v669, %v853
          %v864 = vadd.f32 %v670, %v836
          %v865 = vadd.f32 %v671, %v855
          %v866 = vadd.f32 %v672, %v839
          %v867 = vadd.f32 %v673, %v858
          %v868 = vadd.f32 %v674, %v841
          %v869 = vadd.f32 %v675, %v860
          %870 = vst [vmem:[#allocation3] sm:$0xff] %v862
          %871 = vst [vmem:[#allocation3 + $0x8] sm:$0xff] %v863
          %872 = vst [vmem:[#allocation3 + $0x10] sm:$0xff] %v864
          %873 = vst [vmem:[#allocation3 + $0x18] sm:$0xff] %v865
          %874 = vst [vmem:[#allocation3 + $0x20] sm:$0xff] %v866
          %875 = vst [vmem:[#allocation3 + $0x28] sm:$0xff] %v867
          %876 = vst [vmem:[#allocation3 + $0x30] sm:$0xff] %v868
          %877 = vst [vmem:[#allocation3 + $0x38] sm:$0xff] %v869
        $region56: #{forward.2} parent=43 // pred_fallthru
          _
        %v878 = vld [vmem:[#allocation3] sm:$0xff]
        %v879 = vld [vmem:[#allocation3 + $0x8] sm:$0xff]
        %v880 = vld [vmem:[#allocation3 + $0x10] sm:$0xff]
        %v881 = vld [vmem:[#allocation3 + $0x18] sm:$0xff]
        %v882 = vld [vmem:[#allocation3 + $0x20] sm:$0xff]
        %v883 = vld [vmem:[#allocation3 + $0x28] sm:$0xff]
        %v884 = vld [vmem:[#allocation3 + $0x30] sm:$0xff]
        %v885 = vld [vmem:[#allocation3 + $0x38] sm:$0xff]
        %v886 = vxor.u32 %v878, 2147483648
        %v887 = vxor.u32 %v879, 2147483648
        %v888 = vmul.f32 %v886, 1.442695
        %v889 = vpow.pop %v888
        %v890 = vmul.f32 %v887, 1.442695
        %v891 = vpow.pop %v890
        %v892 = vadd.f32 %v889, 1.0
        %v893 = vadd.f32 %v891, 1.0
        %v894 = vrcp.pop %v892
        %v895 = vmul.f32 %v892, %v894
        %v896 = vsub.f32 1.0, %v895
        %v897 = vmul.f32 %v894, %v896
        %v898 = vadd.f32 %v894, %v897
        %vm899 = vweird.f32 %v892
        %vm900 = vweird.f32 %v894
        %vm901 = vmor %vm899, %vm900
        %v902 = vsel %vm901, %v894, %v898
        %v903 = vand.u32 2147483647, %v892
        %vm904 = vcmp.eq.f32.partialorder %v903, 8.507059e+37
        %v905 = vand.u32 %v892, 2147483648
        %v906 = vor.u32 1.1754944e-38, %v905
        %v907 = vsel %vm904, %v906, %v902
        %v908 = vmul.f32 1.0, %v907
        %v909 = vrcp.pop %v893
        %v910 = vmul.f32 %v893, %v909
        %v911 = vsub.f32 1.0, %v910
        %v912 = vmul.f32 %v909, %v911
        %v913 = vadd.f32 %v909, %v912
        %vm914 = vweird.f32 %v893
        %vm915 = vweird.f32 %v909
        %vm916 = vmor %vm914, %vm915
        %v917 = vsel %vm916, %v909, %v913
        %v918 = vand.u32 2147483647, %v893
        %vm919 = vcmp.eq.f32.partialorder %v918, 8.507059e+37
        %v920 = vand.u32 %v893, 2147483648
        %v921 = vor.u32 1.1754944e-38, %v920
        %v922 = vsel %vm919, %v921, %v917
        %v923 = vmul.f32 1.0, %v922
        %v924 = vxor.u32 %v880, 2147483648
        %v925 = vxor.u32 %v881, 2147483648
        %v926 = vmul.f32 %v924, 1.442695
        %v927 = vpow.pop %v926
        %v928 = vmul.f32 %v925, 1.442695
        %v929 = vpow.pop %v928
        %v930 = vadd.f32 %v927, 1.0
        %v931 = vadd.f32 %v929, 1.0
        %v932 = vrcp.pop %v930
        %v933 = vmul.f32 %v930, %v932
        %v934 = vsub.f32 1.0, %v933
        %v935 = vmul.f32 %v932, %v934
        %v936 = vadd.f32 %v932, %v935
        %vm937 = vweird.f32 %v930
        %vm938 = vweird.f32 %v932
        %vm939 = vmor %vm937, %vm938
        %v940 = vsel %vm939, %v932, %v936
        %v941 = vand.u32 2147483647, %v930
        %vm942 = vcmp.eq.f32.partialorder %v941, 8.507059e+37
        %v943 = vand.u32 %v930, 2147483648
        %v944 = vor.u32 1.1754944e-38, %v943
        %v945 = vsel %vm942, %v944, %v940
        %v946 = vmul.f32 1.0, %v945
        %v947 = vrcp.pop %v931
        %v948 = vmul.f32 %v931, %v947
        %v949 = vsub.f32 1.0, %v948
        %v950 = vmul.f32 %v947, %v949
        %v951 = vadd.f32 %v947, %v950
        %vm952 = vweird.f32 %v931
        %vm953 = vweird.f32 %v947
        %vm954 = vmor %vm952, %vm953
        %v955 = vsel %vm954, %v947, %v951
        %v956 = vand.u32 2147483647, %v931
        %vm957 = vcmp.eq.f32.partialorder %v956, 8.507059e+37
        %v958 = vand.u32 %v931, 2147483648
        %v959 = vor.u32 1.1754944e-38, %v958
        %v960 = vsel %vm957, %v959, %v955
        %v961 = vmul.f32 1.0, %v960
        %v962 = vxor.u32 %v882, 2147483648
        %v963 = vxor.u32 %v883, 2147483648
        %v964 = vmul.f32 %v962, 1.442695
        %v965 = vpow.pop %v964
        %v966 = vmul.f32 %v963, 1.442695
        %v967 = vpow.pop %v966
        %v968 = vadd.f32 %v965, 1.0
        %v969 = vadd.f32 %v967, 1.0
        %v970 = vrcp.pop %v968
        %v971 = vmul.f32 %v968, %v970
        %v972 = vsub.f32 1.0, %v971
        %v973 = vmul.f32 %v970, %v972
        %v974 = vadd.f32 %v970, %v973
        %vm975 = vweird.f32 %v968
        %vm976 = vweird.f32 %v970
        %vm977 = vmor %vm975, %vm976
        %v978 = vsel %vm977, %v970, %v974
        %v979 = vand.u32 2147483647, %v968
        %vm980 = vcmp.eq.f32.partialorder %v979, 8.507059e+37
        %v981 = vand.u32 %v968, 2147483648
        %v982 = vor.u32 1.1754944e-38, %v981
        %v983 = vsel %vm980, %v982, %v978
        %v984 = vmul.f32 1.0, %v983
        %v985 = vrcp.pop %v969
        %v986 = vmul.f32 %v969, %v985
        %v987 = vsub.f32 1.0, %v986
        %v988 = vmul.f32 %v985, %v987
        %v989 = vadd.f32 %v985, %v988
        %vm990 = vweird.f32 %v969
        %vm991 = vweird.f32 %v985
        %vm992 = vmor %vm990, %vm991
        %v993 = vsel %vm992, %v985, %v989
        %v994 = vand.u32 2147483647, %v969
        %vm995 = vcmp.eq.f32.partialorder %v994, 8.507059e+37
        %v996 = vand.u32 %v969, 2147483648
        %v997 = vor.u32 1.1754944e-38, %v996
        %v998 = vsel %vm995, %v997, %v993
        %v999 = vmul.f32 1.0, %v998
        %v1000 = vtanh.pop %v884
        %v1001 = vtanh.pop %v885
        %v1002 = vld [vmem:[#allocation2] sm:$0xff]
        %v1003 = vld [vmem:[#allocation2 + $0x8] sm:$0xff]
        %v1004 = vmul.f32 %v946, %v1002
        %v1005 = vmul.f32 %v961, %v1003
        %v1006 = vmul.f32 %v908, %v1000
        %v1007 = vmul.f32 %v923, %v1001
        %v1008 = vadd.f32 %v1004, %v1006
        %v1009 = vadd.f32 %v1005, %v1007
        %v1010 = vtanh.pop %v1008
        %v1011 = vtanh.pop %v1009
        %v1012 = vmul.f32 %v984, %v1010
        %v1013 = vmul.f32 %v999, %v1011
        %1014 = vst [vmem:[#allocation2] sm:$0xff] %v1008
        %1015 = vst [vmem:[#allocation2 + $0x8] sm:$0xff] %v1009
        %1016 = vst [vmem:[%s410] sm:$0xff] %v1012
        %1017 = vst [vmem:[%s410 + $0x8] sm:$0xff] %v1013
        %p1018 = scmp.eq.s32.totalorder %s24, 4
        %s1019 = ssub.s32 %s386, 1
        %p1020 = scmp.eq.s32.totalorder %s25, %s1019
        %p1021 = pnand %p1018, %p1020
        %p1022 = pneg %p1021
        // Predicated region
        $region57: #{forward.2} parent=43 // pred_check
          _
        $region58: #{forward.2} parent=43 // pred_check_branch
          %1024 = sbr.rel (%p1021) target = $region60
        $region59: #{forward.2} parent=43 // pred_region
          %1025 = vst [vmem:[%s383] sm:$0xff] %v1012
          %1026 = vst [vmem:[%s383 + $0x8] sm:$0xff] %v1013
        $region60: #{forward.2} parent=43 // pred_fallthru
          _
      $region44: #{forward.2} parent=39 // pred_fallthru
        _
      %p1027 = scmp.lt.s32.totalorder %s23, 1
      %s1028 = scalar_select %p1027, %s23, 1
      %p1029 = scmp.lt.s32.totalorder %s22, 1
      %s1030 = scalar_select %p1029, %s22, 1
      %s1031 = smul.addr %s1030, 2
      %s1032 = smul.addr %s1028, 4
      %s1033 = sadd.s32 %s1031, %s1032
      %s1034 = smul.addr %s1033, 8
      %s1035 = scalar_lea.vmem %s5, %s1034
      // Predicated region
      $region61: #{forward.2} parent=39 // pred_check
        %p1036 = pneg %p203
      $region62: #{forward.2} parent=39 // pred_check_branch
        %1038 = sbr.rel (%p1036) target = $region64
      $region63: #{forward.2} parent=39 // pred_region
        _
      $region64: #{forward.2} parent=39 // pred_fallthru
        _
    $region40: #{forward.2} parent=5 // pred_fallthru
      _
    %p1039 = scmp.le.s32.totalorder 2, %s11
    // Predicated region
    $region65: #{forward.2} parent=5 // pred_check
      %p1040 = pneg %p1039
    $region66: #{forward.2} parent=5 // pred_check_branch
      %1042 = sbr.rel (%p1040) target = $region68
    $region67: #{forward.2} parent=5 // pred_region
      %s1043 = ssub.s32 %s11, 2
      // Predicated region
      $region69: #{forward.2} parent=67 // pred_check
        %p1044 = pneg %p209
      $region70: #{forward.2} parent=67 // pred_check_branch
        %1046 = sbr.rel (%p1044) target = $region72
      $region71: #{forward.2} parent=67 // pred_region
        %p1047 = scmp.lt.s32.totalorder %s27, 1
        %s1048 = scalar_select %p1047, %s27, 1
        %p1049 = scmp.lt.s32.totalorder %s26, 1
        %s1050 = scalar_select %p1049, %s26, 1
        %s1051 = smul.addr %s1050, 2
        %s1052 = smul.addr %s1048, 4
        %s1053 = sadd.s32 %s1051, %s1052
        %s1054 = smul.addr %s1053, 8
        %s1055 = scalar_lea.vmem %s5, %s1054
      $region72: #{forward.2} parent=67 // pred_fallthru
        _
    $region68: #{forward.2} parent=5 // pred_fallthru
      _
  $region6: #{forward.2} parent=0 // loop_footer
    %s15 = sadd.s32 1, %s11
  $region7: #{forward.2} parent=0 // loop_footer_branch
    %10 = sbr.rel target = $region3
  $region8: #{forward.2} parent=0 // loop_exit
    _

// kernel: forward.3
$region0: #{forward.3}
  #allocation0 [shape = 'u32[]', space=smem, size = 0x4, offset = 0x4, fixed_abs, tag = 'smem constant byte address 0x4 - core index']
  #allocation1 [shape = 'u32[72,128]{1,0:T(1,128)}', space=vmem, size = 0x9000, scoped, tag = 'internal scratch']
  #allocation2 [shape = 'f32[1,1]{1,0:T(1,128)S(1)}', space=vmem, size = 0x200, scoped, tag = 'scoped memory for forward.3']
  %s0 = inlined_call_operand.vmem [shape: f32[2,16,256], index: 0, kind: input, shape index: {}]
  %s1 = inlined_call_operand.vmem [shape: f32[2,1,256], index: 1, kind: input, shape index: {}]
  %s2 = inlined_call_operand.vmem [shape: f32[9,256], index: 2, kind: input, shape index: {}]
  %s3 = inlined_call_operand.vmem [shape: f32[25,256], index: 3, kind: input, shape index: {}]
  %s4 = inlined_call_operand.vmem [shape: bf16[3,16,3], index: 4, kind: input, shape index: {}]
  %s5 = inlined_call_operand.vmem [shape: f32[16,1], index: 5, kind: input, shape index: {}]
  %s6 = inlined_call_operand.vmem [shape: bf16[3,16,48], index: 6, kind: input, shape index: {}]
  %s7 = inlined_call_operand.vmem [shape: f32[16,1], index: 7, kind: input, shape index: {}]
  %s8 = inlined_call_operand.vmem [shape: bf16[5,8,160], index: 8, kind: input, shape index: {}]
  %s9 = inlined_call_operand.vmem [shape: f32[8,1], index: 9, kind: input, shape index: {}]
  %s10 = inlined_call_operand.vmem [shape: bf16[5,4,40], index: 10, kind: input, shape index: {}]
  %s11 = inlined_call_operand.vmem [shape: f32[4,1], index: 11, kind: input, shape index: {}]
  %s12 = inlined_call_operand.vmem [shape: bf16[5,1,20], index: 12, kind: input, shape index: {}]
  %s13 = inlined_call_operand.<no memory space> [shape: f32[1,1], index: 13, kind: input, shape index: {}]
  %s14 = inlined_call_operand.vmem [shape: f32[2], index: 14, kind: input, shape index: {}]
  %s15 = inlined_call_operand.vmem [shape: f32[2,1,256], index: 15, kind: output, shape index: {}]
  %s16 = sld [smem:[#allocation0]]
  $region97: #{forward.3} parent=0
    _
  %s18 = ssub.s32 1, %s16
  %s19 = scalar_select 0, %s18, %s16
  %v20 = vstv %s13
  %21 = vst [vmem:[#allocation2] sm:$0x1] %v20
  $region1: #{forward.3} parent=0
    #allocation3 [shape = 'u8[512]{0}', space=smem, size = 0x200, scoped, tag = 'input window, operand 14, single buffered']
    #allocation4 [shape = 's32[2]{0}', space=sflag, size = 0x8, scoped, tag = 'scoped memory for forward.3']
    %22 = vsyncpa [#allocation4], 0
    loop: start=0, step=1, limit=4
    $region2: #{forward.3} parent=1 // loop_pre_header
      _
    $region3: #{forward.3} parent=1 // loop_header
      %s24 = sphi 0, %s28
      %p25 = scmp.ge.s32.totalorder %s24, 4
      %s34 = sphi 0, %s36
      %s37 = sphi 0, %s34
      %s38 = sphi 0, %s37
      %s54 = sphi 0, %s38
      %s60 = sphi 0, %s62
      %s63 = sphi 0, %s60
      %s64 = sphi 0, %s63
      %s80 = sphi 0, %s64
      %s84 = sphi 0, %s84
      %s86 = sphi 0, %s84
      %s87 = sphi 0, %s86
      %s101 = sphi 0, %s87
      %s105 = sphi 0, %s105
      %s107 = sphi 0, %s105
      %s108 = sphi 0, %s107
      %s122 = sphi 0, %s108
      %s126 = sphi 0, %s126
      %s128 = sphi 0, %s126
      %s129 = sphi 0, %s128
      %s143 = sphi 0, %s129
      %s147 = sphi 0, %s147
      %s149 = sphi 0, %s147
      %s150 = sphi 0, %s149
      %s164 = sphi 0, %s150
      %s168 = sphi 0, %s168
      %s170 = sphi 0, %s168
      %s171 = sphi 0, %s170
      %s185 = sphi 0, %s171
      %s189 = sphi 0, %s189
      %s191 = sphi 0, %s189
      %s192 = sphi 0, %s191
      %s206 = sphi 0, %s192
      %s210 = sphi 0, %s210
      %s212 = sphi 0, %s210
      %s213 = sphi 0, %s212
      %s227 = sphi 0, %s213
      %s231 = sphi 0, %s231
      %s233 = sphi 0, %s231
      %s234 = sphi 0, %s233
      %s248 = sphi 0, %s234
      %s252 = sphi 0, %s252
      %s254 = sphi 0, %s252
      %s255 = sphi 0, %s254
      %s269 = sphi 0, %s255
      %s273 = sphi 0, %s273
      %s275 = sphi 0, %s273
      %s276 = sphi 0, %s275
      %s290 = sphi 0, %s276
      %s294 = sphi 0, %s294
      %s296 = sphi 0, %s294
      %s297 = sphi 0, %s296
      %s311 = sphi 0, %s297
      %s315 = sphi 0, %s315
      %s317 = sphi 0, %s315
      %s318 = sphi 0, %s317
      %s332 = sphi 0, %s318
      %s336 = sphi 0, %s336
      %s338 = sphi 0, %s336
      %s339 = sphi 0, %s338
      %s353 = sphi 0, %s339
      %s359 = sphi 0, %s361
      %s362 = sphi 0, %s359
      %s363 = sphi 0, %s362
      %s379 = sphi 0, %s363
    $region4: #{forward.3} parent=1 // loop_header_branch
      %27 = sbr.rel (%p25) target = $region8
    $region5: #{forward.3} parent=1 // loop_body
      %s29 = ssub.s32 %s24, 1
      %s30 = ssub.s32 %s24, 2
      %s31 = sadd.s32 %s24, 1
      %s32 = ssub.s32 %s24, %s31
      %p33 = scmp.eq.s32.totalorder %s32, 0
      %s35 = sadd.s32 %s34, 1
      %s36 = scalar_select %p33, %s34, %s35
      %p39 = pneg %p33
      %p40 = scmp.eq.s32.totalorder %s24, 1
      %p41 = por %p39, %p40
      %p42 = scmp.ne.s32.totalorder %s34, %s37
      %p43 = scmp.eq.s32.totalorder %s24, 0
      %p44 = por %p42, %p43
      %p45 = scmp.ne.s32.totalorder %s34, %s37
      %p46 = scmp.eq.s32.totalorder %s29, 1
      %p47 = por %p45, %p46
      %p48 = scmp.ne.s32.totalorder %s37, %s38
      %p49 = scmp.eq.s32.totalorder %s29, 0
      %p50 = por %p48, %p49
      %p51 = scmp.ne.s32.totalorder %s37, %s38
      %p52 = scmp.eq.s32.totalorder %s30, 1
      %p53 = por %p51, %p52
      %p55 = scmp.ne.s32.totalorder %s38, %s54
      %p56 = scmp.eq.s32.totalorder %s30, 0
      %p57 = por %p55, %p56
      %s58 = ssub.s32 %s24, %s31
      %p59 = scmp.eq.s32.totalorder %s58, 0
      %s61 = sadd.s32 %s60, 1
      %s62 = scalar_select %p59, %s60, %s61
      %p65 = pneg %p59
      %p66 = scmp.eq.s32.totalorder %s24, 1
      %p67 = por %p65, %p66
      %p68 = scmp.ne.s32.totalorder %s60, %s63
      %p69 = scmp.eq.s32.totalorder %s24, 0
      %p70 = por %p68, %p69
      %p71 = scmp.ne.s32.totalorder %s60, %s63
      %p72 = scmp.eq.s32.totalorder %s29, 1
      %p73 = por %p71, %p72
      %p74 = scmp.ne.s32.totalorder %s63, %s64
      %p75 = scmp.eq.s32.totalorder %s29, 0
      %p76 = por %p74, %p75
      %p77 = scmp.ne.s32.totalorder %s63, %s64
      %p78 = scmp.eq.s32.totalorder %s30, 1
      %p79 = por %p77, %p78
      %p81 = scmp.ne.s32.totalorder %s64, %s80
      %p82 = scmp.eq.s32.totalorder %s30, 0
      %p83 = por %p81, %p82
      %s85 = sadd.s32 %s84, 1
      %p88 = scmp.eq.s32.totalorder %s24, 1
      %p89 = scmp.ne.s32.totalorder %s84, %s86
      %p90 = scmp.eq.s32.totalorder %s24, 0
      %p91 = por %p89, %p90
      %p92 = scmp.ne.s32.totalorder %s84, %s86
      %p93 = scmp.eq.s32.totalorder %s29, 1
      %p94 = por %p92, %p93
      %p95 = scmp.ne.s32.totalorder %s86, %s87
      %p96 = scmp.eq.s32.totalorder %s29, 0
      %p97 = por %p95, %p96
      %p98 = scmp.ne.s32.totalorder %s86, %s87
      %p99 = scmp.eq.s32.totalorder %s30, 1
      %p100 = por %p98, %p99
      %p102 = scmp.ne.s32.totalorder %s87, %s101
      %p103 = scmp.eq.s32.totalorder %s30, 0
      %p104 = por %p102, %p103
      %s106 = sadd.s32 %s105, 1
      %p109 = scmp.eq.s32.totalorder %s24, 1
      %p110 = scmp.ne.s32.totalorder %s105, %s107
      %p111 = scmp.eq.s32.totalorder %s24, 0
      %p112 = por %p110, %p111
      %p113 = scmp.ne.s32.totalorder %s105, %s107
      %p114 = scmp.eq.s32.totalorder %s29, 1
      %p115 = por %p113, %p114
      %p116 = scmp.ne.s32.totalorder %s107, %s108
      %p117 = scmp.eq.s32.totalorder %s29, 0
      %p118 = por %p116, %p117
      %p119 = scmp.ne.s32.totalorder %s107, %s108
      %p120 = scmp.eq.s32.totalorder %s30, 1
      %p121 = por %p119, %p120
      %p123 = scmp.ne.s32.totalorder %s108, %s122
      %p124 = scmp.eq.s32.totalorder %s30, 0
      %p125 = por %p123, %p124
      %s127 = sadd.s32 %s126, 1
      %p130 = scmp.eq.s32.totalorder %s24, 1
      %p131 = scmp.ne.s32.totalorder %s126, %s128
      %p132 = scmp.eq.s32.totalorder %s24, 0
      %p133 = por %p131, %p132
      %p134 = scmp.ne.s32.totalorder %s126, %s128
      %p135 = scmp.eq.s32.totalorder %s29, 1
      %p136 = por %p134, %p135
      %p137 = scmp.ne.s32.totalorder %s128, %s129
      %p138 = scmp.eq.s32.totalorder %s29, 0
      %p139 = por %p137, %p138
      %p140 = scmp.ne.s32.totalorder %s128, %s129
      %p141 = scmp.eq.s32.totalorder %s30, 1
      %p142 = por %p140, %p141
      %p144 = scmp.ne.s32.totalorder %s129, %s143
      %p145 = scmp.eq.s32.totalorder %s30, 0
      %p146 = por %p144, %p145
      %s148 = sadd.s32 %s147, 1
      %p151 = scmp.eq.s32.totalorder %s24, 1
      %p152 = scmp.ne.s32.totalorder %s147, %s149
      %p153 = scmp.eq.s32.totalorder %s24, 0
      %p154 = por %p152, %p153
      %p155 = scmp.ne.s32.totalorder %s147, %s149
      %p156 = scmp.eq.s32.totalorder %s29, 1
      %p157 = por %p155, %p156
      %p158 = scmp.ne.s32.totalorder %s149, %s150
      %p159 = scmp.eq.s32.totalorder %s29, 0
      %p160 = por %p158, %p159
      %p161 = scmp.ne.s32.totalorder %s149, %s150
      %p162 = scmp.eq.s32.totalorder %s30, 1
      %p163 = por %p161, %p162
      %p165 = scmp.ne.s32.totalorder %s150, %s164
      %p166 = scmp.eq.s32.totalorder %s30, 0
      %p167 = por %p165, %p166
      %s169 = sadd.s32 %s168, 1
      %p172 = scmp.eq.s32.totalorder %s24, 1
      %p173 = scmp.ne.s32.totalorder %s168, %s170
      %p174 = scmp.eq.s32.totalorder %s24, 0
      %p175 = por %p173, %p174
      %p176 = scmp.ne.s32.totalorder %s168, %s170
      %p177 = scmp.eq.s32.totalorder %s29, 1
      %p178 = por %p176, %p177
      %p179 = scmp.ne.s32.totalorder %s170, %s171
      %p180 = scmp.eq.s32.totalorder %s29, 0
      %p181 = por %p179, %p180
      %p182 = scmp.ne.s32.totalorder %s170, %s171
      %p183 = scmp.eq.s32.totalorder %s30, 1
      %p184 = por %p182, %p183
      %p186 = scmp.ne.s32.totalorder %s171, %s185
      %p187 = scmp.eq.s32.totalorder %s30, 0
      %p188 = por %p186, %p187
      %s190 = sadd.s32 %s189, 1
      %p193 = scmp.eq.s32.totalorder %s24, 1
      %p194 = scmp.ne.s32.totalorder %s189, %s191
      %p195 = scmp.eq.s32.totalorder %s24, 0
      %p196 = por %p194, %p195
      %p197 = scmp.ne.s32.totalorder %s189, %s191
      %p198 = scmp.eq.s32.totalorder %s29, 1
      %p199 = por %p197, %p198
      %p200 = scmp.ne.s32.totalorder %s191, %s192
      %p201 = scmp.eq.s32.totalorder %s29, 0
      %p202 = por %p200, %p201
      %p203 = scmp.ne.s32.totalorder %s191, %s192
      %p204 = scmp.eq.s32.totalorder %s30, 1
      %p205 = por %p203, %p204
      %p207 = scmp.ne.s32.totalorder %s192, %s206
      %p208 = scmp.eq.s32.totalorder %s30, 0
      %p209 = por %p207, %p208
      %s211 = sadd.s32 %s210, 1
      %p214 = scmp.eq.s32.totalorder %s24, 1
      %p215 = scmp.ne.s32.totalorder %s210, %s212
      %p216 = scmp.eq.s32.totalorder %s24, 0
      %p217 = por %p215, %p216
      %p218 = scmp.ne.s32.totalorder %s210, %s212
      %p219 = scmp.eq.s32.totalorder %s29, 1
      %p220 = por %p218, %p219
      %p221 = scmp.ne.s32.totalorder %s212, %s213
      %p222 = scmp.eq.s32.totalorder %s29, 0
      %p223 = por %p221, %p222
      %p224 = scmp.ne.s32.totalorder %s212, %s213
      %p225 = scmp.eq.s32.totalorder %s30, 1
      %p226 = por %p224, %p225
      %p228 = scmp.ne.s32.totalorder %s213, %s227
      %p229 = scmp.eq.s32.totalorder %s30, 0
      %p230 = por %p228, %p229
      %s232 = sadd.s32 %s231, 1
      %p235 = scmp.eq.s32.totalorder %s24, 1
      %p236 = scmp.ne.s32.totalorder %s231, %s233
      %p237 = scmp.eq.s32.totalorder %s24, 0
      %p238 = por %p236, %p237
      %p239 = scmp.ne.s32.totalorder %s231, %s233
      %p240 = scmp.eq.s32.totalorder %s29, 1
      %p241 = por %p239, %p240
      %p242 = scmp.ne.s32.totalorder %s233, %s234
      %p243 = scmp.eq.s32.totalorder %s29, 0
      %p244 = por %p242, %p243
      %p245 = scmp.ne.s32.totalorder %s233, %s234
      %p246 = scmp.eq.s32.totalorder %s30, 1
      %p247 = por %p245, %p246
      %p249 = scmp.ne.s32.totalorder %s234, %s248
      %p250 = scmp.eq.s32.totalorder %s30, 0
      %p251 = por %p249, %p250
      %s253 = sadd.s32 %s252, 1
      %p256 = scmp.eq.s32.totalorder %s24, 1
      %p257 = scmp.ne.s32.totalorder %s252, %s254
      %p258 = scmp.eq.s32.totalorder %s24, 0
      %p259 = por %p257, %p258
      %p260 = scmp.ne.s32.totalorder %s252, %s254
      %p261 = scmp.eq.s32.totalorder %s29, 1
      %p262 = por %p260, %p261
      %p263 = scmp.ne.s32.totalorder %s254, %s255
      %p264 = scmp.eq.s32.totalorder %s29, 0
      %p265 = por %p263, %p264
      %p266 = scmp.ne.s32.totalorder %s254, %s255
      %p267 = scmp.eq.s32.totalorder %s30, 1
      %p268 = por %p266, %p267
      %p270 = scmp.ne.s32.totalorder %s255, %s269
      %p271 = scmp.eq.s32.totalorder %s30, 0
      %p272 = por %p270, %p271
      %s274 = sadd.s32 %s273, 1
      %p277 = scmp.eq.s32.totalorder %s24, 1
      %p278 = scmp.ne.s32.totalorder %s273, %s275
      %p279 = scmp.eq.s32.totalorder %s24, 0
      %p280 = por %p278, %p279
      %p281 = scmp.ne.s32.totalorder %s273, %s275
      %p282 = scmp.eq.s32.totalorder %s29, 1
      %p283 = por %p281, %p282
      %p284 = scmp.ne.s32.totalorder %s275, %s276
      %p285 = scmp.eq.s32.totalorder %s29, 0
      %p286 = por %p284, %p285
      %p287 = scmp.ne.s32.totalorder %s275, %s276
      %p288 = scmp.eq.s32.totalorder %s30, 1
      %p289 = por %p287, %p288
      %p291 = scmp.ne.s32.totalorder %s276, %s290
      %p292 = scmp.eq.s32.totalorder %s30, 0
      %p293 = por %p291, %p292
      %s295 = sadd.s32 %s294, 1
      %p298 = scmp.eq.s32.totalorder %s24, 1
      %p299 = scmp.ne.s32.totalorder %s294, %s296
      %p300 = scmp.eq.s32.totalorder %s24, 0
      %p301 = por %p299, %p300
      %p302 = scmp.ne.s32.totalorder %s294, %s296
      %p303 = scmp.eq.s32.totalorder %s29, 1
      %p304 = por %p302, %p303
      %p305 = scmp.ne.s32.totalorder %s296, %s297
      %p306 = scmp.eq.s32.totalorder %s29, 0
      %p307 = por %p305, %p306
      %p308 = scmp.ne.s32.totalorder %s296, %s297
      %p309 = scmp.eq.s32.totalorder %s30, 1
      %p310 = por %p308, %p309
      %p312 = scmp.ne.s32.totalorder %s297, %s311
      %p313 = scmp.eq.s32.totalorder %s30, 0
      %p314 = por %p312, %p313
      %s316 = sadd.s32 %s315, 1
      %p319 = scmp.eq.s32.totalorder %s24, 1
      %p320 = scmp.ne.s32.totalorder %s315, %s317
      %p321 = scmp.eq.s32.totalorder %s24, 0
      %p322 = por %p320, %p321
      %p323 = scmp.ne.s32.totalorder %s315, %s317
      %p324 = scmp.eq.s32.totalorder %s29, 1
      %p325 = por %p323, %p324
      %p326 = scmp.ne.s32.totalorder %s317, %s318
      %p327 = scmp.eq.s32.totalorder %s29, 0
      %p328 = por %p326, %p327
      %p329 = scmp.ne.s32.totalorder %s317, %s318
      %p330 = scmp.eq.s32.totalorder %s30, 1
      %p331 = por %p329, %p330
      %p333 = scmp.ne.s32.totalorder %s318, %s332
      %p334 = scmp.eq.s32.totalorder %s30, 0
      %p335 = por %p333, %p334
      %s337 = sadd.s32 %s336, 1
      %p340 = scmp.eq.s32.totalorder %s24, 1
      %p341 = scmp.ne.s32.totalorder %s336, %s338
      %p342 = scmp.eq.s32.totalorder %s24, 0
      %p343 = por %p341, %p342
      %p344 = scmp.ne.s32.totalorder %s336, %s338
      %p345 = scmp.eq.s32.totalorder %s29, 1
      %p346 = por %p344, %p345
      %p347 = scmp.ne.s32.totalorder %s338, %s339
      %p348 = scmp.eq.s32.totalorder %s29, 0
      %p349 = por %p347, %p348
      %p350 = scmp.ne.s32.totalorder %s338, %s339
      %p351 = scmp.eq.s32.totalorder %s30, 1
      %p352 = por %p350, %p351
      %p354 = scmp.ne.s32.totalorder %s339, %s353
      %p355 = scmp.eq.s32.totalorder %s30, 0
      %p356 = por %p354, %p355
      %s357 = ssub.s32 %s24, %s31
      %p358 = scmp.eq.s32.totalorder %s357, 0
      %s360 = sadd.s32 %s359, 1
      %s361 = scalar_select %p358, %s359, %s360
      %p364 = pneg %p358
      %p365 = scmp.eq.s32.totalorder %s24, 1
      %p366 = por %p364, %p365
      %p367 = scmp.ne.s32.totalorder %s359, %s362
      %p368 = scmp.eq.s32.totalorder %s24, 0
      %p369 = por %p367, %p368
      %p370 = scmp.ne.s32.totalorder %s359, %s362
      %p371 = scmp.eq.s32.totalorder %s29, 1
      %p372 = por %p370, %p371
      %p373 = scmp.ne.s32.totalorder %s362, %s363
      %p374 = scmp.eq.s32.totalorder %s29, 0
      %p375 = por %p373, %p374
      %p376 = scmp.ne.s32.totalorder %s362, %s363
      %p377 = scmp.eq.s32.totalorder %s30, 1
      %p378 = por %p376, %p377
      %p380 = scmp.ne.s32.totalorder %s363, %s379
      %p381 = scmp.eq.s32.totalorder %s30, 0
      %p382 = por %p380, %p381
      %p383 = scmp.le.s32.totalorder 1, %s24
      %p384 = scmp.lt.s32.totalorder %s24, 3
      %p385 = pnand %p383, %p384
      %p386 = pneg %p385
      // Predicated region
      $region9: #{forward.3} parent=5 // pred_check
        _
      $region10: #{forward.3} parent=5 // pred_check_branch
        %388 = sbr.rel (%p385) target = $region12
      $region11: #{forward.3} parent=5 // pred_region
        %s389 = ssub.s32 %s24, 1
        // Predicated region
        $region13: #{forward.3} parent=11 // pred_check
          %p390 = pneg %p97
        $region14: #{forward.3} parent=11 // pred_check_branch
          %392 = sbr.rel (%p390) target = $region16
        $region15: #{forward.3} parent=11 // pred_region
          _
        $region16: #{forward.3} parent=11 // pred_fallthru
          _
        // Predicated region
        $region17: #{forward.3} parent=11 // pred_check
          %p393 = pneg %p118
        $region18: #{forward.3} parent=11 // pred_check_branch
          %395 = sbr.rel (%p393) target = $region20
        $region19: #{forward.3} parent=11 // pred_region
          _
        $region20: #{forward.3} parent=11 // pred_fallthru
          _
        // Predicated region
        $region21: #{forward.3} parent=11 // pred_check
          %p396 = pneg %p139
        $region22: #{forward.3} parent=11 // pred_check_branch
          %398 = sbr.rel (%p396) target = $region24
        $region23: #{forward.3} parent=11 // pred_region
          _
        $region24: #{forward.3} parent=11 // pred_fallthru
          _
        // Predicated region
        $region25: #{forward.3} parent=11 // pred_check
          %p399 = pneg %p160
        $region26: #{forward.3} parent=11 // pred_check_branch
          %401 = sbr.rel (%p399) target = $region28
        $region27: #{forward.3} parent=11 // pred_region
          _
        $region28: #{forward.3} parent=11 // pred_fallthru
          _
        // Predicated region
        $region29: #{forward.3} parent=11 // pred_check
          %p402 = pneg %p181
        $region30: #{forward.3} parent=11 // pred_check_branch
          %404 = sbr.rel (%p402) target = $region32
        $region31: #{forward.3} parent=11 // pred_region
          _
        $region32: #{forward.3} parent=11 // pred_fallthru
          _
        // Predicated region
        $region33: #{forward.3} parent=11 // pred_check
          %p405 = pneg %p202
        $region34: #{forward.3} parent=11 // pred_check_branch
          %407 = sbr.rel (%p405) target = $region36
        $region35: #{forward.3} parent=11 // pred_region
          _
        $region36: #{forward.3} parent=11 // pred_fallthru
          _
        // Predicated region
        $region37: #{forward.3} parent=11 // pred_check
          %p408 = pneg %p223
        $region38: #{forward.3} parent=11 // pred_check_branch
          %410 = sbr.rel (%p408) target = $region40
        $region39: #{forward.3} parent=11 // pred_region
          _
        $region40: #{forward.3} parent=11 // pred_fallthru
          _
        // Predicated region
        $region41: #{forward.3} parent=11 // pred_check
          %p411 = pneg %p244
        $region42: #{forward.3} parent=11 // pred_check_branch
          %413 = sbr.rel (%p411) target = $region44
        $region43: #{forward.3} parent=11 // pred_region
          _
        $region44: #{forward.3} parent=11 // pred_fallthru
          _
        // Predicated region
        $region45: #{forward.3} parent=11 // pred_check
          %p414 = pneg %p265
        $region46: #{forward.3} parent=11 // pred_check_branch
          %416 = sbr.rel (%p414) target = $region48
        $region47: #{forward.3} parent=11 // pred_region
          _
        $region48: #{forward.3} parent=11 // pred_fallthru
          _
        // Predicated region
        $region49: #{forward.3} parent=11 // pred_check
          %p417 = pneg %p286
        $region50: #{forward.3} parent=11 // pred_check_branch
          %419 = sbr.rel (%p417) target = $region52
        $region51: #{forward.3} parent=11 // pred_region
          _
        $region52: #{forward.3} parent=11 // pred_fallthru
          _
        // Predicated region
        $region53: #{forward.3} parent=11 // pred_check
          %p420 = pneg %p307
        $region54: #{forward.3} parent=11 // pred_check_branch
          %422 = sbr.rel (%p420) target = $region56
        $region55: #{forward.3} parent=11 // pred_region
          _
        $region56: #{forward.3} parent=11 // pred_fallthru
          _
        // Predicated region
        $region57: #{forward.3} parent=11 // pred_check
          %p423 = pneg %p328
        $region58: #{forward.3} parent=11 // pred_check_branch
          %425 = sbr.rel (%p423) target = $region60
        $region59: #{forward.3} parent=11 // pred_region
          _
        $region60: #{forward.3} parent=11 // pred_fallthru
          _
        // Predicated region
        $region61: #{forward.3} parent=11 // pred_check
          %p426 = pneg %p349
        $region62: #{forward.3} parent=11 // pred_check_branch
          %428 = sbr.rel (%p426) target = $region64
        $region63: #{forward.3} parent=11 // pred_region
          %430 = vsyncadd [#allocation4], 0
          %s432 = sshll.u32 %s14, 4
          %s433 = int_to_ptr.vmem [resolvable:$true] %s432
          %435 = dma.vmem_to_smem %s433, 16, [#allocation3], [#allocation4]
        $region64: #{forward.3} parent=11 // pred_fallthru
          _
      $region12: #{forward.3} parent=5 // pred_fallthru
        _
      %p436 = scmp.lt.s32.totalorder %s24, 2
      // Predicated region
      $region65: #{forward.3} parent=5 // pred_check
        %p437 = pneg %p436
      $region66: #{forward.3} parent=5 // pred_check_branch
        %439 = sbr.rel (%p437) target = $region68
      $region67: #{forward.3} parent=5 // pred_region
        // Predicated region
        $region69: #{forward.3} parent=67 // pred_check
          %p440 = pneg %p44
        $region70: #{forward.3} parent=67 // pred_check_branch
          %442 = sbr.rel (%p440) target = $region72
        $region71: #{forward.3} parent=67 // pred_region
          %p443 = scmp.lt.s32.totalorder %s24, 1
          %s444 = scalar_select %p443, %s24, 1
          %s445 = smul.addr %s444, 4
          %s446 = smul.addr %s445, 8
          %s447 = scalar_lea.vmem %s0, %s446
        $region72: #{forward.3} parent=67 // pred_fallthru
          _
        // Predicated region
        $region73: #{forward.3} parent=67 // pred_check
          %p448 = pneg %p70
        $region74: #{forward.3} parent=67 // pred_check_branch
          %450 = sbr.rel (%p448) target = $region76
        $region75: #{forward.3} parent=67 // pred_region
          %p451 = scmp.lt.s32.totalorder %s24, 1
          %s452 = scalar_select %p451, %s24, 1
          %s453 = smul.addr %s452, 2
          %s454 = scalar_lea.vmem %s1, %s453
        $region76: #{forward.3} parent=67 // pred_fallthru
          _
      $region68: #{forward.3} parent=5 // pred_fallthru
        _
      %p455 = scmp.le.s32.totalorder 1, %s24
      %p456 = scmp.lt.s32.totalorder %s24, 3
      %p457 = pnand %p455, %p456
      %p458 = pneg %p457
      // Predicated region
      $region77: #{forward.3} parent=5 // pred_check
        _
      $region78: #{forward.3} parent=5 // pred_check_branch
        %460 = sbr.rel (%p457) target = $region80
      $region79: #{forward.3} parent=5 // pred_region
        %s461 = ssub.s32 %s24, 1
        // Predicated region
        $region81: #{forward.3} parent=79 // pred_check
          %p462 = pneg %p349
        $region82: #{forward.3} parent=79 // pred_check_branch
          %464 = sbr.rel (%p462) target = $region84
        $region83: #{forward.3} parent=79 // pred_region
          %466 = dma.done [#allocation4], 16
        $region84: #{forward.3} parent=79 // pred_fallthru
          _
        %467 = sfence
        %p468 = scmp.lt.s32.totalorder %s29, 1
        %s469 = scalar_select %p468, %s29, 1
        %s470 = smul.addr %s469, 4
        %s471 = smul.addr %s470, 8
        %s472 = scalar_lea.vmem %s0, %s471
        %p473 = pneg %p50
        %p474 = pneg %p47
        %p475 = scmp.lt.s32.totalorder %s29, 1
        %s476 = scalar_select %p475, %s29, 1
        %s477 = smul.addr %s476, 2
        %s478 = scalar_lea.vmem %s1, %s477
        %p479 = pneg %p76
        %p480 = pneg %p73
        %p481 = pneg %p97
        %p482 = pneg %p94
        %p483 = pneg %p118
        %p484 = pneg %p115
        %p485 = pneg %p139
        %p486 = pneg %p136
        %p487 = pneg %p160
        %p488 = pneg %p157
        %p489 = pneg %p181
        %p490 = pneg %p178
        %p491 = pneg %p202
        %p492 = pneg %p199
        %p493 = pneg %p223
        %p494 = pneg %p220
        %p495 = pneg %p244
        %p496 = pneg %p241
        %p497 = pneg %p265
        %p498 = pneg %p262
        %p499 = pneg %p286
        %p500 = pneg %p283
        %p501 = pneg %p307
        %p502 = pneg %p304
        %p503 = pneg %p328
        %p504 = pneg %p325
        %p505 = pneg %p349
        %p506 = pneg %p346
        %p507 = pneg %p375
        %p508 = pneg %p372
        %p509 = scmp.lt.s32.totalorder %s29, 1
        %s510 = scalar_select %p509, %s29, 1
        %s511 = smul.addr %s510, 2
        %s512 = scalar_lea.vmem %s15, %s511
        %p513 = scmp.lt.s32.totalorder %s29, 1
        %s514 = scalar_select %p513, %s29, 1
        %s515 = smul.addr %s514, 4
        %s516 = smul.addr %s515, 8
        %s517 = scalar_lea.vmem %s0, %s516
        %p518 = scmp.lt.s32.totalorder %s29, 1
        %s519 = scalar_select %p518, %s29, 1
        %s520 = smul.addr %s519, 2
        %s521 = scalar_lea.vmem %s1, %s520
        %p522 = scmp.lt.s32.totalorder %s29, 1
        %s523 = scalar_select %p522, %s29, 1
        %s524 = smul.addr %s523, 2
        %s525 = scalar_lea.vmem %s15, %s524
        %v527 = vld [vmem:[%s517] sm:$0xff]
        %v528 = vld [vmem:[%s517 + $0x8] sm:$0xff]
        %v529 = vld [vmem:[%s517 + $0x10] sm:$0xff]
        %v530 = vld [vmem:[%s517 + $0x18] sm:$0xff]
        %v531 = vld [vmem:[%s521] sm:$0x3]
        %v533 = vperm.slane %v531, 0
        %v534 = vperm.slane %v531, 1
        %537 = vrot.lane.b32.xlu0 %v533, 17
        %v538 = vpop.permute.xlu0 %537
        %539 = vrot.lane.b32.xlu0 %v534, 17
        %v540 = vpop.permute.xlu0 %539
        %v541 = vlaneseq
        %v542 = vand.u32 %v541, 127
        %vm543 = vcmp.lt.s32.totalorder %v542, 17
        %v544 = vsel %vm543, %v538, %v540
        %v545 = vsel %vm543, %v540, %v538
        %v546 = vld [vmem:[%s2] ss:$8 sm:$0x3]
        %v548 = vperm.slane %v546, 0
        %v549 = vperm.slane %v546, 1
        %v552 = vmul.f32 %v545, %v548
        %v553 = vmul.f32 %v544, %v549
        %554 = vrot.lane.b32.xlu0 %v533, 16
        %v555 = vpop.permute.xlu0 %554
        %556 = vrot.lane.b32.xlu0 %v534, 16
        %v557 = vpop.permute.xlu0 %556
        %vm558 = vcmp.lt.s32.totalorder %v542, 16
        %v559 = vsel %vm558, %v555, %v557
        %v560 = vsel %vm558, %v557, %v555
        %s561 = scalar_lea.vmem %s2, 1
        %v562 = vld [vmem:[%s561] ss:$8 sm:$0x3]
        %v564 = vperm.slane %v562, 0
        %v565 = vperm.slane %v562, 1
        %v568 = vmul.f32 %v560, %v564
        %v569 = vmul.f32 %v559, %v565
        %570 = vrot.lane.b32.xlu0 %v533, 15
        %v571 = vpop.permute.xlu0 %570
        %572 = vrot.lane.b32.xlu0 %v534, 15
        %v573 = vpop.permute.xlu0 %572
        %vm574 = vcmp.lt.s32.totalorder %v542, 15
        %v575 = vsel %vm574, %v571, %v573
        %v576 = vsel %vm574, %v573, %v571
        %s577 = scalar_lea.vmem %s2, 2
        %v578 = vld [vmem:[%s577] ss:$8 sm:$0x3]
        %v580 = vperm.slane %v578, 0
        %v581 = vperm.slane %v578, 1
        %v584 = vmul.f32 %v576, %v580
        %v585 = vmul.f32 %v575, %v581
        %v588 = vrot.slane %v568, 7
        %v589 = vrot.slane %v569, 7
        %v594 = vrot.slane %v584, 6
        %v595 = vrot.slane %v585, 6
        %vm598 = vcmask 1040384
        %v599 = vsel %vm598, %v552, %v588
        %v600 = vsel %vm598, %v553, %v589
        %vm601 = vcmask 1041408
        %v602 = vsel %vm601, %v599, %v594
        %v603 = vsel %vm601, %v600, %v595
        %v604 = vpack.c.bf16 %v602, %v602
        %v605 = vpack.c.bf16 %v603, %v603
        %v606 = vld [vmem:[%s4] sm:$0xf]
        %v607 = vld [vmem:[%s4 + $0x4] sm:$0xf]
        %608 = vrot.lane.b32.xlu0 %v533, 1
        %v609 = vpop.permute.xlu0 %608
        %610 = vrot.lane.b32.xlu0 %v534, 1
        %v611 = vpop.permute.xlu0 %610
        %vm612 = vcmp.lt.s32.totalorder %v542, 1
        %v613 = vsel %vm612, %v609, %v611
        %v614 = vsel %vm612, %v611, %v609
        %s615 = scalar_lea.vmem %s2, 3
        %v616 = vld [vmem:[%s615] ss:$8 sm:$0x3]
        %v618 = vperm.slane %v616, 0
        %v619 = vperm.slane %v616, 1
        %v622 = vmul.f32 %v614, %v618
        %v623 = vmul.f32 %v613, %v619
        %624 = vrot.lane.b32.xlu0 %v533, 127
        %v625 = vpop.permute.xlu0 %624
        %626 = vrot.lane.b32.xlu0 %v534, 127
        %v627 = vpop.permute.xlu0 %626
        %vm628 = vcmp.lt.s32.totalorder %v542, 127
        %v629 = vsel %vm628, %v625, %v627
        %v630 = vsel %vm628, %v627, %v625
        %s631 = scalar_lea.vmem %s2, 5
        %v632 = vld [vmem:[%s631] ss:$8 sm:$0x3]
        %v634 = vperm.slane %v632, 0
        %v635 = vperm.slane %v632, 1
        %v638 = vmul.f32 %v629, %v634
        %v639 = vmul.f32 %v630, %v635
        %v642 = vrot.slane %v638, 6
        %v643 = vrot.slane %v639, 6
        %v646 = vsel %vm598, %v622, %v533
        %v647 = vsel %vm598, %v623, %v534
        %v648 = vsel %vm601, %v646, %v642
        %v649 = vsel %vm601, %v647, %v643
        %v650 = vpack.c.bf16 %v648, %v648
        %v651 = vpack.c.bf16 %v649, %v649
        %s652 = scalar_lea.vmem %s4, 8
        %v653 = vld [vmem:[%s652] sm:$0xf]
        %v654 = vld [vmem:[%s652 + $0x4] sm:$0xf]
        %v657 = vunpack.c.l.b16 %v653
        %v658 = vunpack.c.l.b16 %v654
        %v659 = vpack.c.b16 %v658, %v657
        %vm660 = vcmask 23552
        %v662 = vsel %vm660, %v659, 0
        %v664 = vsel %vm598, 4294967295, 65535
        %v665 = vsel %vm601, %v664, 0
        %v667 = vand.u32 %v650, %v665
        %v670 = vand.u32 %v651, %v665
        %672 = vmatpush.bf16.msra.mxu0 0
        %673 = vmatpush.bf16.msra.mxu0 0
        %674 = vmatpush.bf16.msra.mxu0 0
        %675 = vmatpush.bf16.msra.mxu0 0
        %676 = vmatpush.bf16.msra.mxu0 0
        %677 = vmatpush.bf16.msra.mxu0 0
        %678 = vmatpush.bf16.msra.mxu0 0
        %679 = vmatpush.bf16.msra.mxu0 %v667
        %680 = vmatmul.bf16.gmra.mxu0 %v662
        %v681 = vpop.f32.mrf.mxu0
        %v682 = vadd.f32 0.0, %v681
        %v683 = vpop.f32.mrf.mxu0
        %v684 = vadd.f32 0.0, %v683
        %685 = vdwg.mxu0
        %686 = vmatpush.bf16.msra.mxu0 0
        %687 = vmatpush.bf16.msra.mxu0 0
        %688 = vmatpush.bf16.msra.mxu0 0
        %689 = vmatpush.bf16.msra.mxu0 0
        %690 = vmatpush.bf16.msra.mxu0 0
        %691 = vmatpush.bf16.msra.mxu0 0
        %692 = vmatpush.bf16.msra.mxu0 0
        %693 = vmatpush.bf16.msra.mxu0 %v670
        %694 = vmatmul.bf16.gmra.mxu0 %v662
        %v695 = vpop.f32.mrf.mxu0
        %v696 = vadd.f32 0.0, %v695
        %v697 = vpop.f32.mrf.mxu0
        %v698 = vadd.f32 0.0, %v697
        %699 = vdwg.mxu0
        %v702 = vunpack.c.l.b16 %v606
        %v703 = vunpack.c.l.b16 %v607
        %v704 = vpack.c.b16 %v703, %v702
        %v706 = vsel %vm660, %v704, 0
        %v709 = vand.u32 %v604, %v665
        %v712 = vand.u32 %v605, %v665
        %714 = vmatpush.bf16.msra.mxu0 0
        %715 = vmatpush.bf16.msra.mxu0 0
        %716 = vmatpush.bf16.msra.mxu0 0
        %717 = vmatpush.bf16.msra.mxu0 0
        %718 = vmatpush.bf16.msra.mxu0 0
        %719 = vmatpush.bf16.msra.mxu0 0
        %720 = vmatpush.bf16.msra.mxu0 0
        %721 = vmatpush.bf16.msra.mxu0 %v709
        %722 = vmatmul.bf16.gmra.mxu0 %v706
        %v723 = vpop.f32.mrf.mxu0
        %v724 = vadd.f32 %v682, %v723
        %v725 = vpop.f32.mrf.mxu0
        %v726 = vadd.f32 %v684, %v725
        %727 = vdwg.mxu0
        %728 = vmatpush.bf16.msra.mxu0 0
        %729 = vmatpush.bf16.msra.mxu0 0
        %730 = vmatpush.bf16.msra.mxu0 0
        %731 = vmatpush.bf16.msra.mxu0 0
        %732 = vmatpush.bf16.msra.mxu0 0
        %733 = vmatpush.bf16.msra.mxu0 0
        %734 = vmatpush.bf16.msra.mxu0 0
        %735 = vmatpush.bf16.msra.mxu0 %v712
        %736 = vmatmul.bf16.gmra.mxu0 %v706
        %v737 = vpop.f32.mrf.mxu0
        %v738 = vadd.f32 %v696, %v737
        %v739 = vpop.f32.mrf.mxu0
        %v740 = vadd.f32 %v698, %v739
        %741 = vdwg.mxu0
        %742 = vrot.lane.b32.xlu0 %v533, 113
        %v743 = vpop.permute.xlu0 %742
        %744 = vrot.lane.b32.xlu0 %v534, 113
        %v745 = vpop.permute.xlu0 %744
        %vm746 = vcmp.lt.s32.totalorder %v542, 113
        %v747 = vsel %vm746, %v743, %v745
        %v748 = vsel %vm746, %v745, %v743
        %s749 = scalar_lea.vmem %s2, 6
        %v750 = vld [vmem:[%s749] ss:$8 sm:$0x3]
        %v752 = vperm.slane %v750, 0
        %v753 = vperm.slane %v750, 1
        %v756 = vmul.f32 %v747, %v752
        %v757 = vmul.f32 %v748, %v753
        %758 = vrot.lane.b32.xlu0 %v533, 112
        %v759 = vpop.permute.xlu0 %758
        %760 = vrot.lane.b32.xlu0 %v534, 112
        %v761 = vpop.permute.xlu0 %760
        %vm762 = vcmp.lt.s32.totalorder %v542, 112
        %v763 = vsel %vm762, %v759, %v761
        %v764 = vsel %vm762, %v761, %v759
        %s765 = scalar_lea.vmem %s2, 7
        %v766 = vld [vmem:[%s765] ss:$8 sm:$0x3]
        %v768 = vperm.slane %v766, 0
        %v769 = vperm.slane %v766, 1
        %v772 = vmul.f32 %v763, %v768
        %v773 = vmul.f32 %v764, %v769
        %774 = vrot.lane.b32.xlu0 %v533, 111
        %v775 = vpop.permute.xlu0 %774
        %776 = vrot.lane.b32.xlu0 %v534, 111
        %v777 = vpop.permute.xlu0 %776
        %vm778 = vcmp.lt.s32.totalorder %v542, 111
        %v779 = vsel %vm778, %v775, %v777
        %v780 = vsel %vm778, %v777, %v775
        %s781 = scalar_lea.vmem %s2, 16
        %v782 = vld [vmem:[%s781] ss:$8 sm:$0x3]
        %v784 = vperm.slane %v782, 0
        %v785 = vperm.slane %v782, 1
        %v788 = vmul.f32 %v779, %v784
        %v789 = vmul.f32 %v780, %v785
        %v792 = vrot.slane %v772, 7
        %v793 = vrot.slane %v773, 7
        %v798 = vrot.slane %v788, 6
        %v799 = vrot.slane %v789, 6
        %v802 = vsel %vm598, %v756, %v792
        %v803 = vsel %vm598, %v757, %v793
        %v804 = vsel %vm601, %v802, %v798
        %v805 = vsel %vm601, %v803, %v799
        %v806 = vpack.c.bf16 %v804, %v804
        %v807 = vpack.c.bf16 %v805, %v805
        %s808 = scalar_lea.vmem %s4, 16
        %v809 = vld [vmem:[%s808] sm:$0xf]
        %v810 = vld [vmem:[%s808 + $0x4] sm:$0xf]
        %v813 = vunpack.c.l.b16 %v809
        %v814 = vunpack.c.l.b16 %v810
        %v815 = vpack.c.b16 %v814, %v813
        %v817 = vsel %vm660, %v815, 0
        %v820 = vand.u32 %v806, %v665
        %v823 = vand.u32 %v807, %v665
        %825 = vmatpush.bf16.msra.mxu0 0
        %826 = vmatpush.bf16.msra.mxu0 0
        %827 = vmatpush.bf16.msra.mxu0 0
        %828 = vmatpush.bf16.msra.mxu0 0
        %829 = vmatpush.bf16.msra.mxu0 0
        %830 = vmatpush.bf16.msra.mxu0 0
        %831 = vmatpush.bf16.msra.mxu0 0
        %832 = vmatpush.bf16.msra.mxu0 %v820
        %833 = vmatmul.bf16.gmra.mxu0 %v817
        %v834 = vpop.f32.mrf.mxu0
        %v835 = vadd.f32 0.0, %v834
        %v836 = vpop.f32.mrf.mxu0
        %v837 = vadd.f32 0.0, %v836
        %838 = vdwg.mxu0
        %839 = vmatpush.bf16.msra.mxu0 0
        %840 = vmatpush.bf16.msra.mxu0 0
        %841 = vmatpush.bf16.msra.mxu0 0
        %842 = vmatpush.bf16.msra.mxu0 0
        %843 = vmatpush.bf16.msra.mxu0 0
        %844 = vmatpush.bf16.msra.mxu0 0
        %845 = vmatpush.bf16.msra.mxu0 0
        %846 = vmatpush.bf16.msra.mxu0 %v823
        %847 = vmatmul.bf16.gmra.mxu0 %v817
        %v848 = vpop.f32.mrf.mxu0
        %v849 = vadd.f32 0.0, %v848
        %v850 = vpop.f32.mrf.mxu0
        %v851 = vadd.f32 0.0, %v850
        %852 = vdwg.mxu0
        %v853 = vadd.f32 %v724, %v835
        %v854 = vadd.f32 %v738, %v849
        %v855 = vadd.f32 %v726, %v837
        %v856 = vadd.f32 %v740, %v851
        %v857 = vld [vmem:[%s5] sm:$0xff]
        %v858 = vld [vmem:[%s5 + $0x8] sm:$0xff]
        %860 = vset.pattern.permute.xlu0 0
        %861 = vperm.xlu0 %860, %v857
        %v862 = vpop.permute.xlu0 %861
        %865 = vset.pattern.permute.xlu0 0
        %866 = vperm.xlu0 %865, %v858
        %v867 = vpop.permute.xlu0 %866
        %v869 = vadd.f32 %v853, %v862
        %v870 = vadd.f32 %v854, %v862
        %v871 = vadd.f32 %v855, %v867
        %v872 = vadd.f32 %v856, %v867
        %v873 = vmax.f32 %v869, 0.0
        %v874 = vmax.f32 %v870, 0.0
        %v875 = vmax.f32 %v871, 0.0
        %v876 = vmax.f32 %v872, 0.0
        %877 = vrot.lane.b32.xlu0 %v873, 17
        %v878 = vpop.permute.xlu0 %877
        %879 = vrot.lane.b32.xlu0 %v875, 17
        %v880 = vpop.permute.xlu0 %879
        %881 = vrot.lane.b32.xlu0 %v874, 17
        %v882 = vpop.permute.xlu0 %881
        %883 = vrot.lane.b32.xlu0 %v876, 17
        %v884 = vpop.permute.xlu0 %883
        %v885 = vsel %vm543, %v878, %v882
        %v886 = vsel %vm543, %v880, %v884
        %v887 = vsel %vm543, %v882, %v878
        %v888 = vsel %vm543, %v884, %v880
        %v889 = vmul.f32 %v887, %v548
        %v890 = vmul.f32 %v885, %v549
        %v891 = vmul.f32 %v888, %v548
        %v892 = vmul.f32 %v886, %v549
        %893 = vrot.lane.b32.xlu0 %v873, 16
        %v894 = vpop.permute.xlu0 %893
        %895 = vrot.lane.b32.xlu0 %v875, 16
        %v896 = vpop.permute.xlu0 %895
        %897 = vrot.lane.b32.xlu0 %v874, 16
        %v898 = vpop.permute.xlu0 %897
        %899 = vrot.lane.b32.xlu0 %v876, 16
        %v900 = vpop.permute.xlu0 %899
        %v901 = vsel %vm558, %v894, %v898
        %v902 = vsel %vm558, %v896, %v900
        %v903 = vsel %vm558, %v898, %v894
        %v904 = vsel %vm558, %v900, %v896
        %v905 = vmul.f32 %v903, %v564
        %v906 = vmul.f32 %v901, %v565
        %v907 = vmul.f32 %v904, %v564
        %v908 = vmul.f32 %v902, %v565
        %909 = vrot.lane.b32.xlu0 %v873, 15
        %v910 = vpop.permute.xlu0 %909
        %911 = vrot.lane.b32.xlu0 %v875, 15
        %v912 = vpop.permute.xlu0 %911
        %913 = vrot.lane.b32.xlu0 %v874, 15
        %v914 = vpop.permute.xlu0 %913
        %915 = vrot.lane.b32.xlu0 %v876, 15
        %v916 = vpop.permute.xlu0 %915
        %v917 = vsel %vm574, %v910, %v914
        %v918 = vsel %vm574, %v912, %v916
        %v919 = vsel %vm574, %v914, %v910
        %v920 = vsel %vm574, %v916, %v912
        %v921 = vmul.f32 %v919, %v580
        %v922 = vmul.f32 %v917, %v581
        %v923 = vmul.f32 %v920, %v580
        %v924 = vmul.f32 %v918, %v581
        %v925 = vpack.c.bf16 %v891, %v889
        %v926 = vpack.c.bf16 %v892, %v890
        %v927 = vpack.c.bf16 %v907, %v905
        %v928 = vpack.c.bf16 %v908, %v906
        %v929 = vpack.c.bf16 %v923, %v921
        %v930 = vpack.c.bf16 %v924, %v922
        %v931 = vld [vmem:[%s6] sm:$0xf]
        %v932 = vld [vmem:[%s6 + $0x4] sm:$0xf]
        %933 = vrot.lane.b32.xlu0 %v873, 1
        %v934 = vpop.permute.xlu0 %933
        %935 = vrot.lane.b32.xlu0 %v875, 1
        %v936 = vpop.permute.xlu0 %935
        %937 = vrot.lane.b32.xlu0 %v874, 1
        %v938 = vpop.permute.xlu0 %937
        %939 = vrot.lane.b32.xlu0 %v876, 1
        %v940 = vpop.permute.xlu0 %939
        %v941 = vsel %vm612, %v934, %v938
        %v942 = vsel %vm612, %v936, %v940
        %v943 = vsel %vm612, %v938, %v934
        %v944 = vsel %vm612, %v940, %v936
        %v945 = vmul.f32 %v943, %v618
        %v946 = vmul.f32 %v941, %v619
        %v947 = vmul.f32 %v944, %v618
        %v948 = vmul.f32 %v942, %v619
        %949 = vrot.lane.b32.xlu0 %v873, 127
        %v950 = vpop.permute.xlu0 %949
        %951 = vrot.lane.b32.xlu0 %v875, 127
        %v952 = vpop.permute.xlu0 %951
        %953 = vrot.lane.b32.xlu0 %v874, 127
        %v954 = vpop.permute.xlu0 %953
        %955 = vrot.lane.b32.xlu0 %v876, 127
        %v956 = vpop.permute.xlu0 %955
        %v957 = vsel %vm628, %v950, %v954
        %v958 = vsel %vm628, %v952, %v956
        %v959 = vsel %vm628, %v954, %v950
        %v960 = vsel %vm628, %v956, %v952
        %v961 = vmul.f32 %v957, %v634
        %v962 = vmul.f32 %v959, %v635
        %v963 = vmul.f32 %v958, %v634
        %v964 = vmul.f32 %v960, %v635
        %v965 = vpack.c.bf16 %v947, %v945
        %v966 = vpack.c.bf16 %v948, %v946
        %v967 = vpack.c.bf16 %v875, %v873
        %v968 = vpack.c.bf16 %v876, %v874
        %v969 = vpack.c.bf16 %v963, %v961
        %v970 = vpack.c.bf16 %v964, %v962
        %s971 = scalar_lea.vmem %s6, 8
        %v972 = vld [vmem:[%s971] sm:$0xf]
        %v973 = vld [vmem:[%s971 + $0x4] sm:$0xf]
        %v976 = vunpack.c.l.b16 %v972
        %v977 = vunpack.c.l.b16 %v973
        %v978 = vpack.c.b16 %v977, %v976
        %vm979 = vcmask 392192
        %v981 = vsel %vm979, %v978, 0
        %983 = vmatpush.bf16.msra.mxu0 0
        %984 = vmatpush.bf16.msra.mxu0 0
        %985 = vmatpush.bf16.msra.mxu0 0
        %986 = vmatpush.bf16.msra.mxu0 0
        %987 = vmatpush.bf16.msra.mxu0 0
        %988 = vmatpush.bf16.msra.mxu0 %v969
        %989 = vmatpush.bf16.msra.mxu0 %v967
        %990 = vmatpush.bf16.msra.mxu0 %v965
        %991 = vmatmul.bf16.gmra.mxu0 %v981
        %v992 = vpop.f32.mrf.mxu0
        %v993 = vadd.f32 0.0, %v992
        %v994 = vpop.f32.mrf.mxu0
        %v995 = vadd.f32 0.0, %v994
        %996 = vdwg.mxu0
        %997 = vmatpush.bf16.msra.mxu0 0
        %998 = vmatpush.bf16.msra.mxu0 0
        %999 = vmatpush.bf16.msra.mxu0 0
        %1000 = vmatpush.bf16.msra.mxu0 0
        %1001 = vmatpush.bf16.msra.mxu0 0
        %1002 = vmatpush.bf16.msra.mxu0 %v970
        %1003 = vmatpush.bf16.msra.mxu0 %v968
        %1004 = vmatpush.bf16.msra.mxu0 %v966
        %1005 = vmatmul.bf16.gmra.mxu0 %v981
        %v1006 = vpop.f32.mrf.mxu0
        %v1007 = vadd.f32 0.0, %v1006
        %v1008 = vpop.f32.mrf.mxu0
        %v1009 = vadd.f32 0.0, %v1008
        %1010 = vdwg.mxu0
        %v1013 = vunpack.c.l.b16 %v931
        %v1014 = vunpack.c.l.b16 %v932
        %v1015 = vpack.c.b16 %v1014, %v1013
        %v1017 = vsel %vm979, %v1015, 0
        %1019 = vmatpush.bf16.msra.mxu0 0
        %1020 = vmatpush.bf16.msra.mxu0 0
        %1021 = vmatpush.bf16.msra.mxu0 0
        %1022 = vmatpush.bf16.msra.mxu0 0
        %1023 = vmatpush.bf16.msra.mxu0 0
        %1024 = vmatpush.bf16.msra.mxu0 %v929
        %1025 = vmatpush.bf16.msra.mxu0 %v927
        %1026 = vmatpush.bf16.msra.mxu0 %v925
        %1027 = vmatmul.bf16.gmra.mxu0 %v1017
        %v1028 = vpop.f32.mrf.mxu0
        %v1029 = vadd.f32 %v993, %v1028
        %v1030 = vpop.f32.mrf.mxu0
        %v1031 = vadd.f32 %v995, %v1030
        %1032 = vdwg.mxu0
        %1033 = vmatpush.bf16.msra.mxu0 0
        %1034 = vmatpush.bf16.msra.mxu0 0
        %1035 = vmatpush.bf16.msra.mxu0 0
        %1036 = vmatpush.bf16.msra.mxu0 0
        %1037 = vmatpush.bf16.msra.mxu0 0
        %1038 = vmatpush.bf16.msra.mxu0 %v930
        %1039 = vmatpush.bf16.msra.mxu0 %v928
        %1040 = vmatpush.bf16.msra.mxu0 %v926
        %1041 = vmatmul.bf16.gmra.mxu0 %v1017
        %v1042 = vpop.f32.mrf.mxu0
        %v1043 = vadd.f32 %v1007, %v1042
        %v1044 = vpop.f32.mrf.mxu0
        %v1045 = vadd.f32 %v1009, %v1044
        %1046 = vdwg.mxu0
        %1047 = vrot.lane.b32.xlu0 %v873, 113
        %v1048 = vpop.permute.xlu0 %1047
        %1049 = vrot.lane.b32.xlu0 %v875, 113
        %v1050 = vpop.permute.xlu0 %1049
        %1051 = vrot.lane.b32.xlu0 %v874, 113
        %v1052 = vpop.permute.xlu0 %1051
        %1053 = vrot.lane.b32.xlu0 %v876, 113
        %v1054 = vpop.permute.xlu0 %1053
        %v1055 = vsel %vm746, %v1048, %v1052
        %v1056 = vsel %vm746, %v1050, %v1054
        %v1057 = vsel %vm746, %v1052, %v1048
        %v1058 = vsel %vm746, %v1054, %v1050
        %v1059 = vmul.f32 %v1055, %v752
        %v1060 = vmul.f32 %v1057, %v753
        %v1061 = vmul.f32 %v1056, %v752
        %v1062 = vmul.f32 %v1058, %v753
        %1063 = vrot.lane.b32.xlu0 %v873, 112
        %v1064 = vpop.permute.xlu0 %1063
        %1065 = vrot.lane.b32.xlu0 %v875, 112
        %v1066 = vpop.permute.xlu0 %1065
        %1067 = vrot.lane.b32.xlu0 %v874, 112
        %v1068 = vpop.permute.xlu0 %1067
        %1069 = vrot.lane.b32.xlu0 %v876, 112
        %v1070 = vpop.permute.xlu0 %1069
        %v1071 = vsel %vm762, %v1064, %v1068
        %v1072 = vsel %vm762, %v1066, %v1070
        %v1073 = vsel %vm762, %v1068, %v1064
        %v1074 = vsel %vm762, %v1070, %v1066
        %v1075 = vmul.f32 %v1071, %v768
        %v1076 = vmul.f32 %v1073, %v769
        %v1077 = vmul.f32 %v1072, %v768
        %v1078 = vmul.f32 %v1074, %v769
        %1079 = vrot.lane.b32.xlu0 %v873, 111
        %v1080 = vpop.permute.xlu0 %1079
        %1081 = vrot.lane.b32.xlu0 %v875, 111
        %v1082 = vpop.permute.xlu0 %1081
        %1083 = vrot.lane.b32.xlu0 %v874, 111
        %v1084 = vpop.permute.xlu0 %1083
        %1085 = vrot.lane.b32.xlu0 %v876, 111
        %v1086 = vpop.permute.xlu0 %1085
        %v1087 = vsel %vm778, %v1080, %v1084
        %v1088 = vsel %vm778, %v1082, %v1086
        %v1089 = vsel %vm778, %v1084, %v1080
        %v1090 = vsel %vm778, %v1086, %v1082
        %v1091 = vmul.f32 %v1087, %v784
        %v1092 = vmul.f32 %v1089, %v785
        %v1093 = vmul.f32 %v1088, %v784
        %v1094 = vmul.f32 %v1090, %v785
        %v1095 = vpack.c.bf16 %v1061, %v1059
        %v1096 = vpack.c.bf16 %v1062, %v1060
        %v1097 = vpack.c.bf16 %v1077, %v1075
        %v1098 = vpack.c.bf16 %v1078, %v1076
        %v1099 = vpack.c.bf16 %v1093, %v1091
        %v1100 = vpack.c.bf16 %v1094, %v1092
        %s1101 = scalar_lea.vmem %s6, 16
        %v1102 = vld [vmem:[%s1101] sm:$0xf]
        %v1103 = vld [vmem:[%s1101 + $0x4] sm:$0xf]
        %v1106 = vunpack.c.l.b16 %v1102
        %v1107 = vunpack.c.l.b16 %v1103
        %v1108 = vpack.c.b16 %v1107, %v1106
        %v1110 = vsel %vm979, %v1108, 0
        %1112 = vmatpush.bf16.msra.mxu0 0
        %1113 = vmatpush.bf16.msra.mxu0 0
        %1114 = vmatpush.bf16.msra.mxu0 0
        %1115 = vmatpush.bf16.msra.mxu0 0
        %1116 = vmatpush.bf16.msra.mxu0 0
        %1117 = vmatpush.bf16.msra.mxu0 %v1099
        %1118 = vmatpush.bf16.msra.mxu0 %v1097
        %1119 = vmatpush.bf16.msra.mxu0 %v1095
        %1120 = vmatmul.bf16.gmra.mxu0 %v1110
        %v1121 = vpop.f32.mrf.mxu0
        %v1122 = vadd.f32 0.0, %v1121
        %v1123 = vpop.f32.mrf.mxu0
        %v1124 = vadd.f32 0.0, %v1123
        %1125 = vdwg.mxu0
        %1126 = vmatpush.bf16.msra.mxu0 0
        %1127 = vmatpush.bf16.msra.mxu0 0
        %1128 = vmatpush.bf16.msra.mxu0 0
        %1129 = vmatpush.bf16.msra.mxu0 0
        %1130 = vmatpush.bf16.msra.mxu0 0
        %1131 = vmatpush.bf16.msra.mxu0 %v1100
        %1132 = vmatpush.bf16.msra.mxu0 %v1098
        %1133 = vmatpush.bf16.msra.mxu0 %v1096
        %1134 = vmatmul.bf16.gmra.mxu0 %v1110
        %v1135 = vpop.f32.mrf.mxu0
        %v1136 = vadd.f32 0.0, %v1135
        %v1137 = vpop.f32.mrf.mxu0
        %v1138 = vadd.f32 0.0, %v1137
        %1139 = vdwg.mxu0
        %v1140 = vadd.f32 %v1029, %v1122
        %v1141 = vadd.f32 %v1043, %v1136
        %v1142 = vadd.f32 %v1031, %v1124
        %v1143 = vadd.f32 %v1045, %v1138
        %v1144 = vld [vmem:[%s7] sm:$0xff]
        %v1145 = vld [vmem:[%s7 + $0x8] sm:$0xff]
        %1147 = vset.pattern.permute.xlu0 0
        %1148 = vperm.xlu0 %1147, %v1144
        %v1149 = vpop.permute.xlu0 %1148
        %1152 = vset.pattern.permute.xlu0 0
        %1153 = vperm.xlu0 %1152, %v1145
        %v1154 = vpop.permute.xlu0 %1153
        %v1156 = vadd.f32 %v1140, %v1149
        %v1157 = vadd.f32 %v1141, %v1149
        %v1158 = vadd.f32 %v1142, %v1154
        %v1159 = vadd.f32 %v1143, %v1154
        %v1160 = vmax.f32 %v1156, 0.0
        %v1161 = vmax.f32 %v1157, 0.0
        %v1162 = vmax.f32 %v1158, 0.0
        %v1163 = vmax.f32 %v1159, 0.0
        %s1164 = sld [smem:[#allocation3]]
        %1165 = vrot.lane.b32.xlu0 %v527, 34
        %v1166 = vpop.permute.xlu0 %1165
        %1167 = vrot.lane.b32.xlu0 %v529, 34
        %v1168 = vpop.permute.xlu0 %1167
        %1169 = vrot.lane.b32.xlu0 %v1160, 34
        %v1170 = vpop.permute.xlu0 %1169
        %1171 = vrot.lane.b32.xlu0 %v1162, 34
        %v1172 = vpop.permute.xlu0 %1171
        %1173 = vrot.lane.b32.xlu0 %v528, 34
        %v1174 = vpop.permute.xlu0 %1173
        %1175 = vrot.lane.b32.xlu0 %v530, 34
        %v1176 = vpop.permute.xlu0 %1175
        %1177 = vrot.lane.b32.xlu0 %v1161, 34
        %v1178 = vpop.permute.xlu0 %1177
        %1179 = vrot.lane.b32.xlu0 %v1163, 34
        %v1180 = vpop.permute.xlu0 %1179
        %vm1181 = vcmp.lt.s32.totalorder %v542, 34
        %v1182 = vsel %vm1181, %v1166, %v1174
        %v1183 = vsel %vm1181, %v1168, %v1176
        %v1184 = vsel %vm1181, %v1170, %v1178
        %v1185 = vsel %vm1181, %v1172, %v1180
        %v1186 = vsel %vm1181, %v1174, %v1166
        %v1187 = vsel %vm1181, %v1176, %v1168
        %v1188 = vsel %vm1181, %v1178, %v1170
        %v1189 = vsel %vm1181, %v1180, %v1172
        %v1190 = vld [vmem:[%s3] ss:$8 sm:$0x3]
        %v1192 = vperm.slane %v1190, 0
        %v1193 = vperm.slane %v1190, 1
        %v1196 = vmul.f32 %v1186, %v1192
        %v1197 = vmul.f32 %v1182, %v1193
        %v1198 = vmul.f32 %v1187, %v1192
        %v1199 = vmul.f32 %v1183, %v1193
        %v1200 = vmul.f32 %v1188, %v1192
        %v1201 = vmul.f32 %v1184, %v1193
        %v1202 = vmul.f32 %v1189, %v1192
        %v1203 = vmul.f32 %v1185, %v1193
        %1204 = vrot.lane.b32.xlu0 %v527, 33
        %v1205 = vpop.permute.xlu0 %1204
        %1206 = vrot.lane.b32.xlu0 %v529, 33
        %v1207 = vpop.permute.xlu0 %1206
        %1208 = vrot.lane.b32.xlu0 %v1160, 33
        %v1209 = vpop.permute.xlu0 %1208
        %1210 = vrot.lane.b32.xlu0 %v1162, 33
        %v1211 = vpop.permute.xlu0 %1210
        %1212 = vrot.lane.b32.xlu0 %v528, 33
        %v1213 = vpop.permute.xlu0 %1212
        %1214 = vrot.lane.b32.xlu0 %v530, 33
        %v1215 = vpop.permute.xlu0 %1214
        %1216 = vrot.lane.b32.xlu0 %v1161, 33
        %v1217 = vpop.permute.xlu0 %1216
        %1218 = vrot.lane.b32.xlu0 %v1163, 33
        %v1219 = vpop.permute.xlu0 %1218
        %vm1220 = vcmp.lt.s32.totalorder %v542, 33
        %v1221 = vsel %vm1220, %v1205, %v1213
        %v1222 = vsel %vm1220, %v1207, %v1215
        %v1223 = vsel %vm1220, %v1209, %v1217
        %v1224 = vsel %vm1220, %v1211, %v1219
        %v1225 = vsel %vm1220, %v1213, %v1205
        %v1226 = vsel %vm1220, %v1215, %v1207
        %v1227 = vsel %vm1220, %v1217, %v1209
        %v1228 = vsel %vm1220, %v1219, %v1211
        %s1229 = scalar_lea.vmem %s3, 1
        %v1230 = vld [vmem:[%s1229] ss:$8 sm:$0x3]
        %v1232 = vperm.slane %v1230, 0
        %v1233 = vperm.slane %v1230, 1
        %v1236 = vmul.f32 %v1225, %v1232
        %v1237 = vmul.f32 %v1221, %v1233
        %v1238 = vmul.f32 %v1226, %v1232
        %v1239 = vmul.f32 %v1222, %v1233
        %v1240 = vmul.f32 %v1227, %v1232
        %v1241 = vmul.f32 %v1223, %v1233
        %v1242 = vmul.f32 %v1228, %v1232
        %v1243 = vmul.f32 %v1224, %v1233
        %1244 = vrot.lane.b32.xlu0 %v527, 32
        %v1245 = vpop.permute.xlu0 %1244
        %1246 = vrot.lane.b32.xlu0 %v529, 32
        %v1247 = vpop.permute.xlu0 %1246
        %1248 = vrot.lane.b32.xlu0 %v1160, 32
        %v1249 = vpop.permute.xlu0 %1248
        %1250 = vrot.lane.b32.xlu0 %v1162, 32
        %v1251 = vpop.permute.xlu0 %1250
        %1252 = vrot.lane.b32.xlu0 %v528, 32
        %v1253 = vpop.permute.xlu0 %1252
        %1254 = vrot.lane.b32.xlu0 %v530, 32
        %v1255 = vpop.permute.xlu0 %1254
        %1256 = vrot.lane.b32.xlu0 %v1161, 32
        %v1257 = vpop.permute.xlu0 %1256
        %1258 = vrot.lane.b32.xlu0 %v1163, 32
        %v1259 = vpop.permute.xlu0 %1258
        %vm1260 = vcmp.lt.s32.totalorder %v542, 32
        %v1261 = vsel %vm1260, %v1245, %v1253
        %v1262 = vsel %vm1260, %v1247, %v1255
        %v1263 = vsel %vm1260, %v1249, %v1257
        %v1264 = vsel %vm1260, %v1251, %v1259
        %v1265 = vsel %vm1260, %v1253, %v1245
        %v1266 = vsel %vm1260, %v1255, %v1247
        %v1267 = vsel %vm1260, %v1257, %v1249
        %v1268 = vsel %vm1260, %v1259, %v1251
        %s1269 = scalar_lea.vmem %s3, 2
        %v1270 = vld [vmem:[%s1269] ss:$8 sm:$0x3]
        %v1272 = vperm.slane %v1270, 0
        %v1273 = vperm.slane %v1270, 1
        %v1276 = vmul.f32 %v1265, %v1272
        %v1277 = vmul.f32 %v1261, %v1273
        %v1278 = vmul.f32 %v1266, %v1272
        %v1279 = vmul.f32 %v1262, %v1273
        %v1280 = vmul.f32 %v1267, %v1272
        %v1281 = vmul.f32 %v1263, %v1273
        %v1282 = vmul.f32 %v1268, %v1272
        %v1283 = vmul.f32 %v1264, %v1273
        %1284 = vrot.lane.b32.xlu0 %v527, 31
        %v1285 = vpop.permute.xlu0 %1284
        %1286 = vrot.lane.b32.xlu0 %v529, 31
        %v1287 = vpop.permute.xlu0 %1286
        %1288 = vrot.lane.b32.xlu0 %v1160, 31
        %v1289 = vpop.permute.xlu0 %1288
        %1290 = vrot.lane.b32.xlu0 %v1162, 31
        %v1291 = vpop.permute.xlu0 %1290
        %1292 = vrot.lane.b32.xlu0 %v528, 31
        %v1293 = vpop.permute.xlu0 %1292
        %1294 = vrot.lane.b32.xlu0 %v530, 31
        %v1295 = vpop.permute.xlu0 %1294
        %1296 = vrot.lane.b32.xlu0 %v1161, 31
        %v1297 = vpop.permute.xlu0 %1296
        %1298 = vrot.lane.b32.xlu0 %v1163, 31
        %v1299 = vpop.permute.xlu0 %1298
        %vm1300 = vcmp.lt.s32.totalorder %v542, 31
        %v1301 = vsel %vm1300, %v1285, %v1293
        %v1302 = vsel %vm1300, %v1287, %v1295
        %v1303 = vsel %vm1300, %v1289, %v1297
        %v1304 = vsel %vm1300, %v1291, %v1299
        %v1305 = vsel %vm1300, %v1293, %v1285
        %v1306 = vsel %vm1300, %v1295, %v1287
        %v1307 = vsel %vm1300, %v1297, %v1289
        %v1308 = vsel %vm1300, %v1299, %v1291
        %s1309 = scalar_lea.vmem %s3, 3
        %v1310 = vld [vmem:[%s1309] ss:$8 sm:$0x3]
        %v1312 = vperm.slane %v1310, 0
        %v1313 = vperm.slane %v1310, 1
        %v1316 = vmul.f32 %v1305, %v1312
        %v1317 = vmul.f32 %v1301, %v1313
        %v1318 = vmul.f32 %v1306, %v1312
        %v1319 = vmul.f32 %v1302, %v1313
        %v1320 = vmul.f32 %v1307, %v1312
        %v1321 = vmul.f32 %v1303, %v1313
        %v1322 = vmul.f32 %v1308, %v1312
        %v1323 = vmul.f32 %v1304, %v1313
        %1324 = vrot.lane.b32.xlu0 %v527, 30
        %v1325 = vpop.permute.xlu0 %1324
        %1326 = vrot.lane.b32.xlu0 %v529, 30
        %v1327 = vpop.permute.xlu0 %1326
        %1328 = vrot.lane.b32.xlu0 %v1160, 30
        %v1329 = vpop.permute.xlu0 %1328
        %1330 = vrot.lane.b32.xlu0 %v1162, 30
        %v1331 = vpop.permute.xlu0 %1330
        %1332 = vrot.lane.b32.xlu0 %v528, 30
        %v1333 = vpop.permute.xlu0 %1332
        %1334 = vrot.lane.b32.xlu0 %v530, 30
        %v1335 = vpop.permute.xlu0 %1334
        %1336 = vrot.lane.b32.xlu0 %v1161, 30
        %v1337 = vpop.permute.xlu0 %1336
        %1338 = vrot.lane.b32.xlu0 %v1163, 30
        %v1339 = vpop.permute.xlu0 %1338
        %vm1340 = vcmp.lt.s32.totalorder %v542, 30
        %v1341 = vsel %vm1340, %v1325, %v1333
        %v1342 = vsel %vm1340, %v1327, %v1335
        %v1343 = vsel %vm1340, %v1329, %v1337
        %v1344 = vsel %vm1340, %v1331, %v1339
        %v1345 = vsel %vm1340, %v1333, %v1325
        %v1346 = vsel %vm1340, %v1335, %v1327
        %v1347 = vsel %vm1340, %v1337, %v1329
        %v1348 = vsel %vm1340, %v1339, %v1331
        %s1349 = scalar_lea.vmem %s3, 4
        %v1350 = vld [vmem:[%s1349] ss:$8 sm:$0x3]
        %v1352 = vperm.slane %v1350, 0
        %v1353 = vperm.slane %v1350, 1
        %v1356 = vmul.f32 %v1345, %v1352
        %v1357 = vmul.f32 %v1341, %v1353
        %v1358 = vmul.f32 %v1346, %v1352
        %v1359 = vmul.f32 %v1342, %v1353
        %v1360 = vmul.f32 %v1347, %v1352
        %v1361 = vmul.f32 %v1343, %v1353
        %v1362 = vmul.f32 %v1348, %v1352
        %v1363 = vmul.f32 %v1344, %v1353
        %v1364 = vpack.c.bf16 %v1198, %v1196
        %v1365 = vpack.c.bf16 %v1199, %v1197
        %v1366 = vpack.c.bf16 %v1202, %v1200
        %v1367 = vpack.c.bf16 %v1203, %v1201
        %v1368 = vpack.c.bf16 %v1238, %v1236
        %v1369 = vpack.c.bf16 %v1239, %v1237
        %v1370 = vpack.c.bf16 %v1242, %v1240
        %v1371 = vpack.c.bf16 %v1243, %v1241
        %v1372 = vpack.c.bf16 %v1278, %v1276
        %v1373 = vpack.c.bf16 %v1279, %v1277
        %v1374 = vpack.c.bf16 %v1282, %v1280
        %v1375 = vpack.c.bf16 %v1283, %v1281
        %v1376 = vpack.c.bf16 %v1318, %v1316
        %v1377 = vpack.c.bf16 %v1319, %v1317
        %v1378 = vpack.c.bf16 %v1322, %v1320
        %v1379 = vpack.c.bf16 %v1323, %v1321
        %v1380 = vpack.c.bf16 %v1358, %v1356
        %v1381 = vpack.c.bf16 %v1359, %v1357
        %v1382 = vpack.c.bf16 %v1362, %v1360
        %v1383 = vpack.c.bf16 %v1363, %v1361
        %v1384 = vld [vmem:[%s8] sm:$0xff]
        %1385 = vrot.lane.b32.xlu0 %v527, 18
        %v1386 = vpop.permute.xlu0 %1385
        %1387 = vrot.lane.b32.xlu0 %v529, 18
        %v1388 = vpop.permute.xlu0 %1387
        %1389 = vrot.lane.b32.xlu0 %v1160, 18
        %v1390 = vpop.permute.xlu0 %1389
        %1391 = vrot.lane.b32.xlu0 %v1162, 18
        %v1392 = vpop.permute.xlu0 %1391
        %1393 = vrot.lane.b32.xlu0 %v528, 18
        %v1394 = vpop.permute.xlu0 %1393
        %1395 = vrot.lane.b32.xlu0 %v530, 18
        %v1396 = vpop.permute.xlu0 %1395
        %1397 = vrot.lane.b32.xlu0 %v1161, 18
        %v1398 = vpop.permute.xlu0 %1397
        %1399 = vrot.lane.b32.xlu0 %v1163, 18
        %v1400 = vpop.permute.xlu0 %1399
        %vm1401 = vcmp.lt.s32.totalorder %v542, 18
        %v1402 = vsel %vm1401, %v1386, %v1394
        %v1403 = vsel %vm1401, %v1388, %v1396
        %v1404 = vsel %vm1401, %v1390, %v1398
        %v1405 = vsel %vm1401, %v1392, %v1400
        %v1406 = vsel %vm1401, %v1394, %v1386
        %v1407 = vsel %vm1401, %v1396, %v1388
        %v1408 = vsel %vm1401, %v1398, %v1390
        %v1409 = vsel %vm1401, %v1400, %v1392
        %s1410 = scalar_lea.vmem %s3, 5
        %v1411 = vld [vmem:[%s1410] ss:$8 sm:$0x3]
        %v1413 = vperm.slane %v1411, 0
        %v1414 = vperm.slane %v1411, 1
        %v1417 = vmul.f32 %v1406, %v1413
        %v1418 = vmul.f32 %v1402, %v1414
        %v1419 = vmul.f32 %v1407, %v1413
        %v1420 = vmul.f32 %v1403, %v1414
        %v1421 = vmul.f32 %v1408, %v1413
        %v1422 = vmul.f32 %v1404, %v1414
        %v1423 = vmul.f32 %v1409, %v1413
        %v1424 = vmul.f32 %v1405, %v1414
        %1425 = vrot.lane.b32.xlu0 %v527, 17
        %v1426 = vpop.permute.xlu0 %1425
        %1427 = vrot.lane.b32.xlu0 %v529, 17
        %v1428 = vpop.permute.xlu0 %1427
        %1429 = vrot.lane.b32.xlu0 %v1160, 17
        %v1430 = vpop.permute.xlu0 %1429
        %1431 = vrot.lane.b32.xlu0 %v1162, 17
        %v1432 = vpop.permute.xlu0 %1431
        %1433 = vrot.lane.b32.xlu0 %v528, 17
        %v1434 = vpop.permute.xlu0 %1433
        %1435 = vrot.lane.b32.xlu0 %v530, 17
        %v1436 = vpop.permute.xlu0 %1435
        %1437 = vrot.lane.b32.xlu0 %v1161, 17
        %v1438 = vpop.permute.xlu0 %1437
        %1439 = vrot.lane.b32.xlu0 %v1163, 17
        %v1440 = vpop.permute.xlu0 %1439
        %v1441 = vsel %vm543, %v1426, %v1434
        %v1442 = vsel %vm543, %v1428, %v1436
        %v1443 = vsel %vm543, %v1430, %v1438
        %v1444 = vsel %vm543, %v1432, %v1440
        %v1445 = vsel %vm543, %v1434, %v1426
        %v1446 = vsel %vm543, %v1436, %v1428
        %v1447 = vsel %vm543, %v1438, %v1430
        %v1448 = vsel %vm543, %v1440, %v1432
        %s1449 = scalar_lea.vmem %s3, 6
        %v1450 = vld [vmem:[%s1449] ss:$8 sm:$0x3]
        %v1452 = vperm.slane %v1450, 0
        %v1453 = vperm.slane %v1450, 1
        %v1456 = vmul.f32 %v1445, %v1452
        %v1457 = vmul.f32 %v1441, %v1453
        %v1458 = vmul.f32 %v1446, %v1452
        %v1459 = vmul.f32 %v1442, %v1453
        %v1460 = vmul.f32 %v1447, %v1452
        %v1461 = vmul.f32 %v1443, %v1453
        %v1462 = vmul.f32 %v1448, %v1452
        %v1463 = vmul.f32 %v1444, %v1453
        %1464 = vrot.lane.b32.xlu0 %v527, 16
        %v1465 = vpop.permute.xlu0 %1464
        %1466 = vrot.lane.b32.xlu0 %v529, 16
        %v1467 = vpop.permute.xlu0 %1466
        %1468 = vrot.lane.b32.xlu0 %v1160, 16
        %v1469 = vpop.permute.xlu0 %1468
        %1470 = vrot.lane.b32.xlu0 %v1162, 16
        %v1471 = vpop.permute.xlu0 %1470
        %1472 = vrot.lane.b32.xlu0 %v528, 16
        %v1473 = vpop.permute.xlu0 %1472
        %1474 = vrot.lane.b32.xlu0 %v530, 16
        %v1475 = vpop.permute.xlu0 %1474
        %1476 = vrot.lane.b32.xlu0 %v1161, 16
        %v1477 = vpop.permute.xlu0 %1476
        %1478 = vrot.lane.b32.xlu0 %v1163, 16
        %v1479 = vpop.permute.xlu0 %1478
        %v1480 = vsel %vm558, %v1465, %v1473
        %v1481 = vsel %vm558, %v1467, %v1475
        %v1482 = vsel %vm558, %v1469, %v1477
        %v1483 = vsel %vm558, %v1471, %v1479
        %v1484 = vsel %vm558, %v1473, %v1465
        %v1485 = vsel %vm558, %v1475, %v1467
        %v1486 = vsel %vm558, %v1477, %v1469
        %v1487 = vsel %vm558, %v1479, %v1471
        %s1488 = scalar_lea.vmem %s3, 7
        %v1489 = vld [vmem:[%s1488] ss:$8 sm:$0x3]
        %v1491 = vperm.slane %v1489, 0
        %v1492 = vperm.slane %v1489, 1
        %v1495 = vmul.f32 %v1484, %v1491
        %v1496 = vmul.f32 %v1480, %v1492
        %v1497 = vmul.f32 %v1485, %v1491
        %v1498 = vmul.f32 %v1481, %v1492
        %v1499 = vmul.f32 %v1486, %v1491
        %v1500 = vmul.f32 %v1482, %v1492
        %v1501 = vmul.f32 %v1487, %v1491
        %v1502 = vmul.f32 %v1483, %v1492
        %1503 = vrot.lane.b32.xlu0 %v527, 15
        %v1504 = vpop.permute.xlu0 %1503
        %1505 = vrot.lane.b32.xlu0 %v529, 15
        %v1506 = vpop.permute.xlu0 %1505
        %1507 = vrot.lane.b32.xlu0 %v1160, 15
        %v1508 = vpop.permute.xlu0 %1507
        %1509 = vrot.lane.b32.xlu0 %v1162, 15
        %v1510 = vpop.permute.xlu0 %1509
        %1511 = vrot.lane.b32.xlu0 %v528, 15
        %v1512 = vpop.permute.xlu0 %1511
        %1513 = vrot.lane.b32.xlu0 %v530, 15
        %v1514 = vpop.permute.xlu0 %1513
        %1515 = vrot.lane.b32.xlu0 %v1161, 15
        %v1516 = vpop.permute.xlu0 %1515
        %1517 = vrot.lane.b32.xlu0 %v1163, 15
        %v1518 = vpop.permute.xlu0 %1517
        %v1519 = vsel %vm574, %v1504, %v1512
        %v1520 = vsel %vm574, %v1506, %v1514
        %v1521 = vsel %vm574, %v1508, %v1516
        %v1522 = vsel %vm574, %v1510, %v1518
        %v1523 = vsel %vm574, %v1512, %v1504
        %v1524 = vsel %vm574, %v1514, %v1506
        %v1525 = vsel %vm574, %v1516, %v1508
        %v1526 = vsel %vm574, %v1518, %v1510
        %s1527 = scalar_lea.vmem %s3, 16
        %v1528 = vld [vmem:[%s1527] ss:$8 sm:$0x3]
        %v1530 = vperm.slane %v1528, 0
        %v1531 = vperm.slane %v1528, 1
        %v1534 = vmul.f32 %v1523, %v1530
        %v1535 = vmul.f32 %v1519, %v1531
        %v1536 = vmul.f32 %v1524, %v1530
        %v1537 = vmul.f32 %v1520, %v1531
        %v1538 = vmul.f32 %v1525, %v1530
        %v1539 = vmul.f32 %v1521, %v1531
        %v1540 = vmul.f32 %v1526, %v1530
        %v1541 = vmul.f32 %v1522, %v1531
        %1542 = vrot.lane.b32.xlu0 %v527, 14
        %v1543 = vpop.permute.xlu0 %1542
        %1544 = vrot.lane.b32.xlu0 %v529, 14
        %v1545 = vpop.permute.xlu0 %1544
        %1546 = vrot.lane.b32.xlu0 %v1160, 14
        %v1547 = vpop.permute.xlu0 %1546
        %1548 = vrot.lane.b32.xlu0 %v1162, 14
        %v1549 = vpop.permute.xlu0 %1548
        %1550 = vrot.lane.b32.xlu0 %v528, 14
        %v1551 = vpop.permute.xlu0 %1550
        %1552 = vrot.lane.b32.xlu0 %v530, 14
        %v1553 = vpop.permute.xlu0 %1552
        %1554 = vrot.lane.b32.xlu0 %v1161, 14
        %v1555 = vpop.permute.xlu0 %1554
        %1556 = vrot.lane.b32.xlu0 %v1163, 14
        %v1557 = vpop.permute.xlu0 %1556
        %vm1558 = vcmp.lt.s32.totalorder %v542, 14
        %v1559 = vsel %vm1558, %v1543, %v1551
        %v1560 = vsel %vm1558, %v1545, %v1553
        %v1561 = vsel %vm1558, %v1547, %v1555
        %v1562 = vsel %vm1558, %v1549, %v1557
        %v1563 = vsel %vm1558, %v1551, %v1543
        %v1564 = vsel %vm1558, %v1553, %v1545
        %v1565 = vsel %vm1558, %v1555, %v1547
        %v1566 = vsel %vm1558, %v1557, %v1549
        %s1567 = scalar_lea.vmem %s3, 17
        %v1568 = vld [vmem:[%s1567] ss:$8 sm:$0x3]
        %v1570 = vperm.slane %v1568, 0
        %v1571 = vperm.slane %v1568, 1
        %v1574 = vmul.f32 %v1563, %v1570
        %v1575 = vmul.f32 %v1559, %v1571
        %v1576 = vmul.f32 %v1564, %v1570
        %v1577 = vmul.f32 %v1560, %v1571
        %v1578 = vmul.f32 %v1565, %v1570
        %v1579 = vmul.f32 %v1561, %v1571
        %v1580 = vmul.f32 %v1566, %v1570
        %v1581 = vmul.f32 %v1562, %v1571
        %v1582 = vpack.c.bf16 %v1419, %v1417
        %v1583 = vpack.c.bf16 %v1420, %v1418
        %v1584 = vpack.c.bf16 %v1423, %v1421
        %v1585 = vpack.c.bf16 %v1424, %v1422
        %v1586 = vpack.c.bf16 %v1458, %v1456
        %v1587 = vpack.c.bf16 %v1459, %v1457
        %v1588 = vpack.c.bf16 %v1462, %v1460
        %v1589 = vpack.c.bf16 %v1463, %v1461
        %v1590 = vpack.c.bf16 %v1497, %v1495
        %v1591 = vpack.c.bf16 %v1498, %v1496
        %v1592 = vpack.c.bf16 %v1501, %v1499
        %v1593 = vpack.c.bf16 %v1502, %v1500
        %v1594 = vpack.c.bf16 %v1536, %v1534
        %v1595 = vpack.c.bf16 %v1537, %v1535
        %v1596 = vpack.c.bf16 %v1540, %v1538
        %v1597 = vpack.c.bf16 %v1541, %v1539
        %v1598 = vpack.c.bf16 %v1576, %v1574
        %v1599 = vpack.c.bf16 %v1577, %v1575
        %v1600 = vpack.c.bf16 %v1580, %v1578
        %v1601 = vpack.c.bf16 %v1581, %v1579
        %s1602 = scalar_lea.vmem %s8, 8
        %v1603 = vld [vmem:[%s1602] sm:$0xff]
        %v1605 = vunpack.c.l.b16 %v1603
        %v1606 = vunpack.c.h.b16 %v1603
        %v1607 = vpack.c.b16 %v1605, %v1605
        %v1608 = vpack.c.b16 %v1606, %v1606
        %vm1610 = vcmask 261120
        %v1612 = vsel %vm1610, %v1608, 0
        %1614 = vmatpush.bf16.msra.mxu0 %v1596
        %1615 = vmatpush.bf16.msra.mxu0 %v1594
        %1616 = vmatpush.bf16.msra.mxu0 %v1592
        %1617 = vmatpush.bf16.msra.mxu0 %v1590
        %1618 = vmatpush.bf16.msra.mxu0 %v1588
        %1619 = vmatpush.bf16.msra.mxu0 %v1586
        %1620 = vmatpush.bf16.msra.mxu0 %v1584
        %1621 = vmatpush.bf16.msra.mxu0 %v1582
        %1622 = vmatmul.bf16.gmra.mxu0 %v1607
        %v1623 = vpop.f32.mrf.mxu0
        %v1624 = vadd.f32 0.0, %v1623
        %v1625 = vpop.f32.mrf.mxu0
        %1626 = vdwg.mxu0
        %1627 = vmatpush.bf16.msra.mxu0 0
        %1628 = vmatpush.bf16.msra.mxu0 0
        %1629 = vmatpush.bf16.msra.mxu0 0
        %1630 = vmatpush.bf16.msra.mxu0 0
        %1631 = vmatpush.bf16.msra.mxu0 0
        %1632 = vmatpush.bf16.msra.mxu0 0
        %1633 = vmatpush.bf16.msra.mxu0 %v1600
        %1634 = vmatpush.bf16.msra.mxu0 %v1598
        %1635 = vmatmul.bf16.gmra.mxu0 %v1612
        %v1636 = vpop.f32.mrf.mxu0
        %v1637 = vadd.f32 %v1624, %v1636
        %v1638 = vpop.f32.mrf.mxu0
        %1639 = vdwg.mxu0
        %1640 = vmatpush.bf16.msra.mxu0 %v1597
        %1641 = vmatpush.bf16.msra.mxu0 %v1595
        %1642 = vmatpush.bf16.msra.mxu0 %v1593
        %1643 = vmatpush.bf16.msra.mxu0 %v1591
        %1644 = vmatpush.bf16.msra.mxu0 %v1589
        %1645 = vmatpush.bf16.msra.mxu0 %v1587
        %1646 = vmatpush.bf16.msra.mxu0 %v1585
        %1647 = vmatpush.bf16.msra.mxu0 %v1583
        %1648 = vmatmul.bf16.gmra.mxu0 %v1607
        %v1649 = vpop.f32.mrf.mxu0
        %v1650 = vadd.f32 0.0, %v1649
        %v1651 = vpop.f32.mrf.mxu0
        %1652 = vdwg.mxu0
        %1653 = vmatpush.bf16.msra.mxu0 0
        %1654 = vmatpush.bf16.msra.mxu0 0
        %1655 = vmatpush.bf16.msra.mxu0 0
        %1656 = vmatpush.bf16.msra.mxu0 0
        %1657 = vmatpush.bf16.msra.mxu0 0
        %1658 = vmatpush.bf16.msra.mxu0 0
        %1659 = vmatpush.bf16.msra.mxu0 %v1601
        %1660 = vmatpush.bf16.msra.mxu0 %v1599
        %1661 = vmatmul.bf16.gmra.mxu0 %v1612
        %v1662 = vpop.f32.mrf.mxu0
        %v1663 = vadd.f32 %v1650, %v1662
        %v1664 = vpop.f32.mrf.mxu0
        %1665 = vdwg.mxu0
        %v1667 = vunpack.c.l.b16 %v1384
        %v1668 = vunpack.c.h.b16 %v1384
        %v1669 = vpack.c.b16 %v1667, %v1667
        %v1670 = vpack.c.b16 %v1668, %v1668
        %v1673 = vsel %vm1610, %v1670, 0
        %1675 = vmatpush.bf16.msra.mxu0 %v1378
        %1676 = vmatpush.bf16.msra.mxu0 %v1376
        %1677 = vmatpush.bf16.msra.mxu0 %v1374
        %1678 = vmatpush.bf16.msra.mxu0 %v1372
        %1679 = vmatpush.bf16.msra.mxu0 %v1370
        %1680 = vmatpush.bf16.msra.mxu0 %v1368
        %1681 = vmatpush.bf16.msra.mxu0 %v1366
        %1682 = vmatpush.bf16.msra.mxu0 %v1364
        %1683 = vmatmul.bf16.gmra.mxu0 %v1669
        %v1684 = vpop.f32.mrf.mxu0
        %v1685 = vadd.f32 %v1637, %v1684
        %v1686 = vpop.f32.mrf.mxu0
        %1687 = vdwg.mxu0
        %1688 = vmatpush.bf16.msra.mxu0 0
        %1689 = vmatpush.bf16.msra.mxu0 0
        %1690 = vmatpush.bf16.msra.mxu0 0
        %1691 = vmatpush.bf16.msra.mxu0 0
        %1692 = vmatpush.bf16.msra.mxu0 0
        %1693 = vmatpush.bf16.msra.mxu0 0
        %1694 = vmatpush.bf16.msra.mxu0 %v1382
        %1695 = vmatpush.bf16.msra.mxu0 %v1380
        %1696 = vmatmul.bf16.gmra.mxu0 %v1673
        %v1697 = vpop.f32.mrf.mxu0
        %v1698 = vadd.f32 %v1685, %v1697
        %v1699 = vpop.f32.mrf.mxu0
        %1700 = vdwg.mxu0
        %1701 = vmatpush.bf16.msra.mxu0 %v1379
        %1702 = vmatpush.bf16.msra.mxu0 %v1377
        %1703 = vmatpush.bf16.msra.mxu0 %v1375
        %1704 = vmatpush.bf16.msra.mxu0 %v1373
        %1705 = vmatpush.bf16.msra.mxu0 %v1371
        %1706 = vmatpush.bf16.msra.mxu0 %v1369
        %1707 = vmatpush.bf16.msra.mxu0 %v1367
        %1708 = vmatpush.bf16.msra.mxu0 %v1365
        %1709 = vmatmul.bf16.gmra.mxu0 %v1669
        %v1710 = vpop.f32.mrf.mxu0
        %v1711 = vadd.f32 %v1663, %v1710
        %v1712 = vpop.f32.mrf.mxu0
        %1713 = vdwg.mxu0
        %1714 = vmatpush.bf16.msra.mxu0 0
        %1715 = vmatpush.bf16.msra.mxu0 0
        %1716 = vmatpush.bf16.msra.mxu0 0
        %1717 = vmatpush.bf16.msra.mxu0 0
        %1718 = vmatpush.bf16.msra.mxu0 0
        %1719 = vmatpush.bf16.msra.mxu0 0
        %1720 = vmatpush.bf16.msra.mxu0 %v1383
        %1721 = vmatpush.bf16.msra.mxu0 %v1381
        %1722 = vmatmul.bf16.gmra.mxu0 %v1673
        %v1723 = vpop.f32.mrf.mxu0
        %v1724 = vadd.f32 %v1711, %v1723
        %v1725 = vpop.f32.mrf.mxu0
        %1726 = vdwg.mxu0
        %1727 = vrot.lane.b32.xlu0 %v527, 2
        %v1728 = vpop.permute.xlu0 %1727
        %1729 = vrot.lane.b32.xlu0 %v529, 2
        %v1730 = vpop.permute.xlu0 %1729
        %1731 = vrot.lane.b32.xlu0 %v1160, 2
        %v1732 = vpop.permute.xlu0 %1731
        %1733 = vrot.lane.b32.xlu0 %v1162, 2
        %v1734 = vpop.permute.xlu0 %1733
        %1735 = vrot.lane.b32.xlu0 %v528, 2
        %v1736 = vpop.permute.xlu0 %1735
        %1737 = vrot.lane.b32.xlu0 %v530, 2
        %v1738 = vpop.permute.xlu0 %1737
        %1739 = vrot.lane.b32.xlu0 %v1161, 2
        %v1740 = vpop.permute.xlu0 %1739
        %1741 = vrot.lane.b32.xlu0 %v1163, 2
        %v1742 = vpop.permute.xlu0 %1741
        %vm1743 = vcmp.lt.s32.totalorder %v542, 2
        %v1744 = vsel %vm1743, %v1728, %v1736
        %v1745 = vsel %vm1743, %v1730, %v1738
        %v1746 = vsel %vm1743, %v1732, %v1740
        %v1747 = vsel %vm1743, %v1734, %v1742
        %v1748 = vsel %vm1743, %v1736, %v1728
        %v1749 = vsel %vm1743, %v1738, %v1730
        %v1750 = vsel %vm1743, %v1740, %v1732
        %v1751 = vsel %vm1743, %v1742, %v1734
        %s1752 = scalar_lea.vmem %s3, 18
        %v1753 = vld [vmem:[%s1752] ss:$8 sm:$0x3]
        %v1755 = vperm.slane %v1753, 0
        %v1756 = vperm.slane %v1753, 1
        %v1759 = vmul.f32 %v1748, %v1755
        %v1760 = vmul.f32 %v1744, %v1756
        %v1761 = vmul.f32 %v1749, %v1755
        %v1762 = vmul.f32 %v1745, %v1756
        %v1763 = vmul.f32 %v1750, %v1755
        %v1764 = vmul.f32 %v1746, %v1756
        %v1765 = vmul.f32 %v1751, %v1755
        %v1766 = vmul.f32 %v1747, %v1756
        %1767 = vrot.lane.b32.xlu0 %v527, 1
        %v1768 = vpop.permute.xlu0 %1767
        %1769 = vrot.lane.b32.xlu0 %v529, 1
        %v1770 = vpop.permute.xlu0 %1769
        %1771 = vrot.lane.b32.xlu0 %v1160, 1
        %v1772 = vpop.permute.xlu0 %1771
        %1773 = vrot.lane.b32.xlu0 %v1162, 1
        %v1774 = vpop.permute.xlu0 %1773
        %1775 = vrot.lane.b32.xlu0 %v528, 1
        %v1776 = vpop.permute.xlu0 %1775
        %1777 = vrot.lane.b32.xlu0 %v530, 1
        %v1778 = vpop.permute.xlu0 %1777
        %1779 = vrot.lane.b32.xlu0 %v1161, 1
        %v1780 = vpop.permute.xlu0 %1779
        %1781 = vrot.lane.b32.xlu0 %v1163, 1
        %v1782 = vpop.permute.xlu0 %1781
        %v1783 = vsel %vm612, %v1768, %v1776
        %v1784 = vsel %vm612, %v1770, %v1778
        %v1785 = vsel %vm612, %v1772, %v1780
        %v1786 = vsel %vm612, %v1774, %v1782
        %v1787 = vsel %vm612, %v1776, %v1768
        %v1788 = vsel %vm612, %v1778, %v1770
        %v1789 = vsel %vm612, %v1780, %v1772
        %v1790 = vsel %vm612, %v1782, %v1774
        %s1791 = scalar_lea.vmem %s3, 19
        %v1792 = vld [vmem:[%s1791] ss:$8 sm:$0x3]
        %v1794 = vperm.slane %v1792, 0
        %v1795 = vperm.slane %v1792, 1
        %v1798 = vmul.f32 %v1787, %v1794
        %v1799 = vmul.f32 %v1783, %v1795
        %v1800 = vmul.f32 %v1788, %v1794
        %v1801 = vmul.f32 %v1784, %v1795
        %v1802 = vmul.f32 %v1789, %v1794
        %v1803 = vmul.f32 %v1785, %v1795
        %v1804 = vmul.f32 %v1790, %v1794
        %v1805 = vmul.f32 %v1786, %v1795
        %1806 = vrot.lane.b32.xlu0 %v527, 127
        %v1807 = vpop.permute.xlu0 %1806
        %1808 = vrot.lane.b32.xlu0 %v529, 127
        %v1809 = vpop.permute.xlu0 %1808
        %1810 = vrot.lane.b32.xlu0 %v1160, 127
        %v1811 = vpop.permute.xlu0 %1810
        %1812 = vrot.lane.b32.xlu0 %v1162, 127
        %v1813 = vpop.permute.xlu0 %1812
        %1814 = vrot.lane.b32.xlu0 %v528, 127
        %v1815 = vpop.permute.xlu0 %1814
        %1816 = vrot.lane.b32.xlu0 %v530, 127
        %v1817 = vpop.permute.xlu0 %1816
        %1818 = vrot.lane.b32.xlu0 %v1161, 127
        %v1819 = vpop.permute.xlu0 %1818
        %1820 = vrot.lane.b32.xlu0 %v1163, 127
        %v1821 = vpop.permute.xlu0 %1820
        %v1822 = vsel %vm628, %v1807, %v1815
        %v1823 = vsel %vm628, %v1809, %v1817
        %v1824 = vsel %vm628, %v1811, %v1819
        %v1825 = vsel %vm628, %v1813, %v1821
        %v1826 = vsel %vm628, %v1815, %v1807
        %v1827 = vsel %vm628, %v1817, %v1809
        %v1828 = vsel %vm628, %v1819, %v1811
        %v1829 = vsel %vm628, %v1821, %v1813
        %s1830 = scalar_lea.vmem %s3, 21
        %v1831 = vld [vmem:[%s1830] ss:$8 sm:$0x3]
        %v1833 = vperm.slane %v1831, 0
        %v1834 = vperm.slane %v1831, 1
        %v1837 = vmul.f32 %v1822, %v1833
        %v1838 = vmul.f32 %v1826, %v1834
        %v1839 = vmul.f32 %v1823, %v1833
        %v1840 = vmul.f32 %v1827, %v1834
        %v1841 = vmul.f32 %v1824, %v1833
        %v1842 = vmul.f32 %v1828, %v1834
        %v1843 = vmul.f32 %v1825, %v1833
        %v1844 = vmul.f32 %v1829, %v1834
        %1845 = vrot.lane.b32.xlu0 %v527, 126
        %v1846 = vpop.permute.xlu0 %1845
        %1847 = vrot.lane.b32.xlu0 %v529, 126
        %v1848 = vpop.permute.xlu0 %1847
        %1849 = vrot.lane.b32.xlu0 %v1160, 126
        %v1850 = vpop.permute.xlu0 %1849
        %1851 = vrot.lane.b32.xlu0 %v1162, 126
        %v1852 = vpop.permute.xlu0 %1851
        %1853 = vrot.lane.b32.xlu0 %v528, 126
        %v1854 = vpop.permute.xlu0 %1853
        %1855 = vrot.lane.b32.xlu0 %v530, 126
        %v1856 = vpop.permute.xlu0 %1855
        %1857 = vrot.lane.b32.xlu0 %v1161, 126
        %v1858 = vpop.permute.xlu0 %1857
        %1859 = vrot.lane.b32.xlu0 %v1163, 126
        %v1860 = vpop.permute.xlu0 %1859
        %vm1861 = vcmp.lt.s32.totalorder %v542, 126
        %v1862 = vsel %vm1861, %v1846, %v1854
        %v1863 = vsel %vm1861, %v1848, %v1856
        %v1864 = vsel %vm1861, %v1850, %v1858
        %v1865 = vsel %vm1861, %v1852, %v1860
        %v1866 = vsel %vm1861, %v1854, %v1846
        %v1867 = vsel %vm1861, %v1856, %v1848
        %v1868 = vsel %vm1861, %v1858, %v1850
        %v1869 = vsel %vm1861, %v1860, %v1852
        %s1870 = scalar_lea.vmem %s3, 22
        %v1871 = vld [vmem:[%s1870] ss:$8 sm:$0x3]
        %v1873 = vperm.slane %v1871, 0
        %v1874 = vperm.slane %v1871, 1
        %v1877 = vmul.f32 %v1862, %v1873
        %v1878 = vmul.f32 %v1866, %v1874
        %v1879 = vmul.f32 %v1863, %v1873
        %v1880 = vmul.f32 %v1867, %v1874
        %v1881 = vmul.f32 %v1864, %v1873
        %v1882 = vmul.f32 %v1868, %v1874
        %v1883 = vmul.f32 %v1865, %v1873
        %v1884 = vmul.f32 %v1869, %v1874
        %v1885 = vpack.c.bf16 %v1761, %v1759
        %v1886 = vpack.c.bf16 %v1762, %v1760
        %v1887 = vpack.c.bf16 %v1765, %v1763
        %v1888 = vpack.c.bf16 %v1766, %v1764
        %v1889 = vpack.c.bf16 %v1800, %v1798
        %v1890 = vpack.c.bf16 %v1801, %v1799
        %v1891 = vpack.c.bf16 %v1804, %v1802
        %v1892 = vpack.c.bf16 %v1805, %v1803
        %v1893 = vpack.c.bf16 %v529, %v527
        %v1894 = vpack.c.bf16 %v530, %v528
        %v1895 = vpack.c.bf16 %v1162, %v1160
        %v1896 = vpack.c.bf16 %v1163, %v1161
        %v1897 = vpack.c.bf16 %v1839, %v1837
        %v1898 = vpack.c.bf16 %v1840, %v1838
        %v1899 = vpack.c.bf16 %v1843, %v1841
        %v1900 = vpack.c.bf16 %v1844, %v1842
        %v1901 = vpack.c.bf16 %v1879, %v1877
        %v1902 = vpack.c.bf16 %v1880, %v1878
        %v1903 = vpack.c.bf16 %v1883, %v1881
        %v1904 = vpack.c.bf16 %v1884, %v1882
        %s1905 = scalar_lea.vmem %s8, 16
        %v1906 = vld [vmem:[%s1905] sm:$0xff]
        %v1908 = vunpack.c.l.b16 %v1906
        %v1909 = vunpack.c.h.b16 %v1906
        %v1910 = vpack.c.b16 %v1908, %v1908
        %v1911 = vpack.c.b16 %v1909, %v1909
        %v1914 = vsel %vm1610, %v1911, 0
        %1916 = vmatpush.bf16.msra.mxu0 %v1899
        %1917 = vmatpush.bf16.msra.mxu0 %v1897
        %1918 = vmatpush.bf16.msra.mxu0 %v1895
        %1919 = vmatpush.bf16.msra.mxu0 %v1893
        %1920 = vmatpush.bf16.msra.mxu0 %v1891
        %1921 = vmatpush.bf16.msra.mxu0 %v1889
        %1922 = vmatpush.bf16.msra.mxu0 %v1887
        %1923 = vmatpush.bf16.msra.mxu0 %v1885
        %1924 = vmatmul.bf16.gmra.mxu0 %v1910
        %v1925 = vpop.f32.mrf.mxu0
        %v1926 = vadd.f32 0.0, %v1925
        %v1927 = vpop.f32.mrf.mxu0
        %1928 = vdwg.mxu0
        %1929 = vmatpush.bf16.msra.mxu0 0
        %1930 = vmatpush.bf16.msra.mxu0 0
        %1931 = vmatpush.bf16.msra.mxu0 0
        %1932 = vmatpush.bf16.msra.mxu0 0
        %1933 = vmatpush.bf16.msra.mxu0 0
        %1934 = vmatpush.bf16.msra.mxu0 0
        %1935 = vmatpush.bf16.msra.mxu0 %v1903
        %1936 = vmatpush.bf16.msra.mxu0 %v1901
        %1937 = vmatmul.bf16.gmra.mxu0 %v1914
        %v1938 = vpop.f32.mrf.mxu0
        %v1939 = vadd.f32 %v1926, %v1938
        %v1940 = vpop.f32.mrf.mxu0
        %1941 = vdwg.mxu0
        %1942 = vmatpush.bf16.msra.mxu0 %v1900
        %1943 = vmatpush.bf16.msra.mxu0 %v1898
        %1944 = vmatpush.bf16.msra.mxu0 %v1896
        %1945 = vmatpush.bf16.msra.mxu0 %v1894
        %1946 = vmatpush.bf16.msra.mxu0 %v1892
        %1947 = vmatpush.bf16.msra.mxu0 %v1890
        %1948 = vmatpush.bf16.msra.mxu0 %v1888
        %1949 = vmatpush.bf16.msra.mxu0 %v1886
        %1950 = vmatmul.bf16.gmra.mxu0 %v1910
        %v1951 = vpop.f32.mrf.mxu0
        %v1952 = vadd.f32 0.0, %v1951
        %v1953 = vpop.f32.mrf.mxu0
        %1954 = vdwg.mxu0
        %1955 = vmatpush.bf16.msra.mxu0 0
        %1956 = vmatpush.bf16.msra.mxu0 0
        %1957 = vmatpush.bf16.msra.mxu0 0
        %1958 = vmatpush.bf16.msra.mxu0 0
        %1959 = vmatpush.bf16.msra.mxu0 0
        %1960 = vmatpush.bf16.msra.mxu0 0
        %1961 = vmatpush.bf16.msra.mxu0 %v1904
        %1962 = vmatpush.bf16.msra.mxu0 %v1902
        %1963 = vmatmul.bf16.gmra.mxu0 %v1914
        %v1964 = vpop.f32.mrf.mxu0
        %v1965 = vadd.f32 %v1952, %v1964
        %v1966 = vpop.f32.mrf.mxu0
        %1967 = vdwg.mxu0
        %v1968 = vadd.f32 %v1698, %v1939
        %v1969 = vadd.f32 %v1724, %v1965
        %1970 = vrot.lane.b32.xlu0 %v527, 114
        %v1971 = vpop.permute.xlu0 %1970
        %1972 = vrot.lane.b32.xlu0 %v529, 114
        %v1973 = vpop.permute.xlu0 %1972
        %1974 = vrot.lane.b32.xlu0 %v1160, 114
        %v1975 = vpop.permute.xlu0 %1974
        %1976 = vrot.lane.b32.xlu0 %v1162, 114
        %v1977 = vpop.permute.xlu0 %1976
        %1978 = vrot.lane.b32.xlu0 %v528, 114
        %v1979 = vpop.permute.xlu0 %1978
        %1980 = vrot.lane.b32.xlu0 %v530, 114
        %v1981 = vpop.permute.xlu0 %1980
        %1982 = vrot.lane.b32.xlu0 %v1161, 114
        %v1983 = vpop.permute.xlu0 %1982
        %1984 = vrot.lane.b32.xlu0 %v1163, 114
        %v1985 = vpop.permute.xlu0 %1984
        %vm1986 = vcmp.lt.s32.totalorder %v542, 114
        %v1987 = vsel %vm1986, %v1971, %v1979
        %v1988 = vsel %vm1986, %v1973, %v1981
        %v1989 = vsel %vm1986, %v1975, %v1983
        %v1990 = vsel %vm1986, %v1977, %v1985
        %v1991 = vsel %vm1986, %v1979, %v1971
        %v1992 = vsel %vm1986, %v1981, %v1973
        %v1993 = vsel %vm1986, %v1983, %v1975
        %v1994 = vsel %vm1986, %v1985, %v1977
        %s1995 = scalar_lea.vmem %s3, 23
        %v1996 = vld [vmem:[%s1995] ss:$8 sm:$0x3]
        %v1998 = vperm.slane %v1996, 0
        %v1999 = vperm.slane %v1996, 1
        %v2002 = vmul.f32 %v1987, %v1998
        %v2003 = vmul.f32 %v1991, %v1999
        %v2004 = vmul.f32 %v1988, %v1998
        %v2005 = vmul.f32 %v1992, %v1999
        %v2006 = vmul.f32 %v1989, %v1998
        %v2007 = vmul.f32 %v1993, %v1999
        %v2008 = vmul.f32 %v1990, %v1998
        %v2009 = vmul.f32 %v1994, %v1999
        %2010 = vrot.lane.b32.xlu0 %v527, 113
        %v2011 = vpop.permute.xlu0 %2010
        %2012 = vrot.lane.b32.xlu0 %v529, 113
        %v2013 = vpop.permute.xlu0 %2012
        %2014 = vrot.lane.b32.xlu0 %v1160, 113
        %v2015 = vpop.permute.xlu0 %2014
        %2016 = vrot.lane.b32.xlu0 %v1162, 113
        %v2017 = vpop.permute.xlu0 %2016
        %2018 = vrot.lane.b32.xlu0 %v528, 113
        %v2019 = vpop.permute.xlu0 %2018
        %2020 = vrot.lane.b32.xlu0 %v530, 113
        %v2021 = vpop.permute.xlu0 %2020
        %2022 = vrot.lane.b32.xlu0 %v1161, 113
        %v2023 = vpop.permute.xlu0 %2022
        %2024 = vrot.lane.b32.xlu0 %v1163, 113
        %v2025 = vpop.permute.xlu0 %2024
        %v2026 = vsel %vm746, %v2011, %v2019
        %v2027 = vsel %vm746, %v2013, %v2021
        %v2028 = vsel %vm746, %v2015, %v2023
        %v2029 = vsel %vm746, %v2017, %v2025
        %v2030 = vsel %vm746, %v2019, %v2011
        %v2031 = vsel %vm746, %v2021, %v2013
        %v2032 = vsel %vm746, %v2023, %v2015
        %v2033 = vsel %vm746, %v2025, %v2017
        %s2034 = scalar_lea.vmem %s3, 32
        %v2035 = vld [vmem:[%s2034] ss:$8 sm:$0x3]
        %v2037 = vperm.slane %v2035, 0
        %v2038 = vperm.slane %v2035, 1
        %v2041 = vmul.f32 %v2026, %v2037
        %v2042 = vmul.f32 %v2030, %v2038
        %v2043 = vmul.f32 %v2027, %v2037
        %v2044 = vmul.f32 %v2031, %v2038
        %v2045 = vmul.f32 %v2028, %v2037
        %v2046 = vmul.f32 %v2032, %v2038
        %v2047 = vmul.f32 %v2029, %v2037
        %v2048 = vmul.f32 %v2033, %v2038
        %2049 = vrot.lane.b32.xlu0 %v527, 112
        %v2050 = vpop.permute.xlu0 %2049
        %2051 = vrot.lane.b32.xlu0 %v529, 112
        %v2052 = vpop.permute.xlu0 %2051
        %2053 = vrot.lane.b32.xlu0 %v1160, 112
        %v2054 = vpop.permute.xlu0 %2053
        %2055 = vrot.lane.b32.xlu0 %v1162, 112
        %v2056 = vpop.permute.xlu0 %2055
        %2057 = vrot.lane.b32.xlu0 %v528, 112
        %v2058 = vpop.permute.xlu0 %2057
        %2059 = vrot.lane.b32.xlu0 %v530, 112
        %v2060 = vpop.permute.xlu0 %2059
        %2061 = vrot.lane.b32.xlu0 %v1161, 112
        %v2062 = vpop.permute.xlu0 %2061
        %2063 = vrot.lane.b32.xlu0 %v1163, 112
        %v2064 = vpop.permute.xlu0 %2063
        %v2065 = vsel %vm762, %v2050, %v2058
        %v2066 = vsel %vm762, %v2052, %v2060
        %v2067 = vsel %vm762, %v2054, %v2062
        %v2068 = vsel %vm762, %v2056, %v2064
        %v2069 = vsel %vm762, %v2058, %v2050
        %v2070 = vsel %vm762, %v2060, %v2052
        %v2071 = vsel %vm762, %v2062, %v2054
        %v2072 = vsel %vm762, %v2064, %v2056
        %s2073 = scalar_lea.vmem %s3, 33
        %v2074 = vld [vmem:[%s2073] ss:$8 sm:$0x3]
        %v2076 = vperm.slane %v2074, 0
        %v2077 = vperm.slane %v2074, 1
        %v2080 = vmul.f32 %v2065, %v2076
        %v2081 = vmul.f32 %v2069, %v2077
        %v2082 = vmul.f32 %v2066, %v2076
        %v2083 = vmul.f32 %v2070, %v2077
        %v2084 = vmul.f32 %v2067, %v2076
        %v2085 = vmul.f32 %v2071, %v2077
        %v2086 = vmul.f32 %v2068, %v2076
        %v2087 = vmul.f32 %v2072, %v2077
        %2088 = vrot.lane.b32.xlu0 %v527, 111
        %v2089 = vpop.permute.xlu0 %2088
        %2090 = vrot.lane.b32.xlu0 %v529, 111
        %v2091 = vpop.permute.xlu0 %2090
        %2092 = vrot.lane.b32.xlu0 %v1160, 111
        %v2093 = vpop.permute.xlu0 %2092
        %2094 = vrot.lane.b32.xlu0 %v1162, 111
        %v2095 = vpop.permute.xlu0 %2094
        %2096 = vrot.lane.b32.xlu0 %v528, 111
        %v2097 = vpop.permute.xlu0 %2096
        %2098 = vrot.lane.b32.xlu0 %v530, 111
        %v2099 = vpop.permute.xlu0 %2098
        %2100 = vrot.lane.b32.xlu0 %v1161, 111
        %v2101 = vpop.permute.xlu0 %2100
        %2102 = vrot.lane.b32.xlu0 %v1163, 111
        %v2103 = vpop.permute.xlu0 %2102
        %v2104 = vsel %vm778, %v2089, %v2097
        %v2105 = vsel %vm778, %v2091, %v2099
        %v2106 = vsel %vm778, %v2093, %v2101
        %v2107 = vsel %vm778, %v2095, %v2103
        %v2108 = vsel %vm778, %v2097, %v2089
        %v2109 = vsel %vm778, %v2099, %v2091
        %v2110 = vsel %vm778, %v2101, %v2093
        %v2111 = vsel %vm778, %v2103, %v2095
        %s2112 = scalar_lea.vmem %s3, 34
        %v2113 = vld [vmem:[%s2112] ss:$8 sm:$0x3]
        %v2115 = vperm.slane %v2113, 0
        %v2116 = vperm.slane %v2113, 1
        %v2119 = vmul.f32 %v2104, %v2115
        %v2120 = vmul.f32 %v2108, %v2116
        %v2121 = vmul.f32 %v2105, %v2115
        %v2122 = vmul.f32 %v2109, %v2116
        %v2123 = vmul.f32 %v2106, %v2115
        %v2124 = vmul.f32 %v2110, %v2116
        %v2125 = vmul.f32 %v2107, %v2115
        %v2126 = vmul.f32 %v2111, %v2116
        %2127 = vrot.lane.b32.xlu0 %v527, 110
        %v2128 = vpop.permute.xlu0 %2127
        %2129 = vrot.lane.b32.xlu0 %v529, 110
        %v2130 = vpop.permute.xlu0 %2129
        %2131 = vrot.lane.b32.xlu0 %v1160, 110
        %v2132 = vpop.permute.xlu0 %2131
        %2133 = vrot.lane.b32.xlu0 %v1162, 110
        %v2134 = vpop.permute.xlu0 %2133
        %2135 = vrot.lane.b32.xlu0 %v528, 110
        %v2136 = vpop.permute.xlu0 %2135
        %2137 = vrot.lane.b32.xlu0 %v530, 110
        %v2138 = vpop.permute.xlu0 %2137
        %2139 = vrot.lane.b32.xlu0 %v1161, 110
        %v2140 = vpop.permute.xlu0 %2139
        %2141 = vrot.lane.b32.xlu0 %v1163, 110
        %v2142 = vpop.permute.xlu0 %2141
        %vm2143 = vcmp.lt.s32.totalorder %v542, 110
        %v2144 = vsel %vm2143, %v2128, %v2136
        %v2145 = vsel %vm2143, %v2130, %v2138
        %v2146 = vsel %vm2143, %v2132, %v2140
        %v2147 = vsel %vm2143, %v2134, %v2142
        %v2148 = vsel %vm2143, %v2136, %v2128
        %v2149 = vsel %vm2143, %v2138, %v2130
        %v2150 = vsel %vm2143, %v2140, %v2132
        %v2151 = vsel %vm2143, %v2142, %v2134
        %s2152 = scalar_lea.vmem %s3, 35
        %v2153 = vld [vmem:[%s2152] ss:$8 sm:$0x3]
        %v2155 = vperm.slane %v2153, 0
        %v2156 = vperm.slane %v2153, 1
        %v2159 = vmul.f32 %v2144, %v2155
        %v2160 = vmul.f32 %v2148, %v2156
        %v2161 = vmul.f32 %v2145, %v2155
        %v2162 = vmul.f32 %v2149, %v2156
        %v2163 = vmul.f32 %v2146, %v2155
        %v2164 = vmul.f32 %v2150, %v2156
        %v2165 = vmul.f32 %v2147, %v2155
        %v2166 = vmul.f32 %v2151, %v2156
        %v2167 = vpack.c.bf16 %v2004, %v2002
        %v2168 = vpack.c.bf16 %v2005, %v2003
        %v2169 = vpack.c.bf16 %v2008, %v2006
        %v2170 = vpack.c.bf16 %v2009, %v2007
        %v2171 = vpack.c.bf16 %v2043, %v2041
        %v2172 = vpack.c.bf16 %v2044, %v2042
        %v2173 = vpack.c.bf16 %v2047, %v2045
        %v2174 = vpack.c.bf16 %v2048, %v2046
        %v2175 = vpack.c.bf16 %v2082, %v2080
        %v2176 = vpack.c.bf16 %v2083, %v2081
        %v2177 = vpack.c.bf16 %v2086, %v2084
        %v2178 = vpack.c.bf16 %v2087, %v2085
        %v2179 = vpack.c.bf16 %v2121, %v2119
        %v2180 = vpack.c.bf16 %v2122, %v2120
        %v2181 = vpack.c.bf16 %v2125, %v2123
        %v2182 = vpack.c.bf16 %v2126, %v2124
        %v2183 = vpack.c.bf16 %v2161, %v2159
        %v2184 = vpack.c.bf16 %v2162, %v2160
        %v2185 = vpack.c.bf16 %v2165, %v2163
        %v2186 = vpack.c.bf16 %v2166, %v2164
        %s2187 = scalar_lea.vmem %s8, 24
        %v2188 = vld [vmem:[%s2187] sm:$0xff]
        %v2190 = vunpack.c.l.b16 %v2188
        %v2191 = vunpack.c.h.b16 %v2188
        %v2192 = vpack.c.b16 %v2190, %v2190
        %v2193 = vpack.c.b16 %v2191, %v2191
        %v2196 = vsel %vm1610, %v2193, 0
        %2198 = vmatpush.bf16.msra.mxu0 %v2181
        %2199 = vmatpush.bf16.msra.mxu0 %v2179
        %2200 = vmatpush.bf16.msra.mxu0 %v2177
        %2201 = vmatpush.bf16.msra.mxu0 %v2175
        %2202 = vmatpush.bf16.msra.mxu0 %v2173
        %2203 = vmatpush.bf16.msra.mxu0 %v2171
        %2204 = vmatpush.bf16.msra.mxu0 %v2169
        %2205 = vmatpush.bf16.msra.mxu0 %v2167
        %2206 = vmatmul.bf16.gmra.mxu0 %v2192
        %v2207 = vpop.f32.mrf.mxu0
        %v2208 = vadd.f32 0.0, %v2207
        %v2209 = vpop.f32.mrf.mxu0
        %2210 = vdwg.mxu0
        %2211 = vmatpush.bf16.msra.mxu0 0
        %2212 = vmatpush.bf16.msra.mxu0 0
        %2213 = vmatpush.bf16.msra.mxu0 0
        %2214 = vmatpush.bf16.msra.mxu0 0
        %2215 = vmatpush.bf16.msra.mxu0 0
        %2216 = vmatpush.bf16.msra.mxu0 0
        %2217 = vmatpush.bf16.msra.mxu0 %v2185
        %2218 = vmatpush.bf16.msra.mxu0 %v2183
        %2219 = vmatmul.bf16.gmra.mxu0 %v2196
        %v2220 = vpop.f32.mrf.mxu0
        %v2221 = vadd.f32 %v2208, %v2220
        %v2222 = vpop.f32.mrf.mxu0
        %2223 = vdwg.mxu0
        %2224 = vmatpush.bf16.msra.mxu0 %v2182
        %2225 = vmatpush.bf16.msra.mxu0 %v2180
        %2226 = vmatpush.bf16.msra.mxu0 %v2178
        %2227 = vmatpush.bf16.msra.mxu0 %v2176
        %2228 = vmatpush.bf16.msra.mxu0 %v2174
        %2229 = vmatpush.bf16.msra.mxu0 %v2172
        %2230 = vmatpush.bf16.msra.mxu0 %v2170
        %2231 = vmatpush.bf16.msra.mxu0 %v2168
        %2232 = vmatmul.bf16.gmra.mxu0 %v2192
        %v2233 = vpop.f32.mrf.mxu0
        %v2234 = vadd.f32 0.0, %v2233
        %v2235 = vpop.f32.mrf.mxu0
        %2236 = vdwg.mxu0
        %2237 = vmatpush.bf16.msra.mxu0 0
        %2238 = vmatpush.bf16.msra.mxu0 0
        %2239 = vmatpush.bf16.msra.mxu0 0
        %2240 = vmatpush.bf16.msra.mxu0 0
        %2241 = vmatpush.bf16.msra.mxu0 0
        %2242 = vmatpush.bf16.msra.mxu0 0
        %2243 = vmatpush.bf16.msra.mxu0 %v2186
        %2244 = vmatpush.bf16.msra.mxu0 %v2184
        %2245 = vmatmul.bf16.gmra.mxu0 %v2196
        %v2246 = vpop.f32.mrf.mxu0
        %v2247 = vadd.f32 %v2234, %v2246
        %v2248 = vpop.f32.mrf.mxu0
        %2249 = vdwg.mxu0
        %v2250 = vadd.f32 %v1968, %v2221
        %v2251 = vadd.f32 %v1969, %v2247
        %2252 = vrot.lane.b32.xlu0 %v527, 98
        %v2253 = vpop.permute.xlu0 %2252
        %2254 = vrot.lane.b32.xlu0 %v529, 98
        %v2255 = vpop.permute.xlu0 %2254
        %2256 = vrot.lane.b32.xlu0 %v1160, 98
        %v2257 = vpop.permute.xlu0 %2256
        %2258 = vrot.lane.b32.xlu0 %v1162, 98
        %v2259 = vpop.permute.xlu0 %2258
        %2260 = vrot.lane.b32.xlu0 %v528, 98
        %v2261 = vpop.permute.xlu0 %2260
        %2262 = vrot.lane.b32.xlu0 %v530, 98
        %v2263 = vpop.permute.xlu0 %2262
        %2264 = vrot.lane.b32.xlu0 %v1161, 98
        %v2265 = vpop.permute.xlu0 %2264
        %2266 = vrot.lane.b32.xlu0 %v1163, 98
        %v2267 = vpop.permute.xlu0 %2266
        %vm2268 = vcmp.lt.s32.totalorder %v542, 98
        %v2269 = vsel %vm2268, %v2253, %v2261
        %v2270 = vsel %vm2268, %v2255, %v2263
        %v2271 = vsel %vm2268, %v2257, %v2265
        %v2272 = vsel %vm2268, %v2259, %v2267
        %v2273 = vsel %vm2268, %v2261, %v2253
        %v2274 = vsel %vm2268, %v2263, %v2255
        %v2275 = vsel %vm2268, %v2265, %v2257
        %v2276 = vsel %vm2268, %v2267, %v2259
        %s2277 = scalar_lea.vmem %s3, 36
        %v2278 = vld [vmem:[%s2277] ss:$8 sm:$0x3]
        %v2280 = vperm.slane %v2278, 0
        %v2281 = vperm.slane %v2278, 1
        %v2284 = vmul.f32 %v2269, %v2280
        %v2285 = vmul.f32 %v2273, %v2281
        %v2286 = vmul.f32 %v2270, %v2280
        %v2287 = vmul.f32 %v2274, %v2281
        %v2288 = vmul.f32 %v2271, %v2280
        %v2289 = vmul.f32 %v2275, %v2281
        %v2290 = vmul.f32 %v2272, %v2280
        %v2291 = vmul.f32 %v2276, %v2281
        %2292 = vrot.lane.b32.xlu0 %v527, 97
        %v2293 = vpop.permute.xlu0 %2292
        %2294 = vrot.lane.b32.xlu0 %v529, 97
        %v2295 = vpop.permute.xlu0 %2294
        %2296 = vrot.lane.b32.xlu0 %v1160, 97
        %v2297 = vpop.permute.xlu0 %2296
        %2298 = vrot.lane.b32.xlu0 %v1162, 97
        %v2299 = vpop.permute.xlu0 %2298
        %2300 = vrot.lane.b32.xlu0 %v528, 97
        %v2301 = vpop.permute.xlu0 %2300
        %2302 = vrot.lane.b32.xlu0 %v530, 97
        %v2303 = vpop.permute.xlu0 %2302
        %2304 = vrot.lane.b32.xlu0 %v1161, 97
        %v2305 = vpop.permute.xlu0 %2304
        %2306 = vrot.lane.b32.xlu0 %v1163, 97
        %v2307 = vpop.permute.xlu0 %2306
        %vm2308 = vcmp.lt.s32.totalorder %v542, 97
        %v2309 = vsel %vm2308, %v2293, %v2301
        %v2310 = vsel %vm2308, %v2295, %v2303
        %v2311 = vsel %vm2308, %v2297, %v2305
        %v2312 = vsel %vm2308, %v2299, %v2307
        %v2313 = vsel %vm2308, %v2301, %v2293
        %v2314 = vsel %vm2308, %v2303, %v2295
        %v2315 = vsel %vm2308, %v2305, %v2297
        %v2316 = vsel %vm2308, %v2307, %v2299
        %s2317 = scalar_lea.vmem %s3, 37
        %v2318 = vld [vmem:[%s2317] ss:$8 sm:$0x3]
        %v2320 = vperm.slane %v2318, 0
        %v2321 = vperm.slane %v2318, 1
        %v2324 = vmul.f32 %v2309, %v2320
        %v2325 = vmul.f32 %v2313, %v2321
        %v2326 = vmul.f32 %v2310, %v2320
        %v2327 = vmul.f32 %v2314, %v2321
        %v2328 = vmul.f32 %v2311, %v2320
        %v2329 = vmul.f32 %v2315, %v2321
        %v2330 = vmul.f32 %v2312, %v2320
        %v2331 = vmul.f32 %v2316, %v2321
        %2332 = vrot.lane.b32.xlu0 %v527, 96
        %v2333 = vpop.permute.xlu0 %2332
        %2334 = vrot.lane.b32.xlu0 %v529, 96
        %v2335 = vpop.permute.xlu0 %2334
        %2336 = vrot.lane.b32.xlu0 %v1160, 96
        %v2337 = vpop.permute.xlu0 %2336
        %2338 = vrot.lane.b32.xlu0 %v1162, 96
        %v2339 = vpop.permute.xlu0 %2338
        %2340 = vrot.lane.b32.xlu0 %v528, 96
        %v2341 = vpop.permute.xlu0 %2340
        %2342 = vrot.lane.b32.xlu0 %v530, 96
        %v2343 = vpop.permute.xlu0 %2342
        %2344 = vrot.lane.b32.xlu0 %v1161, 96
        %v2345 = vpop.permute.xlu0 %2344
        %2346 = vrot.lane.b32.xlu0 %v1163, 96
        %v2347 = vpop.permute.xlu0 %2346
        %vm2348 = vcmp.lt.s32.totalorder %v542, 96
        %v2349 = vsel %vm2348, %v2333, %v2341
        %v2350 = vsel %vm2348, %v2335, %v2343
        %v2351 = vsel %vm2348, %v2337, %v2345
        %v2352 = vsel %vm2348, %v2339, %v2347
        %v2353 = vsel %vm2348, %v2341, %v2333
        %v2354 = vsel %vm2348, %v2343, %v2335
        %v2355 = vsel %vm2348, %v2345, %v2337
        %v2356 = vsel %vm2348, %v2347, %v2339
        %s2357 = scalar_lea.vmem %s3, 38
        %v2358 = vld [vmem:[%s2357] ss:$8 sm:$0x3]
        %v2360 = vperm.slane %v2358, 0
        %v2361 = vperm.slane %v2358, 1
        %v2364 = vmul.f32 %v2349, %v2360
        %v2365 = vmul.f32 %v2353, %v2361
        %v2366 = vmul.f32 %v2350, %v2360
        %v2367 = vmul.f32 %v2354, %v2361
        %v2368 = vmul.f32 %v2351, %v2360
        %v2369 = vmul.f32 %v2355, %v2361
        %v2370 = vmul.f32 %v2352, %v2360
        %v2371 = vmul.f32 %v2356, %v2361
        %2372 = vrot.lane.b32.xlu0 %v527, 95
        %v2373 = vpop.permute.xlu0 %2372
        %2374 = vrot.lane.b32.xlu0 %v529, 95
        %v2375 = vpop.permute.xlu0 %2374
        %2376 = vrot.lane.b32.xlu0 %v1160, 95
        %v2377 = vpop.permute.xlu0 %2376
        %2378 = vrot.lane.b32.xlu0 %v1162, 95
        %v2379 = vpop.permute.xlu0 %2378
        %2380 = vrot.lane.b32.xlu0 %v528, 95
        %v2381 = vpop.permute.xlu0 %2380
        %2382 = vrot.lane.b32.xlu0 %v530, 95
        %v2383 = vpop.permute.xlu0 %2382
        %2384 = vrot.lane.b32.xlu0 %v1161, 95
        %v2385 = vpop.permute.xlu0 %2384
        %2386 = vrot.lane.b32.xlu0 %v1163, 95
        %v2387 = vpop.permute.xlu0 %2386
        %vm2388 = vcmp.lt.s32.totalorder %v542, 95
        %v2389 = vsel %vm2388, %v2373, %v2381
        %v2390 = vsel %vm2388, %v2375, %v2383
        %v2391 = vsel %vm2388, %v2377, %v2385
        %v2392 = vsel %vm2388, %v2379, %v2387
        %v2393 = vsel %vm2388, %v2381, %v2373
        %v2394 = vsel %vm2388, %v2383, %v2375
        %v2395 = vsel %vm2388, %v2385, %v2377
        %v2396 = vsel %vm2388, %v2387, %v2379
        %s2397 = scalar_lea.vmem %s3, 39
        %v2398 = vld [vmem:[%s2397] ss:$8 sm:$0x3]
        %v2400 = vperm.slane %v2398, 0
        %v2401 = vperm.slane %v2398, 1
        %v2404 = vmul.f32 %v2389, %v2400
        %v2405 = vmul.f32 %v2393, %v2401
        %v2406 = vmul.f32 %v2390, %v2400
        %v2407 = vmul.f32 %v2394, %v2401
        %v2408 = vmul.f32 %v2391, %v2400
        %v2409 = vmul.f32 %v2395, %v2401
        %v2410 = vmul.f32 %v2392, %v2400
        %v2411 = vmul.f32 %v2396, %v2401
        %2412 = vrot.lane.b32.xlu0 %v527, 94
        %v2413 = vpop.permute.xlu0 %2412
        %2414 = vrot.lane.b32.xlu0 %v529, 94
        %v2415 = vpop.permute.xlu0 %2414
        %2416 = vrot.lane.b32.xlu0 %v1160, 94
        %v2417 = vpop.permute.xlu0 %2416
        %2418 = vrot.lane.b32.xlu0 %v1162, 94
        %v2419 = vpop.permute.xlu0 %2418
        %2420 = vrot.lane.b32.xlu0 %v528, 94
        %v2421 = vpop.permute.xlu0 %2420
        %2422 = vrot.lane.b32.xlu0 %v530, 94
        %v2423 = vpop.permute.xlu0 %2422
        %2424 = vrot.lane.b32.xlu0 %v1161, 94
        %v2425 = vpop.permute.xlu0 %2424
        %2426 = vrot.lane.b32.xlu0 %v1163, 94
        %v2427 = vpop.permute.xlu0 %2426
        %vm2428 = vcmp.lt.s32.totalorder %v542, 94
        %v2429 = vsel %vm2428, %v2413, %v2421
        %v2430 = vsel %vm2428, %v2415, %v2423
        %v2431 = vsel %vm2428, %v2417, %v2425
        %v2432 = vsel %vm2428, %v2419, %v2427
        %v2433 = vsel %vm2428, %v2421, %v2413
        %v2434 = vsel %vm2428, %v2423, %v2415
        %v2435 = vsel %vm2428, %v2425, %v2417
        %v2436 = vsel %vm2428, %v2427, %v2419
        %s2437 = scalar_lea.vmem %s3, 48
        %v2438 = vld [vmem:[%s2437] ss:$8 sm:$0x3]
        %v2440 = vperm.slane %v2438, 0
        %v2441 = vperm.slane %v2438, 1
        %v2444 = vmul.f32 %v2429, %v2440
        %v2445 = vmul.f32 %v2433, %v2441
        %v2446 = vmul.f32 %v2430, %v2440
        %v2447 = vmul.f32 %v2434, %v2441
        %v2448 = vmul.f32 %v2431, %v2440
        %v2449 = vmul.f32 %v2435, %v2441
        %v2450 = vmul.f32 %v2432, %v2440
        %v2451 = vmul.f32 %v2436, %v2441
        %v2452 = vpack.c.bf16 %v2286, %v2284
        %v2453 = vpack.c.bf16 %v2287, %v2285
        %v2454 = vpack.c.bf16 %v2290, %v2288
        %v2455 = vpack.c.bf16 %v2291, %v2289
        %v2456 = vpack.c.bf16 %v2326, %v2324
        %v2457 = vpack.c.bf16 %v2327, %v2325
        %v2458 = vpack.c.bf16 %v2330, %v2328
        %v2459 = vpack.c.bf16 %v2331, %v2329
        %v2460 = vpack.c.bf16 %v2366, %v2364
        %v2461 = vpack.c.bf16 %v2367, %v2365
        %v2462 = vpack.c.bf16 %v2370, %v2368
        %v2463 = vpack.c.bf16 %v2371, %v2369
        %v2464 = vpack.c.bf16 %v2406, %v2404
        %v2465 = vpack.c.bf16 %v2407, %v2405
        %v2466 = vpack.c.bf16 %v2410, %v2408
        %v2467 = vpack.c.bf16 %v2411, %v2409
        %v2468 = vpack.c.bf16 %v2446, %v2444
        %v2469 = vpack.c.bf16 %v2447, %v2445
        %v2470 = vpack.c.bf16 %v2450, %v2448
        %v2471 = vpack.c.bf16 %v2451, %v2449
        %s2472 = scalar_lea.vmem %s8, 32
        %v2473 = vld [vmem:[%s2472] sm:$0xff]
        %v2475 = vunpack.c.l.b16 %v2473
        %v2476 = vunpack.c.h.b16 %v2473
        %v2477 = vpack.c.b16 %v2475, %v2475
        %v2478 = vpack.c.b16 %v2476, %v2476
        %v2481 = vsel %vm1610, %v2478, 0
        %2483 = vmatpush.bf16.msra.mxu0 %v2466
        %2484 = vmatpush.bf16.msra.mxu0 %v2464
        %2485 = vmatpush.bf16.msra.mxu0 %v2462
        %2486 = vmatpush.bf16.msra.mxu0 %v2460
        %2487 = vmatpush.bf16.msra.mxu0 %v2458
        %2488 = vmatpush.bf16.msra.mxu0 %v2456
        %2489 = vmatpush.bf16.msra.mxu0 %v2454
        %2490 = vmatpush.bf16.msra.mxu0 %v2452
        %2491 = vmatmul.bf16.gmra.mxu0 %v2477
        %v2492 = vpop.f32.mrf.mxu0
        %v2493 = vadd.f32 0.0, %v2492
        %v2494 = vpop.f32.mrf.mxu0
        %2495 = vdwg.mxu0
        %2496 = vmatpush.bf16.msra.mxu0 0
        %2497 = vmatpush.bf16.msra.mxu0 0
        %2498 = vmatpush.bf16.msra.mxu0 0
        %2499 = vmatpush.bf16.msra.mxu0 0
        %2500 = vmatpush.bf16.msra.mxu0 0
        %2501 = vmatpush.bf16.msra.mxu0 0
        %2502 = vmatpush.bf16.msra.mxu0 %v2470
        %2503 = vmatpush.bf16.msra.mxu0 %v2468
        %2504 = vmatmul.bf16.gmra.mxu0 %v2481
        %v2505 = vpop.f32.mrf.mxu0
        %v2506 = vadd.f32 %v2493, %v2505
        %v2507 = vpop.f32.mrf.mxu0
        %2508 = vdwg.mxu0
        %2509 = vmatpush.bf16.msra.mxu0 %v2467
        %2510 = vmatpush.bf16.msra.mxu0 %v2465
        %2511 = vmatpush.bf16.msra.mxu0 %v2463
        %2512 = vmatpush.bf16.msra.mxu0 %v2461
        %2513 = vmatpush.bf16.msra.mxu0 %v2459
        %2514 = vmatpush.bf16.msra.mxu0 %v2457
        %2515 = vmatpush.bf16.msra.mxu0 %v2455
        %2516 = vmatpush.bf16.msra.mxu0 %v2453
        %2517 = vmatmul.bf16.gmra.mxu0 %v2477
        %v2518 = vpop.f32.mrf.mxu0
        %v2519 = vadd.f32 0.0, %v2518
        %v2520 = vpop.f32.mrf.mxu0
        %2521 = vdwg.mxu0
        %2522 = vmatpush.bf16.msra.mxu0 0
        %2523 = vmatpush.bf16.msra.mxu0 0
        %2524 = vmatpush.bf16.msra.mxu0 0
        %2525 = vmatpush.bf16.msra.mxu0 0
        %2526 = vmatpush.bf16.msra.mxu0 0
        %2527 = vmatpush.bf16.msra.mxu0 0
        %2528 = vmatpush.bf16.msra.mxu0 %v2471
        %2529 = vmatpush.bf16.msra.mxu0 %v2469
        %2530 = vmatmul.bf16.gmra.mxu0 %v2481
        %v2531 = vpop.f32.mrf.mxu0
        %v2532 = vadd.f32 %v2519, %v2531
        %v2533 = vpop.f32.mrf.mxu0
        %2534 = vdwg.mxu0
        %v2535 = vadd.f32 %v2250, %v2506
        %v2536 = vadd.f32 %v2251, %v2532
        %v2537 = vld [vmem:[%s9] sm:$0xff]
        %2539 = vset.pattern.permute.xlu0 0
        %2540 = vperm.xlu0 %2539, %v2537
        %v2541 = vpop.permute.xlu0 %2540
        %v2543 = vadd.f32 %v2535, %v2541
        %v2544 = vadd.f32 %v2536, %v2541
        %vm2545 = vcmp.gt.f32.partialorder %v2543, 0.0
        %vm2546 = vcmp.gt.f32.partialorder %v2544, 0.0
        %v2547 = vstv %s1164
        %v2548 = vmul.f32 %v2547, %v2543
        %v2549 = vmul.f32 %v2547, %v2544
        %v2550 = vsel %vm2545, %v2543, %v2548
        %v2551 = vsel %vm2546, %v2544, %v2549
        %s2552 = sld [smem:[#allocation3 + $0x1]]
        %2553 = vrot.lane.b32.xlu0 %v2550, 34
        %v2554 = vpop.permute.xlu0 %2553
        %2555 = vrot.lane.b32.xlu0 %v2551, 34
        %v2556 = vpop.permute.xlu0 %2555
        %v2557 = vsel %vm1181, %v2554, %v2556
        %v2558 = vsel %vm1181, %v2556, %v2554
        %v2559 = vmul.f32 %v2558, %v1192
        %v2560 = vmul.f32 %v2557, %v1193
        %2561 = vrot.lane.b32.xlu0 %v2550, 33
        %v2562 = vpop.permute.xlu0 %2561
        %2563 = vrot.lane.b32.xlu0 %v2551, 33
        %v2564 = vpop.permute.xlu0 %2563
        %v2565 = vsel %vm1220, %v2562, %v2564
        %v2566 = vsel %vm1220, %v2564, %v2562
        %v2567 = vmul.f32 %v2566, %v1232
        %v2568 = vmul.f32 %v2565, %v1233
        %2569 = vrot.lane.b32.xlu0 %v2550, 32
        %v2570 = vpop.permute.xlu0 %2569
        %2571 = vrot.lane.b32.xlu0 %v2551, 32
        %v2572 = vpop.permute.xlu0 %2571
        %v2573 = vsel %vm1260, %v2570, %v2572
        %v2574 = vsel %vm1260, %v2572, %v2570
        %v2575 = vmul.f32 %v2574, %v1272
        %v2576 = vmul.f32 %v2573, %v1273
        %2577 = vrot.lane.b32.xlu0 %v2550, 31
        %v2578 = vpop.permute.xlu0 %2577
        %2579 = vrot.lane.b32.xlu0 %v2551, 31
        %v2580 = vpop.permute.xlu0 %2579
        %v2581 = vsel %vm1300, %v2578, %v2580
        %v2582 = vsel %vm1300, %v2580, %v2578
        %v2583 = vmul.f32 %v2582, %v1312
        %v2584 = vmul.f32 %v2581, %v1313
        %2585 = vrot.lane.b32.xlu0 %v2550, 30
        %v2586 = vpop.permute.xlu0 %2585
        %2587 = vrot.lane.b32.xlu0 %v2551, 30
        %v2588 = vpop.permute.xlu0 %2587
        %v2589 = vsel %vm1340, %v2586, %v2588
        %v2590 = vsel %vm1340, %v2588, %v2586
        %v2591 = vmul.f32 %v2590, %v1352
        %v2592 = vmul.f32 %v2589, %v1353
        %v2593 = vpack.c.bf16 %v2567, %v2559
        %v2594 = vpack.c.bf16 %v2568, %v2560
        %v2595 = vpack.c.bf16 %v2583, %v2575
        %v2596 = vpack.c.bf16 %v2584, %v2576
        %v2597 = vpack.c.bf16 %v2591, %v2591
        %v2598 = vpack.c.bf16 %v2592, %v2592
        %v2599 = vld [vmem:[%s10] sm:$0x3]
        %2600 = vrot.lane.b32.xlu0 %v2550, 18
        %v2601 = vpop.permute.xlu0 %2600
        %2602 = vrot.lane.b32.xlu0 %v2551, 18
        %v2603 = vpop.permute.xlu0 %2602
        %v2604 = vsel %vm1401, %v2601, %v2603
        %v2605 = vsel %vm1401, %v2603, %v2601
        %v2606 = vmul.f32 %v2605, %v1413
        %v2607 = vmul.f32 %v2604, %v1414
        %2608 = vrot.lane.b32.xlu0 %v2550, 17
        %v2609 = vpop.permute.xlu0 %2608
        %2610 = vrot.lane.b32.xlu0 %v2551, 17
        %v2611 = vpop.permute.xlu0 %2610
        %v2612 = vsel %vm543, %v2609, %v2611
        %v2613 = vsel %vm543, %v2611, %v2609
        %v2614 = vmul.f32 %v2613, %v1452
        %v2615 = vmul.f32 %v2612, %v1453
        %2616 = vrot.lane.b32.xlu0 %v2550, 16
        %v2617 = vpop.permute.xlu0 %2616
        %2618 = vrot.lane.b32.xlu0 %v2551, 16
        %v2619 = vpop.permute.xlu0 %2618
        %v2620 = vsel %vm558, %v2617, %v2619
        %v2621 = vsel %vm558, %v2619, %v2617
        %v2622 = vmul.f32 %v2621, %v1491
        %v2623 = vmul.f32 %v2620, %v1492
        %2624 = vrot.lane.b32.xlu0 %v2550, 15
        %v2625 = vpop.permute.xlu0 %2624
        %2626 = vrot.lane.b32.xlu0 %v2551, 15
        %v2627 = vpop.permute.xlu0 %2626
        %v2628 = vsel %vm574, %v2625, %v2627
        %v2629 = vsel %vm574, %v2627, %v2625
        %v2630 = vmul.f32 %v2629, %v1530
        %v2631 = vmul.f32 %v2628, %v1531
        %2632 = vrot.lane.b32.xlu0 %v2550, 14
        %v2633 = vpop.permute.xlu0 %2632
        %2634 = vrot.lane.b32.xlu0 %v2551, 14
        %v2635 = vpop.permute.xlu0 %2634
        %v2636 = vsel %vm1558, %v2633, %v2635
        %v2637 = vsel %vm1558, %v2635, %v2633
        %v2638 = vmul.f32 %v2637, %v1570
        %v2639 = vmul.f32 %v2636, %v1571
        %v2640 = vpack.c.bf16 %v2614, %v2606
        %v2641 = vpack.c.bf16 %v2615, %v2607
        %v2642 = vpack.c.bf16 %v2630, %v2622
        %v2643 = vpack.c.bf16 %v2631, %v2623
        %v2644 = vpack.c.bf16 %v2638, %v2638
        %v2645 = vpack.c.bf16 %v2639, %v2639
        %s2646 = scalar_lea.vmem %s10, 2
        %v2647 = vld [vmem:[%s2646] sm:$0x3]
        %vm2648 = vcmask 326656
        %v2650 = vsel %vm2648, %v2647, 0
        %vm2652 = vcmask 1043456
        %v2654 = vsel %vm2652, %v2644, 0
        %v2657 = vsel %vm2652, %v2645, 0
        %2659 = vmatpush.bf16.msra.mxu0 0
        %2660 = vmatpush.bf16.msra.mxu0 0
        %2661 = vmatpush.bf16.msra.mxu0 0
        %2662 = vmatpush.bf16.msra.mxu0 0
        %2663 = vmatpush.bf16.msra.mxu0 0
        %2664 = vmatpush.bf16.msra.mxu0 %v2654
        %2665 = vmatpush.bf16.msra.mxu0 %v2642
        %2666 = vmatpush.bf16.msra.mxu0 %v2640
        %2667 = vmatmul.bf16.gmra.mxu0 %v2650
        %v2668 = vpop.f32.mrf.mxu0
        %v2669 = vadd.f32 0.0, %v2668
        %v2670 = vpop.f32.mrf.mxu0
        %2671 = vdwg.mxu0
        %2672 = vmatpush.bf16.msra.mxu0 0
        %2673 = vmatpush.bf16.msra.mxu0 0
        %2674 = vmatpush.bf16.msra.mxu0 0
        %2675 = vmatpush.bf16.msra.mxu0 0
        %2676 = vmatpush.bf16.msra.mxu0 0
        %2677 = vmatpush.bf16.msra.mxu0 %v2657
        %2678 = vmatpush.bf16.msra.mxu0 %v2643
        %2679 = vmatpush.bf16.msra.mxu0 %v2641
        %2680 = vmatmul.bf16.gmra.mxu0 %v2650
        %v2681 = vpop.f32.mrf.mxu0
        %v2682 = vadd.f32 0.0, %v2681
        %v2683 = vpop.f32.mrf.mxu0
        %2684 = vdwg.mxu0
        %v2686 = vsel %vm2648, %v2599, 0
        %v2689 = vsel %vm2652, %v2597, 0
        %v2692 = vsel %vm2652, %v2598, 0
        %2694 = vmatpush.bf16.msra.mxu0 0
        %2695 = vmatpush.bf16.msra.mxu0 0
        %2696 = vmatpush.bf16.msra.mxu0 0
        %2697 = vmatpush.bf16.msra.mxu0 0
        %2698 = vmatpush.bf16.msra.mxu0 0
        %2699 = vmatpush.bf16.msra.mxu0 %v2689
        %2700 = vmatpush.bf16.msra.mxu0 %v2595
        %2701 = vmatpush.bf16.msra.mxu0 %v2593
        %2702 = vmatmul.bf16.gmra.mxu0 %v2686
        %v2703 = vpop.f32.mrf.mxu0
        %v2704 = vadd.f32 %v2669, %v2703
        %v2705 = vpop.f32.mrf.mxu0
        %2706 = vdwg.mxu0
        %2707 = vmatpush.bf16.msra.mxu0 0
        %2708 = vmatpush.bf16.msra.mxu0 0
        %2709 = vmatpush.bf16.msra.mxu0 0
        %2710 = vmatpush.bf16.msra.mxu0 0
        %2711 = vmatpush.bf16.msra.mxu0 0
        %2712 = vmatpush.bf16.msra.mxu0 %v2692
        %2713 = vmatpush.bf16.msra.mxu0 %v2596
        %2714 = vmatpush.bf16.msra.mxu0 %v2594
        %2715 = vmatmul.bf16.gmra.mxu0 %v2686
        %v2716 = vpop.f32.mrf.mxu0
        %v2717 = vadd.f32 %v2682, %v2716
        %v2718 = vpop.f32.mrf.mxu0
        %2719 = vdwg.mxu0
        %2720 = vrot.lane.b32.xlu0 %v2550, 2
        %v2721 = vpop.permute.xlu0 %2720
        %2722 = vrot.lane.b32.xlu0 %v2551, 2
        %v2723 = vpop.permute.xlu0 %2722
        %v2724 = vsel %vm1743, %v2721, %v2723
        %v2725 = vsel %vm1743, %v2723, %v2721
        %v2726 = vmul.f32 %v2725, %v1755
        %v2727 = vmul.f32 %v2724, %v1756
        %2728 = vrot.lane.b32.xlu0 %v2550, 1
        %v2729 = vpop.permute.xlu0 %2728
        %2730 = vrot.lane.b32.xlu0 %v2551, 1
        %v2731 = vpop.permute.xlu0 %2730
        %v2732 = vsel %vm612, %v2729, %v2731
        %v2733 = vsel %vm612, %v2731, %v2729
        %v2734 = vmul.f32 %v2733, %v1794
        %v2735 = vmul.f32 %v2732, %v1795
        %2736 = vrot.lane.b32.xlu0 %v2550, 127
        %v2737 = vpop.permute.xlu0 %2736
        %2738 = vrot.lane.b32.xlu0 %v2551, 127
        %v2739 = vpop.permute.xlu0 %2738
        %v2740 = vsel %vm628, %v2737, %v2739
        %v2741 = vsel %vm628, %v2739, %v2737
        %v2742 = vmul.f32 %v2740, %v1833
        %v2743 = vmul.f32 %v2741, %v1834
        %2744 = vrot.lane.b32.xlu0 %v2550, 126
        %v2745 = vpop.permute.xlu0 %2744
        %2746 = vrot.lane.b32.xlu0 %v2551, 126
        %v2747 = vpop.permute.xlu0 %2746
        %v2748 = vsel %vm1861, %v2745, %v2747
        %v2749 = vsel %vm1861, %v2747, %v2745
        %v2750 = vmul.f32 %v2748, %v1873
        %v2751 = vmul.f32 %v2749, %v1874
        %v2752 = vpack.c.bf16 %v2734, %v2726
        %v2753 = vpack.c.bf16 %v2735, %v2727
        %v2754 = vpack.c.bf16 %v2742, %v2550
        %v2755 = vpack.c.bf16 %v2743, %v2551
        %v2756 = vpack.c.bf16 %v2750, %v2750
        %v2757 = vpack.c.bf16 %v2751, %v2751
        %s2758 = scalar_lea.vmem %s10, 4
        %v2759 = vld [vmem:[%s2758] sm:$0x3]
        %v2761 = vsel %vm2648, %v2759, 0
        %v2764 = vsel %vm2652, %v2756, 0
        %v2767 = vsel %vm2652, %v2757, 0
        %2769 = vmatpush.bf16.msra.mxu0 0
        %2770 = vmatpush.bf16.msra.mxu0 0
        %2771 = vmatpush.bf16.msra.mxu0 0
        %2772 = vmatpush.bf16.msra.mxu0 0
        %2773 = vmatpush.bf16.msra.mxu0 0
        %2774 = vmatpush.bf16.msra.mxu0 %v2764
        %2775 = vmatpush.bf16.msra.mxu0 %v2754
        %2776 = vmatpush.bf16.msra.mxu0 %v2752
        %2777 = vmatmul.bf16.gmra.mxu0 %v2761
        %v2778 = vpop.f32.mrf.mxu0
        %v2779 = vadd.f32 0.0, %v2778
        %v2780 = vpop.f32.mrf.mxu0
        %2781 = vdwg.mxu0
        %2782 = vmatpush.bf16.msra.mxu0 0
        %2783 = vmatpush.bf16.msra.mxu0 0
        %2784 = vmatpush.bf16.msra.mxu0 0
        %2785 = vmatpush.bf16.msra.mxu0 0
        %2786 = vmatpush.bf16.msra.mxu0 0
        %2787 = vmatpush.bf16.msra.mxu0 %v2767
        %2788 = vmatpush.bf16.msra.mxu0 %v2755
        %2789 = vmatpush.bf16.msra.mxu0 %v2753
        %2790 = vmatmul.bf16.gmra.mxu0 %v2761
        %v2791 = vpop.f32.mrf.mxu0
        %v2792 = vadd.f32 0.0, %v2791
        %v2793 = vpop.f32.mrf.mxu0
        %2794 = vdwg.mxu0
        %v2795 = vadd.f32 %v2704, %v2779
        %v2796 = vadd.f32 %v2717, %v2792
        %2797 = vrot.lane.b32.xlu0 %v2550, 114
        %v2798 = vpop.permute.xlu0 %2797
        %2799 = vrot.lane.b32.xlu0 %v2551, 114
        %v2800 = vpop.permute.xlu0 %2799
        %v2801 = vsel %vm1986, %v2798, %v2800
        %v2802 = vsel %vm1986, %v2800, %v2798
        %v2803 = vmul.f32 %v2801, %v1998
        %v2804 = vmul.f32 %v2802, %v1999
        %2805 = vrot.lane.b32.xlu0 %v2550, 113
        %v2806 = vpop.permute.xlu0 %2805
        %2807 = vrot.lane.b32.xlu0 %v2551, 113
        %v2808 = vpop.permute.xlu0 %2807
        %v2809 = vsel %vm746, %v2806, %v2808
        %v2810 = vsel %vm746, %v2808, %v2806
        %v2811 = vmul.f32 %v2809, %v2037
        %v2812 = vmul.f32 %v2810, %v2038
        %2813 = vrot.lane.b32.xlu0 %v2550, 112
        %v2814 = vpop.permute.xlu0 %2813
        %2815 = vrot.lane.b32.xlu0 %v2551, 112
        %v2816 = vpop.permute.xlu0 %2815
        %v2817 = vsel %vm762, %v2814, %v2816
        %v2818 = vsel %vm762, %v2816, %v2814
        %v2819 = vmul.f32 %v2817, %v2076
        %v2820 = vmul.f32 %v2818, %v2077
        %2821 = vrot.lane.b32.xlu0 %v2550, 111
        %v2822 = vpop.permute.xlu0 %2821
        %2823 = vrot.lane.b32.xlu0 %v2551, 111
        %v2824 = vpop.permute.xlu0 %2823
        %v2825 = vsel %vm778, %v2822, %v2824
        %v2826 = vsel %vm778, %v2824, %v2822
        %v2827 = vmul.f32 %v2825, %v2115
        %v2828 = vmul.f32 %v2826, %v2116
        %2829 = vrot.lane.b32.xlu0 %v2550, 110
        %v2830 = vpop.permute.xlu0 %2829
        %2831 = vrot.lane.b32.xlu0 %v2551, 110
        %v2832 = vpop.permute.xlu0 %2831
        %v2833 = vsel %vm2143, %v2830, %v2832
        %v2834 = vsel %vm2143, %v2832, %v2830
        %v2835 = vmul.f32 %v2833, %v2155
        %v2836 = vmul.f32 %v2834, %v2156
        %v2837 = vpack.c.bf16 %v2811, %v2803
        %v2838 = vpack.c.bf16 %v2812, %v2804
        %v2839 = vpack.c.bf16 %v2827, %v2819
        %v2840 = vpack.c.bf16 %v2828, %v2820
        %v2841 = vpack.c.bf16 %v2835, %v2835
        %v2842 = vpack.c.bf16 %v2836, %v2836
        %s2843 = scalar_lea.vmem %s10, 6
        %v2844 = vld [vmem:[%s2843] sm:$0x3]
        %v2846 = vsel %vm2648, %v2844, 0
        %v2849 = vsel %vm2652, %v2841, 0
        %v2852 = vsel %vm2652, %v2842, 0
        %2854 = vmatpush.bf16.msra.mxu0 0
        %2855 = vmatpush.bf16.msra.mxu0 0
        %2856 = vmatpush.bf16.msra.mxu0 0
        %2857 = vmatpush.bf16.msra.mxu0 0
        %2858 = vmatpush.bf16.msra.mxu0 0
        %2859 = vmatpush.bf16.msra.mxu0 %v2849
        %2860 = vmatpush.bf16.msra.mxu0 %v2839
        %2861 = vmatpush.bf16.msra.mxu0 %v2837
        %2862 = vmatmul.bf16.gmra.mxu0 %v2846
        %v2863 = vpop.f32.mrf.mxu0
        %v2864 = vadd.f32 0.0, %v2863
        %v2865 = vpop.f32.mrf.mxu0
        %2866 = vdwg.mxu0
        %2867 = vmatpush.bf16.msra.mxu0 0
        %2868 = vmatpush.bf16.msra.mxu0 0
        %2869 = vmatpush.bf16.msra.mxu0 0
        %2870 = vmatpush.bf16.msra.mxu0 0
        %2871 = vmatpush.bf16.msra.mxu0 0
        %2872 = vmatpush.bf16.msra.mxu0 %v2852
        %2873 = vmatpush.bf16.msra.mxu0 %v2840
        %2874 = vmatpush.bf16.msra.mxu0 %v2838
        %2875 = vmatmul.bf16.gmra.mxu0 %v2846
        %v2876 = vpop.f32.mrf.mxu0
        %v2877 = vadd.f32 0.0, %v2876
        %v2878 = vpop.f32.mrf.mxu0
        %2879 = vdwg.mxu0
        %v2880 = vadd.f32 %v2795, %v2864
        %v2881 = vadd.f32 %v2796, %v2877
        %2882 = vrot.lane.b32.xlu0 %v2550, 98
        %v2883 = vpop.permute.xlu0 %2882
        %2884 = vrot.lane.b32.xlu0 %v2551, 98
        %v2885 = vpop.permute.xlu0 %2884
        %v2886 = vsel %vm2268, %v2883, %v2885
        %v2887 = vsel %vm2268, %v2885, %v2883
        %v2888 = vmul.f32 %v2886, %v2280
        %v2889 = vmul.f32 %v2887, %v2281
        %2890 = vrot.lane.b32.xlu0 %v2550, 97
        %v2891 = vpop.permute.xlu0 %2890
        %2892 = vrot.lane.b32.xlu0 %v2551, 97
        %v2893 = vpop.permute.xlu0 %2892
        %v2894 = vsel %vm2308, %v2891, %v2893
        %v2895 = vsel %vm2308, %v2893, %v2891
        %v2896 = vmul.f32 %v2894, %v2320
        %v2897 = vmul.f32 %v2895, %v2321
        %2898 = vrot.lane.b32.xlu0 %v2550, 96
        %v2899 = vpop.permute.xlu0 %2898
        %2900 = vrot.lane.b32.xlu0 %v2551, 96
        %v2901 = vpop.permute.xlu0 %2900
        %v2902 = vsel %vm2348, %v2899, %v2901
        %v2903 = vsel %vm2348, %v2901, %v2899
        %v2904 = vmul.f32 %v2902, %v2360
        %v2905 = vmul.f32 %v2903, %v2361
        %2906 = vrot.lane.b32.xlu0 %v2550, 95
        %v2907 = vpop.permute.xlu0 %2906
        %2908 = vrot.lane.b32.xlu0 %v2551, 95
        %v2909 = vpop.permute.xlu0 %2908
        %v2910 = vsel %vm2388, %v2907, %v2909
        %v2911 = vsel %vm2388, %v2909, %v2907
        %v2912 = vmul.f32 %v2910, %v2400
        %v2913 = vmul.f32 %v2911, %v2401
        %2914 = vrot.lane.b32.xlu0 %v2550, 94
        %v2915 = vpop.permute.xlu0 %2914
        %2916 = vrot.lane.b32.xlu0 %v2551, 94
        %v2917 = vpop.permute.xlu0 %2916
        %v2918 = vsel %vm2428, %v2915, %v2917
        %v2919 = vsel %vm2428, %v2917, %v2915
        %v2920 = vmul.f32 %v2918, %v2440
        %v2921 = vmul.f32 %v2919, %v2441
        %v2922 = vpack.c.bf16 %v2896, %v2888
        %v2923 = vpack.c.bf16 %v2897, %v2889
        %v2924 = vpack.c.bf16 %v2912, %v2904
        %v2925 = vpack.c.bf16 %v2913, %v2905
        %v2926 = vpack.c.bf16 %v2920, %v2920
        %v2927 = vpack.c.bf16 %v2921, %v2921
        %s2928 = scalar_lea.vmem %s10, 8
        %v2929 = vld [vmem:[%s2928] sm:$0x3]
        %v2931 = vsel %vm2648, %v2929, 0
        %v2934 = vsel %vm2652, %v2926, 0
        %v2937 = vsel %vm2652, %v2927, 0
        %2939 = vmatpush.bf16.msra.mxu0 0
        %2940 = vmatpush.bf16.msra.mxu0 0
        %2941 = vmatpush.bf16.msra.mxu0 0
        %2942 = vmatpush.bf16.msra.mxu0 0
        %2943 = vmatpush.bf16.msra.mxu0 0
        %2944 = vmatpush.bf16.msra.mxu0 %v2934
        %2945 = vmatpush.bf16.msra.mxu0 %v2924
        %2946 = vmatpush.bf16.msra.mxu0 %v2922
        %2947 = vmatmul.bf16.gmra.mxu0 %v2931
        %v2948 = vpop.f32.mrf.mxu0
        %v2949 = vadd.f32 0.0, %v2948
        %v2950 = vpop.f32.mrf.mxu0
        %2951 = vdwg.mxu0
        %2952 = vmatpush.bf16.msra.mxu0 0
        %2953 = vmatpush.bf16.msra.mxu0 0
        %2954 = vmatpush.bf16.msra.mxu0 0
        %2955 = vmatpush.bf16.msra.mxu0 0
        %2956 = vmatpush.bf16.msra.mxu0 0
        %2957 = vmatpush.bf16.msra.mxu0 %v2937
        %2958 = vmatpush.bf16.msra.mxu0 %v2925
        %2959 = vmatpush.bf16.msra.mxu0 %v2923
        %2960 = vmatmul.bf16.gmra.mxu0 %v2931
        %v2961 = vpop.f32.mrf.mxu0
        %v2962 = vadd.f32 0.0, %v2961
        %v2963 = vpop.f32.mrf.mxu0
        %2964 = vdwg.mxu0
        %v2965 = vadd.f32 %v2880, %v2949
        %v2966 = vadd.f32 %v2881, %v2962
        %v2967 = vld [vmem:[%s11] sm:$0xf]
        %2969 = vset.pattern.permute.xlu0 0
        %2970 = vperm.xlu0 %2969, %v2967
        %v2971 = vpop.permute.xlu0 %2970
        %v2973 = vadd.f32 %v2965, %v2971
        %v2974 = vadd.f32 %v2966, %v2971
        %vm2975 = vcmp.gt.f32.partialorder %v2973, 0.0
        %vm2976 = vcmp.gt.f32.partialorder %v2974, 0.0
        %v2977 = vstv %s2552
        %v2978 = vmul.f32 %v2977, %v2973
        %v2979 = vmul.f32 %v2977, %v2974
        %v2980 = vsel %vm2975, %v2973, %v2978
        %v2981 = vsel %vm2976, %v2974, %v2979
        %2982 = vrot.lane.b32.xlu0 %v2980, 34
        %v2983 = vpop.permute.xlu0 %2982
        %2984 = vrot.lane.b32.xlu0 %v2981, 34
        %v2985 = vpop.permute.xlu0 %2984
        %v2986 = vsel %vm1181, %v2983, %v2985
        %v2987 = vsel %vm1181, %v2985, %v2983
        %v2988 = vmul.f32 %v2987, %v1192
        %v2989 = vmul.f32 %v2986, %v1193
        %2990 = vrot.lane.b32.xlu0 %v2980, 33
        %v2991 = vpop.permute.xlu0 %2990
        %2992 = vrot.lane.b32.xlu0 %v2981, 33
        %v2993 = vpop.permute.xlu0 %2992
        %v2994 = vsel %vm1220, %v2991, %v2993
        %v2995 = vsel %vm1220, %v2993, %v2991
        %v2996 = vmul.f32 %v2995, %v1232
        %v2997 = vmul.f32 %v2994, %v1233
        %2998 = vrot.lane.b32.xlu0 %v2980, 32
        %v2999 = vpop.permute.xlu0 %2998
        %3000 = vrot.lane.b32.xlu0 %v2981, 32
        %v3001 = vpop.permute.xlu0 %3000
        %v3002 = vsel %vm1260, %v2999, %v3001
        %v3003 = vsel %vm1260, %v3001, %v2999
        %v3004 = vmul.f32 %v3003, %v1272
        %v3005 = vmul.f32 %v3002, %v1273
        %3006 = vrot.lane.b32.xlu0 %v2980, 31
        %v3007 = vpop.permute.xlu0 %3006
        %3008 = vrot.lane.b32.xlu0 %v2981, 31
        %v3009 = vpop.permute.xlu0 %3008
        %v3010 = vsel %vm1300, %v3007, %v3009
        %v3011 = vsel %vm1300, %v3009, %v3007
        %v3012 = vmul.f32 %v3011, %v1312
        %v3013 = vmul.f32 %v3010, %v1313
        %3014 = vrot.lane.b32.xlu0 %v2980, 30
        %v3015 = vpop.permute.xlu0 %3014
        %3016 = vrot.lane.b32.xlu0 %v2981, 30
        %v3017 = vpop.permute.xlu0 %3016
        %v3018 = vsel %vm1340, %v3015, %v3017
        %v3019 = vsel %vm1340, %v3017, %v3015
        %v3020 = vmul.f32 %v3019, %v1352
        %v3021 = vmul.f32 %v3018, %v1353
        %v3024 = vrot.slane %v2996, 4
        %v3025 = vrot.slane %v2997, 4
        %v3030 = vrot.slane %v3012, 4
        %v3031 = vrot.slane %v3013, 4
        %v3034 = vsel %vm2652, %v2988, %v3024
        %v3035 = vsel %vm2652, %v2989, %v3025
        %v3036 = vsel %vm2652, %v3004, %v3030
        %v3037 = vsel %vm2652, %v3005, %v3031
        %v3038 = vpack.c.bf16 %v3036, %v3034
        %v3039 = vpack.c.bf16 %v3037, %v3035
        %v3040 = vpack.c.bf16 %v3020, %v3020
        %v3041 = vpack.c.bf16 %v3021, %v3021
        %v3042 = vld [vmem:[%s12] sm:$0x1]
        %3043 = vrot.lane.b32.xlu0 %v2980, 18
        %v3044 = vpop.permute.xlu0 %3043
        %3045 = vrot.lane.b32.xlu0 %v2981, 18
        %v3046 = vpop.permute.xlu0 %3045
        %v3047 = vsel %vm1401, %v3044, %v3046
        %v3048 = vsel %vm1401, %v3046, %v3044
        %v3049 = vmul.f32 %v3048, %v1413
        %v3050 = vmul.f32 %v3047, %v1414
        %3051 = vrot.lane.b32.xlu0 %v2980, 17
        %v3052 = vpop.permute.xlu0 %3051
        %3053 = vrot.lane.b32.xlu0 %v2981, 17
        %v3054 = vpop.permute.xlu0 %3053
        %v3055 = vsel %vm543, %v3052, %v3054
        %v3056 = vsel %vm543, %v3054, %v3052
        %v3057 = vmul.f32 %v3056, %v1452
        %v3058 = vmul.f32 %v3055, %v1453
        %3059 = vrot.lane.b32.xlu0 %v2980, 16
        %v3060 = vpop.permute.xlu0 %3059
        %3061 = vrot.lane.b32.xlu0 %v2981, 16
        %v3062 = vpop.permute.xlu0 %3061
        %v3063 = vsel %vm558, %v3060, %v3062
        %v3064 = vsel %vm558, %v3062, %v3060
        %v3065 = vmul.f32 %v3064, %v1491
        %v3066 = vmul.f32 %v3063, %v1492
        %3067 = vrot.lane.b32.xlu0 %v2980, 15
        %v3068 = vpop.permute.xlu0 %3067
        %3069 = vrot.lane.b32.xlu0 %v2981, 15
        %v3070 = vpop.permute.xlu0 %3069
        %v3071 = vsel %vm574, %v3068, %v3070
        %v3072 = vsel %vm574, %v3070, %v3068
        %v3073 = vmul.f32 %v3072, %v1530
        %v3074 = vmul.f32 %v3071, %v1531
        %3075 = vrot.lane.b32.xlu0 %v2980, 14
        %v3076 = vpop.permute.xlu0 %3075
        %3077 = vrot.lane.b32.xlu0 %v2981, 14
        %v3078 = vpop.permute.xlu0 %3077
        %v3079 = vsel %vm1558, %v3076, %v3078
        %v3080 = vsel %vm1558, %v3078, %v3076
        %v3081 = vmul.f32 %v3080, %v1570
        %v3082 = vmul.f32 %v3079, %v1571
        %v3085 = vrot.slane %v3057, 4
        %v3086 = vrot.slane %v3058, 4
        %v3091 = vrot.slane %v3073, 4
        %v3092 = vrot.slane %v3074, 4
        %v3095 = vsel %vm2652, %v3049, %v3085
        %v3096 = vsel %vm2652, %v3050, %v3086
        %v3097 = vsel %vm2652, %v3065, %v3091
        %v3098 = vsel %vm2652, %v3066, %v3092
        %v3099 = vpack.c.bf16 %v3097, %v3095
        %v3100 = vpack.c.bf16 %v3098, %v3096
        %v3101 = vpack.c.bf16 %v3081, %v3081
        %v3102 = vpack.c.bf16 %v3082, %v3082
        %s3103 = scalar_lea.vmem %s12, 1
        %v3104 = vld [vmem:[%s3103] sm:$0x1]
        %vm3105 = vcmask 162816
        %v3107 = vsel %vm3105, %v3104, 0
        %v3110 = vsel %vm601, %v3101, 0
        %v3113 = vsel %vm601, %v3102, 0
        %3115 = vmatpush.bf16.msra.mxu0 0
        %3116 = vmatpush.bf16.msra.mxu0 0
        %3117 = vmatpush.bf16.msra.mxu0 0
        %3118 = vmatpush.bf16.msra.mxu0 0
        %3119 = vmatpush.bf16.msra.mxu0 0
        %3120 = vmatpush.bf16.msra.mxu0 0
        %3121 = vmatpush.bf16.msra.mxu0 %v3110
        %3122 = vmatpush.bf16.msra.mxu0 %v3099
        %3123 = vmatmul.bf16.gmra.mxu0 %v3107
        %v3124 = vpop.f32.mrf.mxu0
        %v3125 = vadd.f32 0.0, %v3124
        %v3126 = vpop.f32.mrf.mxu0
        %3127 = vdwg.mxu0
        %3128 = vmatpush.bf16.msra.mxu0 0
        %3129 = vmatpush.bf16.msra.mxu0 0
        %3130 = vmatpush.bf16.msra.mxu0 0
        %3131 = vmatpush.bf16.msra.mxu0 0
        %3132 = vmatpush.bf16.msra.mxu0 0
        %3133 = vmatpush.bf16.msra.mxu0 0
        %3134 = vmatpush.bf16.msra.mxu0 %v3113
        %3135 = vmatpush.bf16.msra.mxu0 %v3100
        %3136 = vmatmul.bf16.gmra.mxu0 %v3107
        %v3137 = vpop.f32.mrf.mxu0
        %v3138 = vadd.f32 0.0, %v3137
        %v3139 = vpop.f32.mrf.mxu0
        %3140 = vdwg.mxu0
        %v3142 = vsel %vm3105, %v3042, 0
        %v3145 = vsel %vm601, %v3040, 0
        %v3148 = vsel %vm601, %v3041, 0
        %3150 = vmatpush.bf16.msra.mxu0 0
        %3151 = vmatpush.bf16.msra.mxu0 0
        %3152 = vmatpush.bf16.msra.mxu0 0
        %3153 = vmatpush.bf16.msra.mxu0 0
        %3154 = vmatpush.bf16.msra.mxu0 0
        %3155 = vmatpush.bf16.msra.mxu0 0
        %3156 = vmatpush.bf16.msra.mxu0 %v3145
        %3157 = vmatpush.bf16.msra.mxu0 %v3038
        %3158 = vmatmul.bf16.gmra.mxu0 %v3142
        %v3159 = vpop.f32.mrf.mxu0
        %v3160 = vadd.f32 %v3125, %v3159
        %v3161 = vpop.f32.mrf.mxu0
        %3162 = vdwg.mxu0
        %3163 = vmatpush.bf16.msra.mxu0 0
        %3164 = vmatpush.bf16.msra.mxu0 0
        %3165 = vmatpush.bf16.msra.mxu0 0
        %3166 = vmatpush.bf16.msra.mxu0 0
        %3167 = vmatpush.bf16.msra.mxu0 0
        %3168 = vmatpush.bf16.msra.mxu0 0
        %3169 = vmatpush.bf16.msra.mxu0 %v3148
        %3170 = vmatpush.bf16.msra.mxu0 %v3039
        %3171 = vmatmul.bf16.gmra.mxu0 %v3142
        %v3172 = vpop.f32.mrf.mxu0
        %v3173 = vadd.f32 %v3138, %v3172
        %v3174 = vpop.f32.mrf.mxu0
        %3175 = vdwg.mxu0
        %3176 = vrot.lane.b32.xlu0 %v2980, 2
        %v3177 = vpop.permute.xlu0 %3176
        %3178 = vrot.lane.b32.xlu0 %v2981, 2
        %v3179 = vpop.permute.xlu0 %3178
        %v3180 = vsel %vm1743, %v3177, %v3179
        %v3181 = vsel %vm1743, %v3179, %v3177
        %v3182 = vmul.f32 %v3181, %v1755
        %v3183 = vmul.f32 %v3180, %v1756
        %3184 = vrot.lane.b32.xlu0 %v2980, 1
        %v3185 = vpop.permute.xlu0 %3184
        %3186 = vrot.lane.b32.xlu0 %v2981, 1
        %v3187 = vpop.permute.xlu0 %3186
        %v3188 = vsel %vm612, %v3185, %v3187
        %v3189 = vsel %vm612, %v3187, %v3185
        %v3190 = vmul.f32 %v3189, %v1794
        %v3191 = vmul.f32 %v3188, %v1795
        %3192 = vrot.lane.b32.xlu0 %v2980, 127
        %v3193 = vpop.permute.xlu0 %3192
        %3194 = vrot.lane.b32.xlu0 %v2981, 127
        %v3195 = vpop.permute.xlu0 %3194
        %v3196 = vsel %vm628, %v3193, %v3195
        %v3197 = vsel %vm628, %v3195, %v3193
        %v3198 = vmul.f32 %v3196, %v1833
        %v3199 = vmul.f32 %v3197, %v1834
        %3200 = vrot.lane.b32.xlu0 %v2980, 126
        %v3201 = vpop.permute.xlu0 %3200
        %3202 = vrot.lane.b32.xlu0 %v2981, 126
        %v3203 = vpop.permute.xlu0 %3202
        %v3204 = vsel %vm1861, %v3201, %v3203
        %v3205 = vsel %vm1861, %v3203, %v3201
        %v3206 = vmul.f32 %v3204, %v1873
        %v3207 = vmul.f32 %v3205, %v1874
        %v3210 = vrot.slane %v3190, 4
        %v3211 = vrot.slane %v3191, 4
        %v3216 = vrot.slane %v3198, 4
        %v3217 = vrot.slane %v3199, 4
        %v3220 = vsel %vm2652, %v3182, %v3210
        %v3221 = vsel %vm2652, %v3183, %v3211
        %v3222 = vsel %vm2652, %v2980, %v3216
        %v3223 = vsel %vm2652, %v2981, %v3217
        %v3224 = vpack.c.bf16 %v3222, %v3220
        %v3225 = vpack.c.bf16 %v3223, %v3221
        %v3226 = vpack.c.bf16 %v3206, %v3206
        %v3227 = vpack.c.bf16 %v3207, %v3207
        %s3228 = scalar_lea.vmem %s12, 2
        %v3229 = vld [vmem:[%s3228] sm:$0x1]
        %v3231 = vsel %vm3105, %v3229, 0
        %v3234 = vsel %vm601, %v3226, 0
        %v3237 = vsel %vm601, %v3227, 0
        %3239 = vmatpush.bf16.msra.mxu0 0
        %3240 = vmatpush.bf16.msra.mxu0 0
        %3241 = vmatpush.bf16.msra.mxu0 0
        %3242 = vmatpush.bf16.msra.mxu0 0
        %3243 = vmatpush.bf16.msra.mxu0 0
        %3244 = vmatpush.bf16.msra.mxu0 0
        %3245 = vmatpush.bf16.msra.mxu0 %v3234
        %3246 = vmatpush.bf16.msra.mxu0 %v3224
        %3247 = vmatmul.bf16.gmra.mxu0 %v3231
        %v3248 = vpop.f32.mrf.mxu0
        %v3249 = vadd.f32 0.0, %v3248
        %v3250 = vpop.f32.mrf.mxu0
        %3251 = vdwg.mxu0
        %3252 = vmatpush.bf16.msra.mxu0 0
        %3253 = vmatpush.bf16.msra.mxu0 0
        %3254 = vmatpush.bf16.msra.mxu0 0
        %3255 = vmatpush.bf16.msra.mxu0 0
        %3256 = vmatpush.bf16.msra.mxu0 0
        %3257 = vmatpush.bf16.msra.mxu0 0
        %3258 = vmatpush.bf16.msra.mxu0 %v3237
        %3259 = vmatpush.bf16.msra.mxu0 %v3225
        %3260 = vmatmul.bf16.gmra.mxu0 %v3231
        %v3261 = vpop.f32.mrf.mxu0
        %v3262 = vadd.f32 0.0, %v3261
        %v3263 = vpop.f32.mrf.mxu0
        %3264 = vdwg.mxu0
        %v3265 = vadd.f32 %v3160, %v3249
        %v3266 = vadd.f32 %v3173, %v3262
        %3267 = vrot.lane.b32.xlu0 %v2980, 114
        %v3268 = vpop.permute.xlu0 %3267
        %3269 = vrot.lane.b32.xlu0 %v2981, 114
        %v3270 = vpop.permute.xlu0 %3269
        %v3271 = vsel %vm1986, %v3268, %v3270
        %v3272 = vsel %vm1986, %v3270, %v3268
        %v3273 = vmul.f32 %v3271, %v1998
        %v3274 = vmul.f32 %v3272, %v1999
        %3275 = vrot.lane.b32.xlu0 %v2980, 113
        %v3276 = vpop.permute.xlu0 %3275
        %3277 = vrot.lane.b32.xlu0 %v2981, 113
        %v3278 = vpop.permute.xlu0 %3277
        %v3279 = vsel %vm746, %v3276, %v3278
        %v3280 = vsel %vm746, %v3278, %v3276
        %v3281 = vmul.f32 %v3279, %v2037
        %v3282 = vmul.f32 %v3280, %v2038
        %3283 = vrot.lane.b32.xlu0 %v2980, 112
        %v3284 = vpop.permute.xlu0 %3283
        %3285 = vrot.lane.b32.xlu0 %v2981, 112
        %v3286 = vpop.permute.xlu0 %3285
        %v3287 = vsel %vm762, %v3284, %v3286
        %v3288 = vsel %vm762, %v3286, %v3284
        %v3289 = vmul.f32 %v3287, %v2076
        %v3290 = vmul.f32 %v3288, %v2077
        %3291 = vrot.lane.b32.xlu0 %v2980, 111
        %v3292 = vpop.permute.xlu0 %3291
        %3293 = vrot.lane.b32.xlu0 %v2981, 111
        %v3294 = vpop.permute.xlu0 %3293
        %v3295 = vsel %vm778, %v3292, %v3294
        %v3296 = vsel %vm778, %v3294, %v3292
        %v3297 = vmul.f32 %v3295, %v2115
        %v3298 = vmul.f32 %v3296, %v2116
        %3299 = vrot.lane.b32.xlu0 %v2980, 110
        %v3300 = vpop.permute.xlu0 %3299
        %3301 = vrot.lane.b32.xlu0 %v2981, 110
        %v3302 = vpop.permute.xlu0 %3301
        %v3303 = vsel %vm2143, %v3300, %v3302
        %v3304 = vsel %vm2143, %v3302, %v3300
        %v3305 = vmul.f32 %v3303, %v2155
        %v3306 = vmul.f32 %v3304, %v2156
        %v3309 = vrot.slane %v3281, 4
        %v3310 = vrot.slane %v3282, 4
        %v3315 = vrot.slane %v3297, 4
        %v3316 = vrot.slane %v3298, 4
        %v3319 = vsel %vm2652, %v3273, %v3309
        %v3320 = vsel %vm2652, %v3274, %v3310
        %v3321 = vsel %vm2652, %v3289, %v3315
        %v3322 = vsel %vm2652, %v3290, %v3316
        %v3323 = vpack.c.bf16 %v3321, %v3319
        %v3324 = vpack.c.bf16 %v3322, %v3320
        %v3325 = vpack.c.bf16 %v3305, %v3305
        %v3326 = vpack.c.bf16 %v3306, %v3306
        %s3327 = scalar_lea.vmem %s12, 3
        %v3328 = vld [vmem:[%s3327] sm:$0x1]
        %v3330 = vsel %vm3105, %v3328, 0
        %v3333 = vsel %vm601, %v3325, 0
        %v3336 = vsel %vm601, %v3326, 0
        %3338 = vmatpush.bf16.msra.mxu0 0
        %3339 = vmatpush.bf16.msra.mxu0 0
        %3340 = vmatpush.bf16.msra.mxu0 0
        %3341 = vmatpush.bf16.msra.mxu0 0
        %3342 = vmatpush.bf16.msra.mxu0 0
        %3343 = vmatpush.bf16.msra.mxu0 0
        %3344 = vmatpush.bf16.msra.mxu0 %v3333
        %3345 = vmatpush.bf16.msra.mxu0 %v3323
        %3346 = vmatmul.bf16.gmra.mxu0 %v3330
        %v3347 = vpop.f32.mrf.mxu0
        %v3348 = vadd.f32 0.0, %v3347
        %v3349 = vpop.f32.mrf.mxu0
        %3350 = vdwg.mxu0
        %3351 = vmatpush.bf16.msra.mxu0 0
        %3352 = vmatpush.bf16.msra.mxu0 0
        %3353 = vmatpush.bf16.msra.mxu0 0
        %3354 = vmatpush.bf16.msra.mxu0 0
        %3355 = vmatpush.bf16.msra.mxu0 0
        %3356 = vmatpush.bf16.msra.mxu0 0
        %3357 = vmatpush.bf16.msra.mxu0 %v3336
        %3358 = vmatpush.bf16.msra.mxu0 %v3324
        %3359 = vmatmul.bf16.gmra.mxu0 %v3330
        %v3360 = vpop.f32.mrf.mxu0
        %v3361 = vadd.f32 0.0, %v3360
        %v3362 = vpop.f32.mrf.mxu0
        %3363 = vdwg.mxu0
        %v3364 = vadd.f32 %v3265, %v3348
        %v3365 = vadd.f32 %v3266, %v3361
        %3366 = vrot.lane.b32.xlu0 %v2980, 98
        %v3367 = vpop.permute.xlu0 %3366
        %3368 = vrot.lane.b32.xlu0 %v2981, 98
        %v3369 = vpop.permute.xlu0 %3368
        %v3370 = vsel %vm2268, %v3367, %v3369
        %v3371 = vsel %vm2268, %v3369, %v3367
        %v3372 = vmul.f32 %v3370, %v2280
        %v3373 = vmul.f32 %v3371, %v2281
        %3374 = vrot.lane.b32.xlu0 %v2980, 97
        %v3375 = vpop.permute.xlu0 %3374
        %3376 = vrot.lane.b32.xlu0 %v2981, 97
        %v3377 = vpop.permute.xlu0 %3376
        %v3378 = vsel %vm2308, %v3375, %v3377
        %v3379 = vsel %vm2308, %v3377, %v3375
        %v3380 = vmul.f32 %v3378, %v2320
        %v3381 = vmul.f32 %v3379, %v2321
        %3382 = vrot.lane.b32.xlu0 %v2980, 96
        %v3383 = vpop.permute.xlu0 %3382
        %3384 = vrot.lane.b32.xlu0 %v2981, 96
        %v3385 = vpop.permute.xlu0 %3384
        %v3386 = vsel %vm2348, %v3383, %v3385
        %v3387 = vsel %vm2348, %v3385, %v3383
        %v3388 = vmul.f32 %v3386, %v2360
        %v3389 = vmul.f32 %v3387, %v2361
        %3390 = vrot.lane.b32.xlu0 %v2980, 95
        %v3391 = vpop.permute.xlu0 %3390
        %3392 = vrot.lane.b32.xlu0 %v2981, 95
        %v3393 = vpop.permute.xlu0 %3392
        %v3394 = vsel %vm2388, %v3391, %v3393
        %v3395 = vsel %vm2388, %v3393, %v3391
        %v3396 = vmul.f32 %v3394, %v2400
        %v3397 = vmul.f32 %v3395, %v2401
        %3398 = vrot.lane.b32.xlu0 %v2980, 94
        %v3399 = vpop.permute.xlu0 %3398
        %3400 = vrot.lane.b32.xlu0 %v2981, 94
        %v3401 = vpop.permute.xlu0 %3400
        %v3402 = vsel %vm2428, %v3399, %v3401
        %v3403 = vsel %vm2428, %v3401, %v3399
        %v3404 = vmul.f32 %v3402, %v2440
        %v3405 = vmul.f32 %v3403, %v2441
        %v3408 = vrot.slane %v3380, 4
        %v3409 = vrot.slane %v3381, 4
        %v3414 = vrot.slane %v3396, 4
        %v3415 = vrot.slane %v3397, 4
        %v3418 = vsel %vm2652, %v3372, %v3408
        %v3419 = vsel %vm2652, %v3373, %v3409
        %v3420 = vsel %vm2652, %v3388, %v3414
        %v3421 = vsel %vm2652, %v3389, %v3415
        %v3422 = vpack.c.bf16 %v3420, %v3418
        %v3423 = vpack.c.bf16 %v3421, %v3419
        %v3424 = vpack.c.bf16 %v3404, %v3404
        %v3425 = vpack.c.bf16 %v3405, %v3405
        %s3426 = scalar_lea.vmem %s12, 4
        %v3427 = vld [vmem:[%s3426] sm:$0x1]
        %v3429 = vsel %vm3105, %v3427, 0
        %v3432 = vsel %vm601, %v3424, 0
        %v3435 = vsel %vm601, %v3425, 0
        %3437 = vmatpush.bf16.msra.mxu0 0
        %3438 = vmatpush.bf16.msra.mxu0 0
        %3439 = vmatpush.bf16.msra.mxu0 0
        %3440 = vmatpush.bf16.msra.mxu0 0
        %3441 = vmatpush.bf16.msra.mxu0 0
        %3442 = vmatpush.bf16.msra.mxu0 0
        %3443 = vmatpush.bf16.msra.mxu0 %v3432
        %3444 = vmatpush.bf16.msra.mxu0 %v3422
        %3445 = vmatmul.bf16.gmra.mxu0 %v3429
        %v3446 = vpop.f32.mrf.mxu0
        %v3447 = vadd.f32 0.0, %v3446
        %v3448 = vpop.f32.mrf.mxu0
        %3449 = vdwg.mxu0
        %3450 = vmatpush.bf16.msra.mxu0 0
        %3451 = vmatpush.bf16.msra.mxu0 0
        %3452 = vmatpush.bf16.msra.mxu0 0
        %3453 = vmatpush.bf16.msra.mxu0 0
        %3454 = vmatpush.bf16.msra.mxu0 0
        %3455 = vmatpush.bf16.msra.mxu0 0
        %3456 = vmatpush.bf16.msra.mxu0 %v3435
        %3457 = vmatpush.bf16.msra.mxu0 %v3423
        %3458 = vmatmul.bf16.gmra.mxu0 %v3429
        %v3459 = vpop.f32.mrf.mxu0
        %v3460 = vadd.f32 0.0, %v3459
        %v3461 = vpop.f32.mrf.mxu0
        %3462 = vdwg.mxu0
        %v3463 = vadd.f32 %v3364, %v3447
        %v3464 = vadd.f32 %v3365, %v3460
        %v3465 = vld [vmem:[#allocation2] sm:$0x1]
        %3467 = vset.pattern.permute.xlu0 0
        %3468 = vperm.xlu0 %3467, %v3465
        %v3469 = vpop.permute.xlu0 %3468
        %v3471 = vperm.slane %v3469, 0
        %v3472 = vadd.f32 %v3463, %v3471
        %v3473 = vadd.f32 %v3464, %v3471
        %v3474 = vxor.u32 %v3472, 2147483648
        %v3475 = vxor.u32 %v3473, 2147483648
        %v3476 = vmul.f32 %v3474, 1.442695
        %v3477 = vpow.pop %v3476
        %v3478 = vmul.f32 %v3475, 1.442695
        %v3479 = vpow.pop %v3478
        %v3480 = vadd.f32 %v3477, 1.0
        %v3481 = vadd.f32 %v3479, 1.0
        %v3482 = vrcp.pop %v3480
        %v3483 = vmul.f32 %v3480, %v3482
        %v3484 = vsub.f32 1.0, %v3483
        %v3485 = vmul.f32 %v3482, %v3484
        %v3486 = vadd.f32 %v3482, %v3485
        %vm3487 = vweird.f32 %v3480
        %vm3488 = vweird.f32 %v3482
        %vm3489 = vmor %vm3487, %vm3488
        %v3490 = vsel %vm3489, %v3482, %v3486
        %v3491 = vand.u32 2147483647, %v3480
        %vm3492 = vcmp.eq.f32.partialorder %v3491, 8.507059e+37
        %v3493 = vand.u32 %v3480, 2147483648
        %v3494 = vor.u32 1.1754944e-38, %v3493
        %v3495 = vsel %vm3492, %v3494, %v3490
        %v3496 = vmul.f32 1.0, %v3495
        %v3497 = vrcp.pop %v3481
        %v3498 = vmul.f32 %v3481, %v3497
        %v3499 = vsub.f32 1.0, %v3498
        %v3500 = vmul.f32 %v3497, %v3499
        %v3501 = vadd.f32 %v3497, %v3500
        %vm3502 = vweird.f32 %v3481
        %vm3503 = vweird.f32 %v3497
        %vm3504 = vmor %vm3502, %vm3503
        %v3505 = vsel %vm3504, %v3497, %v3501
        %v3506 = vand.u32 2147483647, %v3481
        %vm3507 = vcmp.eq.f32.partialorder %v3506, 8.507059e+37
        %v3508 = vand.u32 %v3481, 2147483648
        %v3509 = vor.u32 1.1754944e-38, %v3508
        %v3510 = vsel %vm3507, %v3509, %v3505
        %v3511 = vmul.f32 1.0, %v3510
        %v3514 = vrot.slane %v3511, 7
        %v3515 = vsel %vm598, %v3496, %v3514
        %v3517 = vlaneseq
        %vm3518 = vcmp.ge.s32.totalorder %v3517, 0
        %vm3519 = vcmp.lt.s32.totalorder %v3517, 256
        %vm3520 = vmand %vm3518, %vm3519
        %3521 = vst.msk [vmem:[%s525] sm:$0x3] %vm3520, %v3515
        %p3522 = scmp.lt.s32.totalorder %s29, 1
        %s3523 = scalar_select %p3522, %s29, 1
        %s3524 = smul.addr %s3523, 2
        %s3525 = scalar_lea.vmem %s15, %s3524
        // Predicated region
        $region85: #{forward.3} parent=79 // pred_check
          %p3526 = pneg %p372
        $region86: #{forward.3} parent=79 // pred_check_branch
          %3528 = sbr.rel (%p3526) target = $region88
        $region87: #{forward.3} parent=79 // pred_region
          _
        $region88: #{forward.3} parent=79 // pred_fallthru
          _
      $region80: #{forward.3} parent=5 // pred_fallthru
        _
      %p3529 = scmp.le.s32.totalorder 2, %s24
      // Predicated region
      $region89: #{forward.3} parent=5 // pred_check
        %p3530 = pneg %p3529
      $region90: #{forward.3} parent=5 // pred_check_branch
        %3532 = sbr.rel (%p3530) target = $region92
      $region91: #{forward.3} parent=5 // pred_region
        %s3533 = ssub.s32 %s24, 2
        // Predicated region
        $region93: #{forward.3} parent=91 // pred_check
          %p3534 = pneg %p378
        $region94: #{forward.3} parent=91 // pred_check_branch
          %3536 = sbr.rel (%p3534) target = $region96
        $region95: #{forward.3} parent=91 // pred_region
          %p3537 = scmp.lt.s32.totalorder %s30, 1
          %s3538 = scalar_select %p3537, %s30, 1
          %s3539 = smul.addr %s3538, 2
          %s3540 = scalar_lea.vmem %s15, %s3539
        $region96: #{forward.3} parent=91 // pred_fallthru
          _
      $region92: #{forward.3} parent=5 // pred_fallthru
        _
    $region6: #{forward.3} parent=1 // loop_footer
      %s28 = sadd.s32 1, %s24
    $region7: #{forward.3} parent=1 // loop_footer_branch
      %23 = sbr.rel target = $region3
    $region8: #{forward.3} parent=1 // loop_exit
      _
    %3541 = vsyncpa [#allocation4], 1
    %s3542 = scalar_lea.sflag [#allocation4], 1
    %3543 = vsyncpa %s3542, 1

</llo_original>
